<compile_context>
chip_gen: v7x
topology: tpu7x:2x2x1
jax: 0.10.0
libtpu: 0.0.40
codegen_flags: <defaults>
</compile_context>

<pallas_src>
import jax
import jax.numpy as jnp
from jax.experimental import pallas as pl
from jax.experimental.pallas import tpu as pltpu

# ------------------------- model hyper-parameters -------------------------
SRC_VOCAB_SIZE = 50
EMBED_SIZE = 32
NUM_LAYERS = 2
HEADS = 4
FORWARD_EXPANSION = 4
MAX_LENGTH = 16
LN_EPS = 1e-5

N_BATCH = 2
SEQ_LEN = 8

# row order inside the packed (L, 9, E) vector slab
_BQ, _BK, _BV, _BO, _LN1G, _LN1B, _B2, _LN2G, _LN2B = range(9)


# ------------------------------ fused Pallas kernel ------------------------------
def encoder_kernel(tok_ref, we_ref, pe_ref, mask_ref,
                   wqkv_ref, wo_ref, w1_ref, w2_ref, vec_ref, b1_ref,
                   out_ref, scr_ref):
    """Embedding lookup+add and all transformer blocks, one invocation, whole batch."""
    N, S = mask_ref.shape                      # (N, S) key mask
    V, E = we_ref.shape                        # vocab, embed
    H = HEADS
    D = E // H
    L = wqkv_ref.shape[0]
    scale = 1.0 / (float(E) ** 0.5)

    # ---- word embedding gather fused in-kernel: one-hot @ table on the MXU ----
    tok = tok_ref[...]                                              # (N*S, 1) int32
    vocab_iota = jax.lax.broadcasted_iota(jnp.int32, (N * S, V), 1)
    onehot = (vocab_iota == tok).astype(jnp.float32)                # (N*S, V)
    we = jnp.dot(onehot, we_ref[...], preferred_element_type=jnp.float32)  # (N*S, E)

    # ---- position embedding: static rows 0..S-1, broadcast over batch via scratch ----
    pe = pe_ref[0:S, :]                                             # (S, E)
    for n in range(N):                                              # static, tile-aligned stores
        scr_ref[n * S:(n + 1) * S, :] = we[n * S:(n + 1) * S, :] + pe
    x = scr_ref[...]                                                # (N*S, E); dropout = identity

    # additive key-mask bias, computed ONCE per call
    bias = jnp.where(mask_ref[...] == 0.0,
                     jnp.float32(-1e20), jnp.float32(0.0))          # (N, S)

    for li in range(L):                                             # static unroll over layers
        vec = vec_ref[li]                                           # (9, E) bias/gain slab
        bq, bk, bv = vec[_BQ:_BQ + 1, :], vec[_BK:_BK + 1, :], vec[_BV:_BV + 1, :]
        bo = vec[_BO:_BO + 1, :]
        ln1g, ln1b = vec[_LN1G:_LN1G + 1, :], vec[_LN1B:_LN1B + 1, :]
        b2 = vec[_B2:_B2 + 1, :]
        ln2g, ln2b = vec[_LN2G:_LN2G + 1, :], vec[_LN2B:_LN2B + 1, :]
        b1 = b1_ref[li]                                             # (1, 4E)

        # ---- fused Q/K/V projection: ONE (N*S,E)@(E,3E) matmul ----
        qkv = jnp.dot(x, wqkv_ref[li], preferred_element_type=jnp.float32)  # (N*S, 3E)
        q = (qkv[:, 0:E] + bq) * scale        # fold 1/sqrt(E) into q once
        k = qkv[:, E:2 * E] + bk
        v = qkv[:, 2 * E:3 * E] + bv

        # ---- attention core: per-(batch, head) dots, results scattered into scratch ----
        # TODO(synk): a fully batched (batch, head) einsum needs a multi-batch-dim
        # dot_general that Mosaic does not reliably lower at this layout; the
        # unrolled loop is negligible work in this launch-bound regime.
        for n in range(N):
            bias_n = jnp.broadcast_to(bias[n:n + 1, :], (S, S))     # hoisted out of head loop
            rsl = slice(n * S, (n + 1) * S)
            for h in range(H):
                csl = slice(h * D, (h + 1) * D)
                qh = q[rsl, csl]                                    # (S, D)
                kh = k[rsl, csl]
                vh = v[rsl, csl]
                # contract both last dims -> no explicit transpose of kh
                e = jax.lax.dot_general(qh, kh, (((1,), (1,)), ((), ())),
                                        preferred_element_type=jnp.float32)
                e = e + bias_n
                e = e - jnp.max(e, axis=-1, keepdims=True)          # stable softmax
                p = jnp.exp(e)
                p = p / jnp.sum(p, axis=-1, keepdims=True)          # exact division (review)
                scr_ref[rsl, csl] = jnp.dot(p, vh,
                                            preferred_element_type=jnp.float32)
        att = jnp.dot(scr_ref[...], wo_ref[li],
                      preferred_element_type=jnp.float32) + bo       # (N*S, E)

        # ---- norm1(attention + residual) ----
        y = att + x
        mu = jnp.mean(y, axis=-1, keepdims=True)
        var = jnp.mean((y - mu) * (y - mu), axis=-1, keepdims=True)
        x1 = (y - mu) * jax.lax.rsqrt(var + LN_EPS) * ln1g + ln1b

        # ---- feed forward: Linear -> ReLU -> Linear ----
        hdn = jnp.dot(x1, w1_ref[li], preferred_element_type=jnp.float32) + b1
        hdn = jnp.maximum(hdn, 0.0)
        f = jnp.dot(hdn, w2_ref[li], preferred_element_type=jnp.float32) + b2

        # ---- norm2(forward + residual) ----
        y2 = f + x1
        mu2 = jnp.mean(y2, axis=-1, keepdims=True)
        var2 = jnp.mean((y2 - mu2) * (y2 - mu2), axis=-1, keepdims=True)
        x = (y2 - mu2) * jax.lax.rsqrt(var2 + LN_EPS) * ln2g + ln2b

    out_ref[...] = x


# ------------------------------ wrapper ------------------------------
def encoder_forward(tokens, mask, params):
    N, S = tokens.shape
    E = EMBED_SIZE

    tok2d = tokens.reshape(N * S, 1).astype(jnp.int32)
    mask2d = mask.reshape(N, S).astype(jnp.float32)

    vmem = pl.BlockSpec(memory_space=pltpu.MemorySpace.VMEM)
    inputs = [tok2d, params["word_emb"], params["pos_emb"], mask2d,
              params["w_qkv"], params["w_o"], params["w_1"], params["w_2"],
              params["vecs"], params["b1"]]

    out2d = pl.pallas_call(
        encoder_kernel,
        out_shape=jax.ShapeDtypeStruct((N * S, E), jnp.float32),
        in_specs=[vmem] * len(inputs),        # whole-array VMEM blocks, no pipelining
        out_specs=vmem,
        scratch_shapes=[pltpu.VMEM((N * S, E), jnp.float32)],
    )(*inputs)
    return out2d.reshape(N, S, E)


# ------------------------------ parameter init (pre-packed slabs) ------------------------------
def init_params(key):
    E, Hdn = EMBED_SIZE, FORWARD_EXPANSION * EMBED_SIZE
    keys = jax.random.split(key, 2 + NUM_LAYERS)
    word_emb = 0.05 * jax.random.normal(keys[0], (SRC_VOCAB_SIZE, E), jnp.float32)
    pos_emb = 0.05 * jax.random.normal(keys[1], (MAX_LENGTH, E), jnp.float32)

    w_qkv, w_o, w_1, w_2, vecs, b1s = [], [], [], [], [], []
    for li in range(NUM_LAYERS):
        lk = jax.random.split(keys[2 + li], 8)
        wq = 0.1 * jax.random.normal(lk[0], (E, E), jnp.float32)
        wk = 0.1 * jax.random.normal(lk[1], (E, E), jnp.float32)
        wv = 0.1 * jax.random.normal(lk[2], (E, E), jnp.float32)
        wo = 0.1 * jax.random.normal(lk[3], (E, E), jnp.float32)
        bo = 0.01 * jax.random.normal(lk[4], (E,), jnp.float32)
        w1 = 0.1 * jax.random.normal(lk[5], (E, Hdn), jnp.float32)
        b1 = 0.01 * jax.random.normal(lk[6], (Hdn,), jnp.float32)
        w2 = 0.1 * jax.random.normal(lk[7], (Hdn, E), jnp.float32)
        bq = jnp.zeros((E,), jnp.float32)
        bk = jnp.zeros((E,), jnp.float32)
        bv = jnp.zeros((E,), jnp.float32)
        ln1g = jnp.ones((E,), jnp.float32)
        ln1b = jnp.zeros((E,), jnp.float32)
        b2 = jnp.zeros((E,), jnp.float32)
        ln2g = jnp.ones((E,), jnp.float32)
        ln2b = jnp.zeros((E,), jnp.float32)

        w_qkv.append(jnp.concatenate([wq, wk, wv], axis=1))          # (E, 3E)
        w_o.append(wo)
        w_1.append(w1)
        w_2.append(w2)
        vecs.append(jnp.stack([bq, bk, bv, bo, ln1g, ln1b, b2, ln2g, ln2b], axis=0))
        b1s.append(b1.reshape(1, Hdn))

    # packing happens ONCE here (outside jit), so the dispatch path stays lean
    return {
        "word_emb": word_emb,
        "pos_emb": pos_emb,
        "w_qkv": jnp.stack(w_qkv),            # (L, E, 3E)
        "w_o": jnp.stack(w_o),                # (L, E, E)
        "w_1": jnp.stack(w_1),                # (L, E, 4E)
        "w_2": jnp.stack(w_2),                # (L, 4E, E)
        "vecs": jnp.stack(vecs),              # (L, 9, E)
        "b1": jnp.stack(b1s),                 # (L, 1, 4E)
    }


# ------------------------------ pure-JAX reference ------------------------------
def _layernorm(x, g, b):
    mu = jnp.mean(x, axis=-1, keepdims=True)
    var = jnp.mean((x - mu) ** 2, axis=-1, keepdims=True)
    return (x - mu) * jax.lax.rsqrt(var + LN_EPS) * g + b


def ref_encoder(tokens, mask, params):
    N, S = tokens.shape
    E, H = EMBED_SIZE, HEADS
    D = E // H
    positions = jnp.broadcast_to(jnp.arange(S, dtype=jnp.int32), (N, S))
    x = params["word_emb"][tokens] + params["pos_emb"][positions]
    for li in range(NUM_LAYERS):
        wqkv = params["w_qkv"][li]
        wq, wk, wv = wqkv[:, 0:E], wqkv[:, E:2 * E], wqkv[:, 2 * E:]
        vec = params["vecs"][li]
        bq, bk, bv, bo = vec[_BQ], vec[_BK], vec[_BV], vec[_BO]
        ln1g, ln1b = vec[_LN1G], vec[_LN1B]
        b2, ln2g, ln2b = vec[_B2], vec[_LN2G], vec[_LN2B]
        wo, w1, w2 = params["w_o"][li], params["w_1"][li], params["w_2"][li]
        b1 = params["b1"][li][0]

        q = (x @ wq + bq).reshape(N, S, H, D)
        k = (x @ wk + bk).reshape(N, S, H, D)
        v = (x @ wv + bv).reshape(N, S, H, D)
        energy = jnp.einsum("nqhd,nkhd->nhqk", q, k)
        m = mask[:, None, :, :]                       # (N,1,1,S)
        energy = jnp.where(m == 0, -1e20, energy)
        attn = jax.nn.softmax(energy / (E ** 0.5), axis=3)
        out = jnp.einsum("nhqk,nkhd->nqhd", attn, v).reshape(N, S, E)
        out = out @ wo + bo
        x1 = _layernorm(out + x, ln1g, ln1b)
        f = jnp.maximum(x1 @ w1 + b1, 0.0) @ w2 + b2
        x = _layernorm(f + x1, ln2g, ln2b)
    return x


# ------------------------------ main ------------------------------
if __name__ == "__main__":
    key = jax.random.PRNGKey(0)
    pkey, tkey = jax.random.split(key)
    params = init_params(pkey)

    tokens = jax.random.randint(tkey, (N_BATCH, SEQ_LEN), 0, SRC_VOCAB_SIZE, jnp.int32)
    # key mask: all valid except the last key position of batch element 1
    mask = jnp.ones((N_BATCH, 1, SEQ_LEN), jnp.float32)
    mask = mask.at[1, 0, -1].set(0.0)

    fwd = jax.jit(encoder_forward)
    out = jax.block_until_ready(fwd(tokens, mask, params))
    ref = jax.block_until_ready(ref_encoder(tokens, mask, params))

    assert out.shape == (N_BATCH, SEQ_LEN, EMBED_SIZE)
    assert jnp.allclose(out, ref, atol=1e-4, rtol=1e-4), "mismatch vs JAX reference"
    print("KERNEL_OK")
</pallas_src>

<mosaic_0001>
module attributes {stable_mosaic.version = 11 : i64} {
  func.func @encoder_kernel(%arg0: memref<16x1xi32, #tpu.memory_space<vmem>>, %arg1: memref<50x32xf32, #tpu.memory_space<vmem>>, %arg2: memref<16x32xf32, #tpu.memory_space<vmem>>, %arg3: memref<2x8xf32, #tpu.memory_space<vmem>>, %arg4: memref<2x32x96xf32, #tpu.memory_space<vmem>>, %arg5: memref<2x32x32xf32, #tpu.memory_space<vmem>>, %arg6: memref<2x32x128xf32, #tpu.memory_space<vmem>>, %arg7: memref<2x128x32xf32, #tpu.memory_space<vmem>>, %arg8: memref<2x9x32xf32, #tpu.memory_space<vmem>>, %arg9: memref<2x1x128xf32, #tpu.memory_space<vmem>>, %arg10: memref<16x32xf32, #tpu.memory_space<vmem>>, %arg11: memref<16x32xf32, #tpu.memory_space<vmem>>) attributes {dimension_semantics = [], scalar_prefetch = 0 : i64, scratch_operands = 1 : i64, tpu.core_type = #tpu.core_type<tc>} {
    %c0 = arith.constant 0 : index
    %c0_0 = arith.constant 0 : index
    %0 = vector.load %arg0[%c0, %c0_0] : memref<16x1xi32, #tpu.memory_space<vmem>>, vector<16x1xi32>
    %1 = tpu.iota {dimensions = array<i32: 1>} : vector<16x50xi32>
    %2 = vector.broadcast %0 : vector<16x1xi32> to vector<16x50xi32>
    %3 = arith.cmpi eq, %1, %2 : vector<16x50xi32>
    %4 = arith.extui %3 : vector<16x50xi1> to vector<16x50xi32>
    %5 = arith.sitofp %4 : vector<16x50xi32> to vector<16x50xf32>
    %c0_1 = arith.constant 0 : index
    %c0_2 = arith.constant 0 : index
    %6 = vector.load %arg1[%c0_1, %c0_2] : memref<50x32xf32, #tpu.memory_space<vmem>>, vector<50x32xf32>
    %cst = arith.constant dense<0.000000e+00> : vector<16x32xf32>
    %7 = tpu.matmul %5, %6, %cst {dimension_numbers = #tpu.dot_dimension_numbers<[1], [0], [0], [1], [0, 0, 1, 1], [], []>} : vector<16x50xf32>, vector<50x32xf32>, vector<16x32xf32> -> vector<16x32xf32>
    %c0_3 = arith.constant 0 : index
    %c0_4 = arith.constant 0 : index
    %8 = vector.load %arg2[%c0_3, %c0_4] : memref<16x32xf32, #tpu.memory_space<vmem>>, vector<8x32xf32>
    %9 = vector.extract_strided_slice %7 {offsets = [0, 0], sizes = [8, 32], strides = [1, 1]} : vector<16x32xf32> to vector<8x32xf32>
    %10 = arith.addf %9, %8 : vector<8x32xf32>
    %c0_5 = arith.constant 0 : index
    %c0_6 = arith.constant 0 : index
    %11 = vector.load %arg11[%c0_5, %c0_6] : memref<16x32xf32, #tpu.memory_space<vmem>>, vector<8x32xf32>
    tpu.vector_store %arg11[%c0_5, %c0_6], %10 {strides = array<i32>} : memref<16x32xf32, #tpu.memory_space<vmem>>, vector<8x32xf32>,
    %12 = vector.extract_strided_slice %7 {offsets = [8, 0], sizes = [8, 32], strides = [1, 1]} : vector<16x32xf32> to vector<8x32xf32>
    %13 = arith.addf %12, %8 : vector<8x32xf32>
    %c8 = arith.constant 8 : index
    %c0_7 = arith.constant 0 : index
    %14 = vector.load %arg11[%c8, %c0_7] : memref<16x32xf32, #tpu.memory_space<vmem>>, vector<8x32xf32>
    tpu.vector_store %arg11[%c8, %c0_7], %13 {strides = array<i32>} : memref<16x32xf32, #tpu.memory_space<vmem>>, vector<8x32xf32>,
    %c0_8 = arith.constant 0 : index
    %c0_9 = arith.constant 0 : index
    %15 = vector.load %arg11[%c0_8, %c0_9] : memref<16x32xf32, #tpu.memory_space<vmem>>, vector<16x32xf32>
    %c0_10 = arith.constant 0 : index
    %c0_11 = arith.constant 0 : index
    %16 = vector.load %arg3[%c0_10, %c0_11] : memref<2x8xf32, #tpu.memory_space<vmem>>, vector<2x8xf32>
    %cst_12 = arith.constant 0.000000e+00 : f32
    %17 = vector.broadcast %cst_12 : f32 to vector<2x8xf32>
    %18 = arith.cmpf oeq, %16, %17 : vector<2x8xf32>
    %cst_13 = arith.constant -1.000000e+20 : f32
    %cst_14 = arith.constant 0.000000e+00 : f32
    %19 = vector.broadcast %cst_13 : f32 to vector<2x8xf32>
    %20 = vector.broadcast %cst_14 : f32 to vector<2x8xf32>
    %21 = arith.select %18, %19, %20 : vector<2x8xi1>, vector<2x8xf32>
    %c0_15 = arith.constant 0 : index
    %c0_16 = arith.constant 0 : index
    %c0_17 = arith.constant 0 : index
    %22 = vector.load %arg8[%c0_15, %c0_16, %c0_17] : memref<2x9x32xf32, #tpu.memory_space<vmem>>, vector<1x9x32xf32>
    %23 = vector.shape_cast %22 : vector<1x9x32xf32> to vector<9x32xf32>
    %24 = vector.extract_strided_slice %23 {offsets = [0, 0], sizes = [1, 32], strides = [1, 1]} : vector<9x32xf32> to vector<1x32xf32>
    %25 = vector.extract_strided_slice %23 {offsets = [1, 0], sizes = [1, 32], strides = [1, 1]} : vector<9x32xf32> to vector<1x32xf32>
    %26 = vector.extract_strided_slice %23 {offsets = [2, 0], sizes = [1, 32], strides = [1, 1]} : vector<9x32xf32> to vector<1x32xf32>
    %27 = vector.extract_strided_slice %23 {offsets = [3, 0], sizes = [1, 32], strides = [1, 1]} : vector<9x32xf32> to vector<1x32xf32>
    %28 = vector.extract_strided_slice %23 {offsets = [4, 0], sizes = [1, 32], strides = [1, 1]} : vector<9x32xf32> to vector<1x32xf32>
    %29 = vector.extract_strided_slice %23 {offsets = [5, 0], sizes = [1, 32], strides = [1, 1]} : vector<9x32xf32> to vector<1x32xf32>
    %30 = vector.extract_strided_slice %23 {offsets = [6, 0], sizes = [1, 32], strides = [1, 1]} : vector<9x32xf32> to vector<1x32xf32>
    %31 = vector.extract_strided_slice %23 {offsets = [7, 0], sizes = [1, 32], strides = [1, 1]} : vector<9x32xf32> to vector<1x32xf32>
    %32 = vector.extract_strided_slice %23 {offsets = [8, 0], sizes = [1, 32], strides = [1, 1]} : vector<9x32xf32> to vector<1x32xf32>
    %c0_18 = arith.constant 0 : index
    %c0_19 = arith.constant 0 : index
    %c0_20 = arith.constant 0 : index
    %33 = vector.load %arg9[%c0_18, %c0_19, %c0_20] : memref<2x1x128xf32, #tpu.memory_space<vmem>>, vector<1x1x128xf32>
    %34 = vector.shape_cast %33 : vector<1x1x128xf32> to vector<1x128xf32>
    %c0_21 = arith.constant 0 : index
    %c0_22 = arith.constant 0 : index
    %c0_23 = arith.constant 0 : index
    %35 = vector.load %arg4[%c0_21, %c0_22, %c0_23] : memref<2x32x96xf32, #tpu.memory_space<vmem>>, vector<1x32x96xf32>
    %36 = vector.shape_cast %35 : vector<1x32x96xf32> to vector<32x96xf32>
    %cst_24 = arith.constant dense<0.000000e+00> : vector<16x96xf32>
    %37 = tpu.matmul %15, %36, %cst_24 {dimension_numbers = #tpu.dot_dimension_numbers<[1], [0], [0], [1], [0, 0, 1, 1], [], []>} : vector<16x32xf32>, vector<32x96xf32>, vector<16x96xf32> -> vector<16x96xf32>
    %38 = vector.extract_strided_slice %37 {offsets = [0, 0], sizes = [16, 32], strides = [1, 1]} : vector<16x96xf32> to vector<16x32xf32>
    %39 = vector.broadcast %24 : vector<1x32xf32> to vector<16x32xf32>
    %40 = arith.addf %38, %39 : vector<16x32xf32>
    %cst_25 = arith.constant 0.176776692 : f32
    %41 = vector.broadcast %cst_25 : f32 to vector<16x32xf32>
    %42 = arith.mulf %40, %41 : vector<16x32xf32>
    %43 = vector.extract_strided_slice %37 {offsets = [0, 32], sizes = [16, 32], strides = [1, 1]} : vector<16x96xf32> to vector<16x32xf32>
    %44 = vector.broadcast %25 : vector<1x32xf32> to vector<16x32xf32>
    %45 = arith.addf %43, %44 : vector<16x32xf32>
    %46 = vector.extract_strided_slice %37 {offsets = [0, 64], sizes = [16, 32], strides = [1, 1]} : vector<16x96xf32> to vector<16x32xf32>
    %47 = vector.broadcast %26 : vector<1x32xf32> to vector<16x32xf32>
    %48 = arith.addf %46, %47 : vector<16x32xf32>
    %49 = vector.extract_strided_slice %21 {offsets = [0, 0], sizes = [1, 8], strides = [1, 1]} : vector<2x8xf32> to vector<1x8xf32>
    %50 = vector.shape_cast %49 : vector<1x8xf32> to vector<1x8xf32>
    %51 = vector.broadcast %50 : vector<1x8xf32> to vector<8x8xf32>
    %52 = vector.extract_strided_slice %42 {offsets = [0, 0], sizes = [8, 8], strides = [1, 1]} : vector<16x32xf32> to vector<8x8xf32>
    %53 = vector.extract_strided_slice %45 {offsets = [0, 0], sizes = [8, 8], strides = [1, 1]} : vector<16x32xf32> to vector<8x8xf32>
    %54 = vector.extract_strided_slice %48 {offsets = [0, 0], sizes = [8, 8], strides = [1, 1]} : vector<16x32xf32> to vector<8x8xf32>
    %cst_26 = arith.constant dense<0.000000e+00> : vector<8x8xf32>
    %55 = tpu.matmul %52, %53, %cst_26 {dimension_numbers = #tpu.dot_dimension_numbers<[1], [1], [0], [0], [0, 0, 1, 0], [], []>} : vector<8x8xf32>, vector<8x8xf32>, vector<8x8xf32> -> vector<8x8xf32>
    %56 = arith.addf %55, %51 : vector<8x8xf32>
    %cst_27 = arith.constant dense<0xFF800000> : vector<8xf32>
    %57 = vector.multi_reduction <maximumf>, %56, %cst_27 [1] : vector<8x8xf32> to vector<8xf32>
    %58 = vector.shape_cast %57 : vector<8xf32> to vector<8x1xf32>
    %59 = vector.broadcast %58 : vector<8x1xf32> to vector<8x8xf32>
    %60 = arith.subf %56, %59 : vector<8x8xf32>
    %61 = math.exp %60 : vector<8x8xf32>
    %cst_28 = arith.constant dense<0.000000e+00> : vector<8xf32>
    %62 = vector.multi_reduction <add>, %61, %cst_28 [1] : vector<8x8xf32> to vector<8xf32>
    %63 = vector.shape_cast %62 : vector<8xf32> to vector<8x1xf32>
    %64 = vector.broadcast %63 : vector<8x1xf32> to vector<8x8xf32>
    %65 = arith.divf %61, %64 : vector<8x8xf32>
    %cst_29 = arith.constant dense<0.000000e+00> : vector<8x8xf32>
    %66 = tpu.matmul %65, %54, %cst_29 {dimension_numbers = #tpu.dot_dimension_numbers<[1], [0], [0], [1], [0, 0, 1, 1], [], []>} : vector<8x8xf32>, vector<8x8xf32>, vector<8x8xf32> -> vector<8x8xf32>
    %c0_30 = arith.constant 0 : index
    %c0_31 = arith.constant 0 : index
    %67 = vector.load %arg11[%c0_30, %c0_31] : memref<16x32xf32, #tpu.memory_space<vmem>>, vector<8x8xf32>
    tpu.vector_store %arg11[%c0_30, %c0_31], %66 {strides = array<i32>} : memref<16x32xf32, #tpu.memory_space<vmem>>, vector<8x8xf32>,
    %68 = vector.extract_strided_slice %42 {offsets = [0, 8], sizes = [8, 8], strides = [1, 1]} : vector<16x32xf32> to vector<8x8xf32>
    %69 = vector.extract_strided_slice %45 {offsets = [0, 8], sizes = [8, 8], strides = [1, 1]} : vector<16x32xf32> to vector<8x8xf32>
    %70 = vector.extract_strided_slice %48 {offsets = [0, 8], sizes = [8, 8], strides = [1, 1]} : vector<16x32xf32> to vector<8x8xf32>
    %cst_32 = arith.constant dense<0.000000e+00> : vector<8x8xf32>
    %71 = tpu.matmul %68, %69, %cst_32 {dimension_numbers = #tpu.dot_dimension_numbers<[1], [1], [0], [0], [0, 0, 1, 0], [], []>} : vector<8x8xf32>, vector<8x8xf32>, vector<8x8xf32> -> vector<8x8xf32>
    %72 = arith.addf %71, %51 : vector<8x8xf32>
    %cst_33 = arith.constant dense<0xFF800000> : vector<8xf32>
    %73 = vector.multi_reduction <maximumf>, %72, %cst_33 [1] : vector<8x8xf32> to vector<8xf32>
    %74 = vector.shape_cast %73 : vector<8xf32> to vector<8x1xf32>
    %75 = vector.broadcast %74 : vector<8x1xf32> to vector<8x8xf32>
    %76 = arith.subf %72, %75 : vector<8x8xf32>
    %77 = math.exp %76 : vector<8x8xf32>
    %cst_34 = arith.constant dense<0.000000e+00> : vector<8xf32>
    %78 = vector.multi_reduction <add>, %77, %cst_34 [1] : vector<8x8xf32> to vector<8xf32>
    %79 = vector.shape_cast %78 : vector<8xf32> to vector<8x1xf32>
    %80 = vector.broadcast %79 : vector<8x1xf32> to vector<8x8xf32>
    %81 = arith.divf %77, %80 : vector<8x8xf32>
    %cst_35 = arith.constant dense<0.000000e+00> : vector<8x8xf32>
    %82 = tpu.matmul %81, %70, %cst_35 {dimension_numbers = #tpu.dot_dimension_numbers<[1], [0], [0], [1], [0, 0, 1, 1], [], []>} : vector<8x8xf32>, vector<8x8xf32>, vector<8x8xf32> -> vector<8x8xf32>
    %c0_36 = arith.constant 0 : index
    %c8_37 = arith.constant 8 : index
    %83 = vector.load %arg11[%c0_36, %c8_37] : memref<16x32xf32, #tpu.memory_space<vmem>>, vector<8x8xf32>
    tpu.vector_store %arg11[%c0_36, %c8_37], %82 {strides = array<i32>} : memref<16x32xf32, #tpu.memory_space<vmem>>, vector<8x8xf32>,
    %84 = vector.extract_strided_slice %42 {offsets = [0, 16], sizes = [8, 8], strides = [1, 1]} : vector<16x32xf32> to vector<8x8xf32>
    %85 = vector.extract_strided_slice %45 {offsets = [0, 16], sizes = [8, 8], strides = [1, 1]} : vector<16x32xf32> to vector<8x8xf32>
    %86 = vector.extract_strided_slice %48 {offsets = [0, 16], sizes = [8, 8], strides = [1, 1]} : vector<16x32xf32> to vector<8x8xf32>
    %cst_38 = arith.constant dense<0.000000e+00> : vector<8x8xf32>
    %87 = tpu.matmul %84, %85, %cst_38 {dimension_numbers = #tpu.dot_dimension_numbers<[1], [1], [0], [0], [0, 0, 1, 0], [], []>} : vector<8x8xf32>, vector<8x8xf32>, vector<8x8xf32> -> vector<8x8xf32>
    %88 = arith.addf %87, %51 : vector<8x8xf32>
    %cst_39 = arith.constant dense<0xFF800000> : vector<8xf32>
    %89 = vector.multi_reduction <maximumf>, %88, %cst_39 [1] : vector<8x8xf32> to vector<8xf32>
    %90 = vector.shape_cast %89 : vector<8xf32> to vector<8x1xf32>
    %91 = vector.broadcast %90 : vector<8x1xf32> to vector<8x8xf32>
    %92 = arith.subf %88, %91 : vector<8x8xf32>
    %93 = math.exp %92 : vector<8x8xf32>
    %cst_40 = arith.constant dense<0.000000e+00> : vector<8xf32>
    %94 = vector.multi_reduction <add>, %93, %cst_40 [1] : vector<8x8xf32> to vector<8xf32>
    %95 = vector.shape_cast %94 : vector<8xf32> to vector<8x1xf32>
    %96 = vector.broadcast %95 : vector<8x1xf32> to vector<8x8xf32>
    %97 = arith.divf %93, %96 : vector<8x8xf32>
    %cst_41 = arith.constant dense<0.000000e+00> : vector<8x8xf32>
    %98 = tpu.matmul %97, %86, %cst_41 {dimension_numbers = #tpu.dot_dimension_numbers<[1], [0], [0], [1], [0, 0, 1, 1], [], []>} : vector<8x8xf32>, vector<8x8xf32>, vector<8x8xf32> -> vector<8x8xf32>
    %c0_42 = arith.constant 0 : index
    %c16 = arith.constant 16 : index
    %99 = vector.load %arg11[%c0_42, %c16] : memref<16x32xf32, #tpu.memory_space<vmem>>, vector<8x8xf32>
    tpu.vector_store %arg11[%c0_42, %c16], %98 {strides = array<i32>} : memref<16x32xf32, #tpu.memory_space<vmem>>, vector<8x8xf32>,
    %100 = vector.extract_strided_slice %42 {offsets = [0, 24], sizes = [8, 8], strides = [1, 1]} : vector<16x32xf32> to vector<8x8xf32>
    %101 = vector.extract_strided_slice %45 {offsets = [0, 24], sizes = [8, 8], strides = [1, 1]} : vector<16x32xf32> to vector<8x8xf32>
    %102 = vector.extract_strided_slice %48 {offsets = [0, 24], sizes = [8, 8], strides = [1, 1]} : vector<16x32xf32> to vector<8x8xf32>
    %cst_43 = arith.constant dense<0.000000e+00> : vector<8x8xf32>
    %103 = tpu.matmul %100, %101, %cst_43 {dimension_numbers = #tpu.dot_dimension_numbers<[1], [1], [0], [0], [0, 0, 1, 0], [], []>} : vector<8x8xf32>, vector<8x8xf32>, vector<8x8xf32> -> vector<8x8xf32>
    %104 = arith.addf %103, %51 : vector<8x8xf32>
    %cst_44 = arith.constant dense<0xFF800000> : vector<8xf32>
    %105 = vector.multi_reduction <maximumf>, %104, %cst_44 [1] : vector<8x8xf32> to vector<8xf32>
    %106 = vector.shape_cast %105 : vector<8xf32> to vector<8x1xf32>
    %107 = vector.broadcast %106 : vector<8x1xf32> to vector<8x8xf32>
    %108 = arith.subf %104, %107 : vector<8x8xf32>
    %109 = math.exp %108 : vector<8x8xf32>
    %cst_45 = arith.constant dense<0.000000e+00> : vector<8xf32>
    %110 = vector.multi_reduction <add>, %109, %cst_45 [1] : vector<8x8xf32> to vector<8xf32>
    %111 = vector.shape_cast %110 : vector<8xf32> to vector<8x1xf32>
    %112 = vector.broadcast %111 : vector<8x1xf32> to vector<8x8xf32>
    %113 = arith.divf %109, %112 : vector<8x8xf32>
    %cst_46 = arith.constant dense<0.000000e+00> : vector<8x8xf32>
    %114 = tpu.matmul %113, %102, %cst_46 {dimension_numbers = #tpu.dot_dimension_numbers<[1], [0], [0], [1], [0, 0, 1, 1], [], []>} : vector<8x8xf32>, vector<8x8xf32>, vector<8x8xf32> -> vector<8x8xf32>
    %c0_47 = arith.constant 0 : index
    %c24 = arith.constant 24 : index
    %115 = vector.load %arg11[%c0_47, %c24] : memref<16x32xf32, #tpu.memory_space<vmem>>, vector<8x8xf32>
    tpu.vector_store %arg11[%c0_47, %c24], %114 {strides = array<i32>} : memref<16x32xf32, #tpu.memory_space<vmem>>, vector<8x8xf32>,
    %116 = vector.extract_strided_slice %21 {offsets = [1, 0], sizes = [1, 8], strides = [1, 1]} : vector<2x8xf32> to vector<1x8xf32>
    %117 = vector.shape_cast %116 : vector<1x8xf32> to vector<1x8xf32>
    %118 = vector.broadcast %117 : vector<1x8xf32> to vector<8x8xf32>
    %119 = vector.extract_strided_slice %42 {offsets = [8, 0], sizes = [8, 8], strides = [1, 1]} : vector<16x32xf32> to vector<8x8xf32>
    %120 = vector.extract_strided_slice %45 {offsets = [8, 0], sizes = [8, 8], strides = [1, 1]} : vector<16x32xf32> to vector<8x8xf32>
    %121 = vector.extract_strided_slice %48 {offsets = [8, 0], sizes = [8, 8], strides = [1, 1]} : vector<16x32xf32> to vector<8x8xf32>
    %cst_48 = arith.constant dense<0.000000e+00> : vector<8x8xf32>
    %122 = tpu.matmul %119, %120, %cst_48 {dimension_numbers = #tpu.dot_dimension_numbers<[1], [1], [0], [0], [0, 0, 1, 0], [], []>} : vector<8x8xf32>, vector<8x8xf32>, vector<8x8xf32> -> vector<8x8xf32>
    %123 = arith.addf %122, %118 : vector<8x8xf32>
    %cst_49 = arith.constant dense<0xFF800000> : vector<8xf32>
    %124 = vector.multi_reduction <maximumf>, %123, %cst_49 [1] : vector<8x8xf32> to vector<8xf32>
    %125 = vector.shape_cast %124 : vector<8xf32> to vector<8x1xf32>
    %126 = vector.broadcast %125 : vector<8x1xf32> to vector<8x8xf32>
    %127 = arith.subf %123, %126 : vector<8x8xf32>
    %128 = math.exp %127 : vector<8x8xf32>
    %cst_50 = arith.constant dense<0.000000e+00> : vector<8xf32>
    %129 = vector.multi_reduction <add>, %128, %cst_50 [1] : vector<8x8xf32> to vector<8xf32>
    %130 = vector.shape_cast %129 : vector<8xf32> to vector<8x1xf32>
    %131 = vector.broadcast %130 : vector<8x1xf32> to vector<8x8xf32>
    %132 = arith.divf %128, %131 : vector<8x8xf32>
    %cst_51 = arith.constant dense<0.000000e+00> : vector<8x8xf32>
    %133 = tpu.matmul %132, %121, %cst_51 {dimension_numbers = #tpu.dot_dimension_numbers<[1], [0], [0], [1], [0, 0, 1, 1], [], []>} : vector<8x8xf32>, vector<8x8xf32>, vector<8x8xf32> -> vector<8x8xf32>
    %c8_52 = arith.constant 8 : index
    %c0_53 = arith.constant 0 : index
    %134 = vector.load %arg11[%c8_52, %c0_53] : memref<16x32xf32, #tpu.memory_space<vmem>>, vector<8x8xf32>
    tpu.vector_store %arg11[%c8_52, %c0_53], %133 {strides = array<i32>} : memref<16x32xf32, #tpu.memory_space<vmem>>, vector<8x8xf32>,
    %135 = vector.extract_strided_slice %42 {offsets = [8, 8], sizes = [8, 8], strides = [1, 1]} : vector<16x32xf32> to vector<8x8xf32>
    %136 = vector.extract_strided_slice %45 {offsets = [8, 8], sizes = [8, 8], strides = [1, 1]} : vector<16x32xf32> to vector<8x8xf32>
    %137 = vector.extract_strided_slice %48 {offsets = [8, 8], sizes = [8, 8], strides = [1, 1]} : vector<16x32xf32> to vector<8x8xf32>
    %cst_54 = arith.constant dense<0.000000e+00> : vector<8x8xf32>
    %138 = tpu.matmul %135, %136, %cst_54 {dimension_numbers = #tpu.dot_dimension_numbers<[1], [1], [0], [0], [0, 0, 1, 0], [], []>} : vector<8x8xf32>, vector<8x8xf32>, vector<8x8xf32> -> vector<8x8xf32>
    %139 = arith.addf %138, %118 : vector<8x8xf32>
    %cst_55 = arith.constant dense<0xFF800000> : vector<8xf32>
    %140 = vector.multi_reduction <maximumf>, %139, %cst_55 [1] : vector<8x8xf32> to vector<8xf32>
    %141 = vector.shape_cast %140 : vector<8xf32> to vector<8x1xf32>
    %142 = vector.broadcast %141 : vector<8x1xf32> to vector<8x8xf32>
    %143 = arith.subf %139, %142 : vector<8x8xf32>
    %144 = math.exp %143 : vector<8x8xf32>
    %cst_56 = arith.constant dense<0.000000e+00> : vector<8xf32>
    %145 = vector.multi_reduction <add>, %144, %cst_56 [1] : vector<8x8xf32> to vector<8xf32>
    %146 = vector.shape_cast %145 : vector<8xf32> to vector<8x1xf32>
    %147 = vector.broadcast %146 : vector<8x1xf32> to vector<8x8xf32>
    %148 = arith.divf %144, %147 : vector<8x8xf32>
    %cst_57 = arith.constant dense<0.000000e+00> : vector<8x8xf32>
    %149 = tpu.matmul %148, %137, %cst_57 {dimension_numbers = #tpu.dot_dimension_numbers<[1], [0], [0], [1], [0, 0, 1, 1], [], []>} : vector<8x8xf32>, vector<8x8xf32>, vector<8x8xf32> -> vector<8x8xf32>
    %c8_58 = arith.constant 8 : index
    %c8_59 = arith.constant 8 : index
    %150 = vector.load %arg11[%c8_58, %c8_59] : memref<16x32xf32, #tpu.memory_space<vmem>>, vector<8x8xf32>
    tpu.vector_store %arg11[%c8_58, %c8_59], %149 {strides = array<i32>} : memref<16x32xf32, #tpu.memory_space<vmem>>, vector<8x8xf32>,
    %151 = vector.extract_strided_slice %42 {offsets = [8, 16], sizes = [8, 8], strides = [1, 1]} : vector<16x32xf32> to vector<8x8xf32>
    %152 = vector.extract_strided_slice %45 {offsets = [8, 16], sizes = [8, 8], strides = [1, 1]} : vector<16x32xf32> to vector<8x8xf32>
    %153 = vector.extract_strided_slice %48 {offsets = [8, 16], sizes = [8, 8], strides = [1, 1]} : vector<16x32xf32> to vector<8x8xf32>
    %cst_60 = arith.constant dense<0.000000e+00> : vector<8x8xf32>
    %154 = tpu.matmul %151, %152, %cst_60 {dimension_numbers = #tpu.dot_dimension_numbers<[1], [1], [0], [0], [0, 0, 1, 0], [], []>} : vector<8x8xf32>, vector<8x8xf32>, vector<8x8xf32> -> vector<8x8xf32>
    %155 = arith.addf %154, %118 : vector<8x8xf32>
    %cst_61 = arith.constant dense<0xFF800000> : vector<8xf32>
    %156 = vector.multi_reduction <maximumf>, %155, %cst_61 [1] : vector<8x8xf32> to vector<8xf32>
    %157 = vector.shape_cast %156 : vector<8xf32> to vector<8x1xf32>
    %158 = vector.broadcast %157 : vector<8x1xf32> to vector<8x8xf32>
    %159 = arith.subf %155, %158 : vector<8x8xf32>
    %160 = math.exp %159 : vector<8x8xf32>
    %cst_62 = arith.constant dense<0.000000e+00> : vector<8xf32>
    %161 = vector.multi_reduction <add>, %160, %cst_62 [1] : vector<8x8xf32> to vector<8xf32>
    %162 = vector.shape_cast %161 : vector<8xf32> to vector<8x1xf32>
    %163 = vector.broadcast %162 : vector<8x1xf32> to vector<8x8xf32>
    %164 = arith.divf %160, %163 : vector<8x8xf32>
    %cst_63 = arith.constant dense<0.000000e+00> : vector<8x8xf32>
    %165 = tpu.matmul %164, %153, %cst_63 {dimension_numbers = #tpu.dot_dimension_numbers<[1], [0], [0], [1], [0, 0, 1, 1], [], []>} : vector<8x8xf32>, vector<8x8xf32>, vector<8x8xf32> -> vector<8x8xf32>
    %c8_64 = arith.constant 8 : index
    %c16_65 = arith.constant 16 : index
    %166 = vector.load %arg11[%c8_64, %c16_65] : memref<16x32xf32, #tpu.memory_space<vmem>>, vector<8x8xf32>
    tpu.vector_store %arg11[%c8_64, %c16_65], %165 {strides = array<i32>} : memref<16x32xf32, #tpu.memory_space<vmem>>, vector<8x8xf32>,
    %167 = vector.extract_strided_slice %42 {offsets = [8, 24], sizes = [8, 8], strides = [1, 1]} : vector<16x32xf32> to vector<8x8xf32>
    %168 = vector.extract_strided_slice %45 {offsets = [8, 24], sizes = [8, 8], strides = [1, 1]} : vector<16x32xf32> to vector<8x8xf32>
    %169 = vector.extract_strided_slice %48 {offsets = [8, 24], sizes = [8, 8], strides = [1, 1]} : vector<16x32xf32> to vector<8x8xf32>
    %cst_66 = arith.constant dense<0.000000e+00> : vector<8x8xf32>
    %170 = tpu.matmul %167, %168, %cst_66 {dimension_numbers = #tpu.dot_dimension_numbers<[1], [1], [0], [0], [0, 0, 1, 0], [], []>} : vector<8x8xf32>, vector<8x8xf32>, vector<8x8xf32> -> vector<8x8xf32>
    %171 = arith.addf %170, %118 : vector<8x8xf32>
    %cst_67 = arith.constant dense<0xFF800000> : vector<8xf32>
    %172 = vector.multi_reduction <maximumf>, %171, %cst_67 [1] : vector<8x8xf32> to vector<8xf32>
    %173 = vector.shape_cast %172 : vector<8xf32> to vector<8x1xf32>
    %174 = vector.broadcast %173 : vector<8x1xf32> to vector<8x8xf32>
    %175 = arith.subf %171, %174 : vector<8x8xf32>
    %176 = math.exp %175 : vector<8x8xf32>
    %cst_68 = arith.constant dense<0.000000e+00> : vector<8xf32>
    %177 = vector.multi_reduction <add>, %176, %cst_68 [1] : vector<8x8xf32> to vector<8xf32>
    %178 = vector.shape_cast %177 : vector<8xf32> to vector<8x1xf32>
    %179 = vector.broadcast %178 : vector<8x1xf32> to vector<8x8xf32>
    %180 = arith.divf %176, %179 : vector<8x8xf32>
    %cst_69 = arith.constant dense<0.000000e+00> : vector<8x8xf32>
    %181 = tpu.matmul %180, %169, %cst_69 {dimension_numbers = #tpu.dot_dimension_numbers<[1], [0], [0], [1], [0, 0, 1, 1], [], []>} : vector<8x8xf32>, vector<8x8xf32>, vector<8x8xf32> -> vector<8x8xf32>
    %c8_70 = arith.constant 8 : index
    %c24_71 = arith.constant 24 : index
    %182 = vector.load %arg11[%c8_70, %c24_71] : memref<16x32xf32, #tpu.memory_space<vmem>>, vector<8x8xf32>
    tpu.vector_store %arg11[%c8_70, %c24_71], %181 {strides = array<i32>} : memref<16x32xf32, #tpu.memory_space<vmem>>, vector<8x8xf32>,
    %c0_72 = arith.constant 0 : index
    %c0_73 = arith.constant 0 : index
    %183 = vector.load %arg11[%c0_72, %c0_73] : memref<16x32xf32, #tpu.memory_space<vmem>>, vector<16x32xf32>
    %c0_74 = arith.constant 0 : index
    %c0_75 = arith.constant 0 : index
    %c0_76 = arith.constant 0 : index
    %184 = vector.load %arg5[%c0_74, %c0_75, %c0_76] : memref<2x32x32xf32, #tpu.memory_space<vmem>>, vector<1x32x32xf32>
    %185 = vector.shape_cast %184 : vector<1x32x32xf32> to vector<32x32xf32>
    %cst_77 = arith.constant dense<0.000000e+00> : vector<16x32xf32>
    %186 = tpu.matmul %183, %185, %cst_77 {dimension_numbers = #tpu.dot_dimension_numbers<[1], [0], [0], [1], [0, 0, 1, 1], [], []>} : vector<16x32xf32>, vector<32x32xf32>, vector<16x32xf32> -> vector<16x32xf32>
    %187 = vector.broadcast %27 : vector<1x32xf32> to vector<16x32xf32>
    %188 = arith.addf %186, %187 : vector<16x32xf32>
    %189 = arith.addf %188, %15 : vector<16x32xf32>
    %cst_78 = arith.constant dense<0.000000e+00> : vector<16xf32>
    %190 = vector.multi_reduction <add>, %189, %cst_78 [1] : vector<16x32xf32> to vector<16xf32>
    %191 = vector.shape_cast %190 : vector<16xf32> to vector<16x1xf32>
    %cst_79 = arith.constant 3.200000e+01 : f32
    %192 = vector.broadcast %cst_79 : f32 to vector<16x1xf32>
    %193 = arith.divf %191, %192 : vector<16x1xf32>
    %194 = vector.broadcast %193 : vector<16x1xf32> to vector<16x32xf32>
    %195 = arith.subf %189, %194 : vector<16x32xf32>
    %196 = vector.broadcast %193 : vector<16x1xf32> to vector<16x32xf32>
    %197 = arith.subf %189, %196 : vector<16x32xf32>
    %198 = arith.mulf %195, %197 : vector<16x32xf32>
    %cst_80 = arith.constant dense<0.000000e+00> : vector<16xf32>
    %199 = vector.multi_reduction <add>, %198, %cst_80 [1] : vector<16x32xf32> to vector<16xf32>
    %200 = vector.shape_cast %199 : vector<16xf32> to vector<16x1xf32>
    %cst_81 = arith.constant 3.200000e+01 : f32
    %201 = vector.broadcast %cst_81 : f32 to vector<16x1xf32>
    %202 = arith.divf %200, %201 : vector<16x1xf32>
    %203 = vector.broadcast %193 : vector<16x1xf32> to vector<16x32xf32>
    %204 = arith.subf %189, %203 : vector<16x32xf32>
    %cst_82 = arith.constant 9.99999974E-6 : f32
    %205 = vector.broadcast %cst_82 : f32 to vector<16x1xf32>
    %206 = arith.addf %202, %205 : vector<16x1xf32>
    %207 = math.rsqrt %206 : vector<16x1xf32>
    %208 = vector.broadcast %207 : vector<16x1xf32> to vector<16x32xf32>
    %209 = arith.mulf %204, %208 : vector<16x32xf32>
    %210 = vector.broadcast %28 : vector<1x32xf32> to vector<16x32xf32>
    %211 = arith.mulf %209, %210 : vector<16x32xf32>
    %212 = vector.broadcast %29 : vector<1x32xf32> to vector<16x32xf32>
    %213 = arith.addf %211, %212 : vector<16x32xf32>
    %c0_83 = arith.constant 0 : index
    %c0_84 = arith.constant 0 : index
    %c0_85 = arith.constant 0 : index
    %214 = vector.load %arg6[%c0_83, %c0_84, %c0_85] : memref<2x32x128xf32, #tpu.memory_space<vmem>>, vector<1x32x128xf32>
    %215 = vector.shape_cast %214 : vector<1x32x128xf32> to vector<32x128xf32>
    %cst_86 = arith.constant dense<0.000000e+00> : vector<16x128xf32>
    %216 = tpu.matmul %213, %215, %cst_86 {dimension_numbers = #tpu.dot_dimension_numbers<[1], [0], [0], [1], [0, 0, 1, 1], [], []>} : vector<16x32xf32>, vector<32x128xf32>, vector<16x128xf32> -> vector<16x128xf32>
    %217 = vector.broadcast %34 : vector<1x128xf32> to vector<16x128xf32>
    %218 = arith.addf %216, %217 : vector<16x128xf32>
    %cst_87 = arith.constant 0.000000e+00 : f32
    %219 = vector.broadcast %cst_87 : f32 to vector<16x128xf32>
    %220 = arith.maximumf %218, %219 : vector<16x128xf32>
    %c0_88 = arith.constant 0 : index
    %c0_89 = arith.constant 0 : index
    %c0_90 = arith.constant 0 : index
    %221 = vector.load %arg7[%c0_88, %c0_89, %c0_90] : memref<2x128x32xf32, #tpu.memory_space<vmem>>, vector<1x128x32xf32>
    %222 = vector.shape_cast %221 : vector<1x128x32xf32> to vector<128x32xf32>
    %cst_91 = arith.constant dense<0.000000e+00> : vector<16x32xf32>
    %223 = tpu.matmul %220, %222, %cst_91 {dimension_numbers = #tpu.dot_dimension_numbers<[1], [0], [0], [1], [0, 0, 1, 1], [], []>} : vector<16x128xf32>, vector<128x32xf32>, vector<16x32xf32> -> vector<16x32xf32>
    %224 = vector.broadcast %30 : vector<1x32xf32> to vector<16x32xf32>
    %225 = arith.addf %223, %224 : vector<16x32xf32>
    %226 = arith.addf %225, %213 : vector<16x32xf32>
    %cst_92 = arith.constant dense<0.000000e+00> : vector<16xf32>
    %227 = vector.multi_reduction <add>, %226, %cst_92 [1] : vector<16x32xf32> to vector<16xf32>
    %228 = vector.shape_cast %227 : vector<16xf32> to vector<16x1xf32>
    %cst_93 = arith.constant 3.200000e+01 : f32
    %229 = vector.broadcast %cst_93 : f32 to vector<16x1xf32>
    %230 = arith.divf %228, %229 : vector<16x1xf32>
    %231 = vector.broadcast %230 : vector<16x1xf32> to vector<16x32xf32>
    %232 = arith.subf %226, %231 : vector<16x32xf32>
    %233 = vector.broadcast %230 : vector<16x1xf32> to vector<16x32xf32>
    %234 = arith.subf %226, %233 : vector<16x32xf32>
    %235 = arith.mulf %232, %234 : vector<16x32xf32>
    %cst_94 = arith.constant dense<0.000000e+00> : vector<16xf32>
    %236 = vector.multi_reduction <add>, %235, %cst_94 [1] : vector<16x32xf32> to vector<16xf32>
    %237 = vector.shape_cast %236 : vector<16xf32> to vector<16x1xf32>
    %cst_95 = arith.constant 3.200000e+01 : f32
    %238 = vector.broadcast %cst_95 : f32 to vector<16x1xf32>
    %239 = arith.divf %237, %238 : vector<16x1xf32>
    %240 = vector.broadcast %230 : vector<16x1xf32> to vector<16x32xf32>
    %241 = arith.subf %226, %240 : vector<16x32xf32>
    %cst_96 = arith.constant 9.99999974E-6 : f32
    %242 = vector.broadcast %cst_96 : f32 to vector<16x1xf32>
    %243 = arith.addf %239, %242 : vector<16x1xf32>
    %244 = math.rsqrt %243 : vector<16x1xf32>
    %245 = vector.broadcast %244 : vector<16x1xf32> to vector<16x32xf32>
    %246 = arith.mulf %241, %245 : vector<16x32xf32>
    %247 = vector.broadcast %31 : vector<1x32xf32> to vector<16x32xf32>
    %248 = arith.mulf %246, %247 : vector<16x32xf32>
    %249 = vector.broadcast %32 : vector<1x32xf32> to vector<16x32xf32>
    %250 = arith.addf %248, %249 : vector<16x32xf32>
    %c1 = arith.constant 1 : index
    %c0_97 = arith.constant 0 : index
    %c0_98 = arith.constant 0 : index
    %251 = vector.load %arg8[%c1, %c0_97, %c0_98] : memref<2x9x32xf32, #tpu.memory_space<vmem>>, vector<1x9x32xf32>
    %252 = vector.shape_cast %251 : vector<1x9x32xf32> to vector<9x32xf32>
    %253 = vector.extract_strided_slice %252 {offsets = [0, 0], sizes = [1, 32], strides = [1, 1]} : vector<9x32xf32> to vector<1x32xf32>
    %254 = vector.extract_strided_slice %252 {offsets = [1, 0], sizes = [1, 32], strides = [1, 1]} : vector<9x32xf32> to vector<1x32xf32>
    %255 = vector.extract_strided_slice %252 {offsets = [2, 0], sizes = [1, 32], strides = [1, 1]} : vector<9x32xf32> to vector<1x32xf32>
    %256 = vector.extract_strided_slice %252 {offsets = [3, 0], sizes = [1, 32], strides = [1, 1]} : vector<9x32xf32> to vector<1x32xf32>
    %257 = vector.extract_strided_slice %252 {offsets = [4, 0], sizes = [1, 32], strides = [1, 1]} : vector<9x32xf32> to vector<1x32xf32>
    %258 = vector.extract_strided_slice %252 {offsets = [5, 0], sizes = [1, 32], strides = [1, 1]} : vector<9x32xf32> to vector<1x32xf32>
    %259 = vector.extract_strided_slice %252 {offsets = [6, 0], sizes = [1, 32], strides = [1, 1]} : vector<9x32xf32> to vector<1x32xf32>
    %260 = vector.extract_strided_slice %252 {offsets = [7, 0], sizes = [1, 32], strides = [1, 1]} : vector<9x32xf32> to vector<1x32xf32>
    %261 = vector.extract_strided_slice %252 {offsets = [8, 0], sizes = [1, 32], strides = [1, 1]} : vector<9x32xf32> to vector<1x32xf32>
    %c1_99 = arith.constant 1 : index
    %c0_100 = arith.constant 0 : index
    %c0_101 = arith.constant 0 : index
    %262 = vector.load %arg9[%c1_99, %c0_100, %c0_101] : memref<2x1x128xf32, #tpu.memory_space<vmem>>, vector<1x1x128xf32>
    %263 = vector.shape_cast %262 : vector<1x1x128xf32> to vector<1x128xf32>
    %c1_102 = arith.constant 1 : index
    %c0_103 = arith.constant 0 : index
    %c0_104 = arith.constant 0 : index
    %264 = vector.load %arg4[%c1_102, %c0_103, %c0_104] : memref<2x32x96xf32, #tpu.memory_space<vmem>>, vector<1x32x96xf32>
    %265 = vector.shape_cast %264 : vector<1x32x96xf32> to vector<32x96xf32>
    %cst_105 = arith.constant dense<0.000000e+00> : vector<16x96xf32>
    %266 = tpu.matmul %250, %265, %cst_105 {dimension_numbers = #tpu.dot_dimension_numbers<[1], [0], [0], [1], [0, 0, 1, 1], [], []>} : vector<16x32xf32>, vector<32x96xf32>, vector<16x96xf32> -> vector<16x96xf32>
    %267 = vector.extract_strided_slice %266 {offsets = [0, 0], sizes = [16, 32], strides = [1, 1]} : vector<16x96xf32> to vector<16x32xf32>
    %268 = vector.broadcast %253 : vector<1x32xf32> to vector<16x32xf32>
    %269 = arith.addf %267, %268 : vector<16x32xf32>
    %cst_106 = arith.constant 0.176776692 : f32
    %270 = vector.broadcast %cst_106 : f32 to vector<16x32xf32>
    %271 = arith.mulf %269, %270 : vector<16x32xf32>
    %272 = vector.extract_strided_slice %266 {offsets = [0, 32], sizes = [16, 32], strides = [1, 1]} : vector<16x96xf32> to vector<16x32xf32>
    %273 = vector.broadcast %254 : vector<1x32xf32> to vector<16x32xf32>
    %274 = arith.addf %272, %273 : vector<16x32xf32>
    %275 = vector.extract_strided_slice %266 {offsets = [0, 64], sizes = [16, 32], strides = [1, 1]} : vector<16x96xf32> to vector<16x32xf32>
    %276 = vector.broadcast %255 : vector<1x32xf32> to vector<16x32xf32>
    %277 = arith.addf %275, %276 : vector<16x32xf32>
    %278 = vector.extract_strided_slice %21 {offsets = [0, 0], sizes = [1, 8], strides = [1, 1]} : vector<2x8xf32> to vector<1x8xf32>
    %279 = vector.shape_cast %278 : vector<1x8xf32> to vector<1x8xf32>
    %280 = vector.broadcast %279 : vector<1x8xf32> to vector<8x8xf32>
    %281 = vector.extract_strided_slice %271 {offsets = [0, 0], sizes = [8, 8], strides = [1, 1]} : vector<16x32xf32> to vector<8x8xf32>
    %282 = vector.extract_strided_slice %274 {offsets = [0, 0], sizes = [8, 8], strides = [1, 1]} : vector<16x32xf32> to vector<8x8xf32>
    %283 = vector.extract_strided_slice %277 {offsets = [0, 0], sizes = [8, 8], strides = [1, 1]} : vector<16x32xf32> to vector<8x8xf32>
    %cst_107 = arith.constant dense<0.000000e+00> : vector<8x8xf32>
    %284 = tpu.matmul %281, %282, %cst_107 {dimension_numbers = #tpu.dot_dimension_numbers<[1], [1], [0], [0], [0, 0, 1, 0], [], []>} : vector<8x8xf32>, vector<8x8xf32>, vector<8x8xf32> -> vector<8x8xf32>
    %285 = arith.addf %284, %280 : vector<8x8xf32>
    %cst_108 = arith.constant dense<0xFF800000> : vector<8xf32>
    %286 = vector.multi_reduction <maximumf>, %285, %cst_108 [1] : vector<8x8xf32> to vector<8xf32>
    %287 = vector.shape_cast %286 : vector<8xf32> to vector<8x1xf32>
    %288 = vector.broadcast %287 : vector<8x1xf32> to vector<8x8xf32>
    %289 = arith.subf %285, %288 : vector<8x8xf32>
    %290 = math.exp %289 : vector<8x8xf32>
    %cst_109 = arith.constant dense<0.000000e+00> : vector<8xf32>
    %291 = vector.multi_reduction <add>, %290, %cst_109 [1] : vector<8x8xf32> to vector<8xf32>
    %292 = vector.shape_cast %291 : vector<8xf32> to vector<8x1xf32>
    %293 = vector.broadcast %292 : vector<8x1xf32> to vector<8x8xf32>
    %294 = arith.divf %290, %293 : vector<8x8xf32>
    %cst_110 = arith.constant dense<0.000000e+00> : vector<8x8xf32>
    %295 = tpu.matmul %294, %283, %cst_110 {dimension_numbers = #tpu.dot_dimension_numbers<[1], [0], [0], [1], [0, 0, 1, 1], [], []>} : vector<8x8xf32>, vector<8x8xf32>, vector<8x8xf32> -> vector<8x8xf32>
    %c0_111 = arith.constant 0 : index
    %c0_112 = arith.constant 0 : index
    %296 = vector.load %arg11[%c0_111, %c0_112] : memref<16x32xf32, #tpu.memory_space<vmem>>, vector<8x8xf32>
    tpu.vector_store %arg11[%c0_111, %c0_112], %295 {strides = array<i32>} : memref<16x32xf32, #tpu.memory_space<vmem>>, vector<8x8xf32>,
    %297 = vector.extract_strided_slice %271 {offsets = [0, 8], sizes = [8, 8], strides = [1, 1]} : vector<16x32xf32> to vector<8x8xf32>
    %298 = vector.extract_strided_slice %274 {offsets = [0, 8], sizes = [8, 8], strides = [1, 1]} : vector<16x32xf32> to vector<8x8xf32>
    %299 = vector.extract_strided_slice %277 {offsets = [0, 8], sizes = [8, 8], strides = [1, 1]} : vector<16x32xf32> to vector<8x8xf32>
    %cst_113 = arith.constant dense<0.000000e+00> : vector<8x8xf32>
    %300 = tpu.matmul %297, %298, %cst_113 {dimension_numbers = #tpu.dot_dimension_numbers<[1], [1], [0], [0], [0, 0, 1, 0], [], []>} : vector<8x8xf32>, vector<8x8xf32>, vector<8x8xf32> -> vector<8x8xf32>
    %301 = arith.addf %300, %280 : vector<8x8xf32>
    %cst_114 = arith.constant dense<0xFF800000> : vector<8xf32>
    %302 = vector.multi_reduction <maximumf>, %301, %cst_114 [1] : vector<8x8xf32> to vector<8xf32>
    %303 = vector.shape_cast %302 : vector<8xf32> to vector<8x1xf32>
    %304 = vector.broadcast %303 : vector<8x1xf32> to vector<8x8xf32>
    %305 = arith.subf %301, %304 : vector<8x8xf32>
    %306 = math.exp %305 : vector<8x8xf32>
    %cst_115 = arith.constant dense<0.000000e+00> : vector<8xf32>
    %307 = vector.multi_reduction <add>, %306, %cst_115 [1] : vector<8x8xf32> to vector<8xf32>
    %308 = vector.shape_cast %307 : vector<8xf32> to vector<8x1xf32>
    %309 = vector.broadcast %308 : vector<8x1xf32> to vector<8x8xf32>
    %310 = arith.divf %306, %309 : vector<8x8xf32>
    %cst_116 = arith.constant dense<0.000000e+00> : vector<8x8xf32>
    %311 = tpu.matmul %310, %299, %cst_116 {dimension_numbers = #tpu.dot_dimension_numbers<[1], [0], [0], [1], [0, 0, 1, 1], [], []>} : vector<8x8xf32>, vector<8x8xf32>, vector<8x8xf32> -> vector<8x8xf32>
    %c0_117 = arith.constant 0 : index
    %c8_118 = arith.constant 8 : index
    %312 = vector.load %arg11[%c0_117, %c8_118] : memref<16x32xf32, #tpu.memory_space<vmem>>, vector<8x8xf32>
    tpu.vector_store %arg11[%c0_117, %c8_118], %311 {strides = array<i32>} : memref<16x32xf32, #tpu.memory_space<vmem>>, vector<8x8xf32>,
    %313 = vector.extract_strided_slice %271 {offsets = [0, 16], sizes = [8, 8], strides = [1, 1]} : vector<16x32xf32> to vector<8x8xf32>
    %314 = vector.extract_strided_slice %274 {offsets = [0, 16], sizes = [8, 8], strides = [1, 1]} : vector<16x32xf32> to vector<8x8xf32>
    %315 = vector.extract_strided_slice %277 {offsets = [0, 16], sizes = [8, 8], strides = [1, 1]} : vector<16x32xf32> to vector<8x8xf32>
    %cst_119 = arith.constant dense<0.000000e+00> : vector<8x8xf32>
    %316 = tpu.matmul %313, %314, %cst_119 {dimension_numbers = #tpu.dot_dimension_numbers<[1], [1], [0], [0], [0, 0, 1, 0], [], []>} : vector<8x8xf32>, vector<8x8xf32>, vector<8x8xf32> -> vector<8x8xf32>
    %317 = arith.addf %316, %280 : vector<8x8xf32>
    %cst_120 = arith.constant dense<0xFF800000> : vector<8xf32>
    %318 = vector.multi_reduction <maximumf>, %317, %cst_120 [1] : vector<8x8xf32> to vector<8xf32>
    %319 = vector.shape_cast %318 : vector<8xf32> to vector<8x1xf32>
    %320 = vector.broadcast %319 : vector<8x1xf32> to vector<8x8xf32>
    %321 = arith.subf %317, %320 : vector<8x8xf32>
    %322 = math.exp %321 : vector<8x8xf32>
    %cst_121 = arith.constant dense<0.000000e+00> : vector<8xf32>
    %323 = vector.multi_reduction <add>, %322, %cst_121 [1] : vector<8x8xf32> to vector<8xf32>
    %324 = vector.shape_cast %323 : vector<8xf32> to vector<8x1xf32>
    %325 = vector.broadcast %324 : vector<8x1xf32> to vector<8x8xf32>
    %326 = arith.divf %322, %325 : vector<8x8xf32>
    %cst_122 = arith.constant dense<0.000000e+00> : vector<8x8xf32>
    %327 = tpu.matmul %326, %315, %cst_122 {dimension_numbers = #tpu.dot_dimension_numbers<[1], [0], [0], [1], [0, 0, 1, 1], [], []>} : vector<8x8xf32>, vector<8x8xf32>, vector<8x8xf32> -> vector<8x8xf32>
    %c0_123 = arith.constant 0 : index
    %c16_124 = arith.constant 16 : index
    %328 = vector.load %arg11[%c0_123, %c16_124] : memref<16x32xf32, #tpu.memory_space<vmem>>, vector<8x8xf32>
    tpu.vector_store %arg11[%c0_123, %c16_124], %327 {strides = array<i32>} : memref<16x32xf32, #tpu.memory_space<vmem>>, vector<8x8xf32>,
    %329 = vector.extract_strided_slice %271 {offsets = [0, 24], sizes = [8, 8], strides = [1, 1]} : vector<16x32xf32> to vector<8x8xf32>
    %330 = vector.extract_strided_slice %274 {offsets = [0, 24], sizes = [8, 8], strides = [1, 1]} : vector<16x32xf32> to vector<8x8xf32>
    %331 = vector.extract_strided_slice %277 {offsets = [0, 24], sizes = [8, 8], strides = [1, 1]} : vector<16x32xf32> to vector<8x8xf32>
    %cst_125 = arith.constant dense<0.000000e+00> : vector<8x8xf32>
    %332 = tpu.matmul %329, %330, %cst_125 {dimension_numbers = #tpu.dot_dimension_numbers<[1], [1], [0], [0], [0, 0, 1, 0], [], []>} : vector<8x8xf32>, vector<8x8xf32>, vector<8x8xf32> -> vector<8x8xf32>
    %333 = arith.addf %332, %280 : vector<8x8xf32>
    %cst_126 = arith.constant dense<0xFF800000> : vector<8xf32>
    %334 = vector.multi_reduction <maximumf>, %333, %cst_126 [1] : vector<8x8xf32> to vector<8xf32>
    %335 = vector.shape_cast %334 : vector<8xf32> to vector<8x1xf32>
    %336 = vector.broadcast %335 : vector<8x1xf32> to vector<8x8xf32>
    %337 = arith.subf %333, %336 : vector<8x8xf32>
    %338 = math.exp %337 : vector<8x8xf32>
    %cst_127 = arith.constant dense<0.000000e+00> : vector<8xf32>
    %339 = vector.multi_reduction <add>, %338, %cst_127 [1] : vector<8x8xf32> to vector<8xf32>
    %340 = vector.shape_cast %339 : vector<8xf32> to vector<8x1xf32>
    %341 = vector.broadcast %340 : vector<8x1xf32> to vector<8x8xf32>
    %342 = arith.divf %338, %341 : vector<8x8xf32>
    %cst_128 = arith.constant dense<0.000000e+00> : vector<8x8xf32>
    %343 = tpu.matmul %342, %331, %cst_128 {dimension_numbers = #tpu.dot_dimension_numbers<[1], [0], [0], [1], [0, 0, 1, 1], [], []>} : vector<8x8xf32>, vector<8x8xf32>, vector<8x8xf32> -> vector<8x8xf32>
    %c0_129 = arith.constant 0 : index
    %c24_130 = arith.constant 24 : index
    %344 = vector.load %arg11[%c0_129, %c24_130] : memref<16x32xf32, #tpu.memory_space<vmem>>, vector<8x8xf32>
    tpu.vector_store %arg11[%c0_129, %c24_130], %343 {strides = array<i32>} : memref<16x32xf32, #tpu.memory_space<vmem>>, vector<8x8xf32>,
    %345 = vector.extract_strided_slice %21 {offsets = [1, 0], sizes = [1, 8], strides = [1, 1]} : vector<2x8xf32> to vector<1x8xf32>
    %346 = vector.shape_cast %345 : vector<1x8xf32> to vector<1x8xf32>
    %347 = vector.broadcast %346 : vector<1x8xf32> to vector<8x8xf32>
    %348 = vector.extract_strided_slice %271 {offsets = [8, 0], sizes = [8, 8], strides = [1, 1]} : vector<16x32xf32> to vector<8x8xf32>
    %349 = vector.extract_strided_slice %274 {offsets = [8, 0], sizes = [8, 8], strides = [1, 1]} : vector<16x32xf32> to vector<8x8xf32>
    %350 = vector.extract_strided_slice %277 {offsets = [8, 0], sizes = [8, 8], strides = [1, 1]} : vector<16x32xf32> to vector<8x8xf32>
    %cst_131 = arith.constant dense<0.000000e+00> : vector<8x8xf32>
    %351 = tpu.matmul %348, %349, %cst_131 {dimension_numbers = #tpu.dot_dimension_numbers<[1], [1], [0], [0], [0, 0, 1, 0], [], []>} : vector<8x8xf32>, vector<8x8xf32>, vector<8x8xf32> -> vector<8x8xf32>
    %352 = arith.addf %351, %347 : vector<8x8xf32>
    %cst_132 = arith.constant dense<0xFF800000> : vector<8xf32>
    %353 = vector.multi_reduction <maximumf>, %352, %cst_132 [1] : vector<8x8xf32> to vector<8xf32>
    %354 = vector.shape_cast %353 : vector<8xf32> to vector<8x1xf32>
    %355 = vector.broadcast %354 : vector<8x1xf32> to vector<8x8xf32>
    %356 = arith.subf %352, %355 : vector<8x8xf32>
    %357 = math.exp %356 : vector<8x8xf32>
    %cst_133 = arith.constant dense<0.000000e+00> : vector<8xf32>
    %358 = vector.multi_reduction <add>, %357, %cst_133 [1] : vector<8x8xf32> to vector<8xf32>
    %359 = vector.shape_cast %358 : vector<8xf32> to vector<8x1xf32>
    %360 = vector.broadcast %359 : vector<8x1xf32> to vector<8x8xf32>
    %361 = arith.divf %357, %360 : vector<8x8xf32>
    %cst_134 = arith.constant dense<0.000000e+00> : vector<8x8xf32>
    %362 = tpu.matmul %361, %350, %cst_134 {dimension_numbers = #tpu.dot_dimension_numbers<[1], [0], [0], [1], [0, 0, 1, 1], [], []>} : vector<8x8xf32>, vector<8x8xf32>, vector<8x8xf32> -> vector<8x8xf32>
    %c8_135 = arith.constant 8 : index
    %c0_136 = arith.constant 0 : index
    %363 = vector.load %arg11[%c8_135, %c0_136] : memref<16x32xf32, #tpu.memory_space<vmem>>, vector<8x8xf32>
    tpu.vector_store %arg11[%c8_135, %c0_136], %362 {strides = array<i32>} : memref<16x32xf32, #tpu.memory_space<vmem>>, vector<8x8xf32>,
    %364 = vector.extract_strided_slice %271 {offsets = [8, 8], sizes = [8, 8], strides = [1, 1]} : vector<16x32xf32> to vector<8x8xf32>
    %365 = vector.extract_strided_slice %274 {offsets = [8, 8], sizes = [8, 8], strides = [1, 1]} : vector<16x32xf32> to vector<8x8xf32>
    %366 = vector.extract_strided_slice %277 {offsets = [8, 8], sizes = [8, 8], strides = [1, 1]} : vector<16x32xf32> to vector<8x8xf32>
    %cst_137 = arith.constant dense<0.000000e+00> : vector<8x8xf32>
    %367 = tpu.matmul %364, %365, %cst_137 {dimension_numbers = #tpu.dot_dimension_numbers<[1], [1], [0], [0], [0, 0, 1, 0], [], []>} : vector<8x8xf32>, vector<8x8xf32>, vector<8x8xf32> -> vector<8x8xf32>
    %368 = arith.addf %367, %347 : vector<8x8xf32>
    %cst_138 = arith.constant dense<0xFF800000> : vector<8xf32>
    %369 = vector.multi_reduction <maximumf>, %368, %cst_138 [1] : vector<8x8xf32> to vector<8xf32>
    %370 = vector.shape_cast %369 : vector<8xf32> to vector<8x1xf32>
    %371 = vector.broadcast %370 : vector<8x1xf32> to vector<8x8xf32>
    %372 = arith.subf %368, %371 : vector<8x8xf32>
    %373 = math.exp %372 : vector<8x8xf32>
    %cst_139 = arith.constant dense<0.000000e+00> : vector<8xf32>
    %374 = vector.multi_reduction <add>, %373, %cst_139 [1] : vector<8x8xf32> to vector<8xf32>
    %375 = vector.shape_cast %374 : vector<8xf32> to vector<8x1xf32>
    %376 = vector.broadcast %375 : vector<8x1xf32> to vector<8x8xf32>
    %377 = arith.divf %373, %376 : vector<8x8xf32>
    %cst_140 = arith.constant dense<0.000000e+00> : vector<8x8xf32>
    %378 = tpu.matmul %377, %366, %cst_140 {dimension_numbers = #tpu.dot_dimension_numbers<[1], [0], [0], [1], [0, 0, 1, 1], [], []>} : vector<8x8xf32>, vector<8x8xf32>, vector<8x8xf32> -> vector<8x8xf32>
    %c8_141 = arith.constant 8 : index
    %c8_142 = arith.constant 8 : index
    %379 = vector.load %arg11[%c8_141, %c8_142] : memref<16x32xf32, #tpu.memory_space<vmem>>, vector<8x8xf32>
    tpu.vector_store %arg11[%c8_141, %c8_142], %378 {strides = array<i32>} : memref<16x32xf32, #tpu.memory_space<vmem>>, vector<8x8xf32>,
    %380 = vector.extract_strided_slice %271 {offsets = [8, 16], sizes = [8, 8], strides = [1, 1]} : vector<16x32xf32> to vector<8x8xf32>
    %381 = vector.extract_strided_slice %274 {offsets = [8, 16], sizes = [8, 8], strides = [1, 1]} : vector<16x32xf32> to vector<8x8xf32>
    %382 = vector.extract_strided_slice %277 {offsets = [8, 16], sizes = [8, 8], strides = [1, 1]} : vector<16x32xf32> to vector<8x8xf32>
    %cst_143 = arith.constant dense<0.000000e+00> : vector<8x8xf32>
    %383 = tpu.matmul %380, %381, %cst_143 {dimension_numbers = #tpu.dot_dimension_numbers<[1], [1], [0], [0], [0, 0, 1, 0], [], []>} : vector<8x8xf32>, vector<8x8xf32>, vector<8x8xf32> -> vector<8x8xf32>
    %384 = arith.addf %383, %347 : vector<8x8xf32>
    %cst_144 = arith.constant dense<0xFF800000> : vector<8xf32>
    %385 = vector.multi_reduction <maximumf>, %384, %cst_144 [1] : vector<8x8xf32> to vector<8xf32>
    %386 = vector.shape_cast %385 : vector<8xf32> to vector<8x1xf32>
    %387 = vector.broadcast %386 : vector<8x1xf32> to vector<8x8xf32>
    %388 = arith.subf %384, %387 : vector<8x8xf32>
    %389 = math.exp %388 : vector<8x8xf32>
    %cst_145 = arith.constant dense<0.000000e+00> : vector<8xf32>
    %390 = vector.multi_reduction <add>, %389, %cst_145 [1] : vector<8x8xf32> to vector<8xf32>
    %391 = vector.shape_cast %390 : vector<8xf32> to vector<8x1xf32>
    %392 = vector.broadcast %391 : vector<8x1xf32> to vector<8x8xf32>
    %393 = arith.divf %389, %392 : vector<8x8xf32>
    %cst_146 = arith.constant dense<0.000000e+00> : vector<8x8xf32>
    %394 = tpu.matmul %393, %382, %cst_146 {dimension_numbers = #tpu.dot_dimension_numbers<[1], [0], [0], [1], [0, 0, 1, 1], [], []>} : vector<8x8xf32>, vector<8x8xf32>, vector<8x8xf32> -> vector<8x8xf32>
    %c8_147 = arith.constant 8 : index
    %c16_148 = arith.constant 16 : index
    %395 = vector.load %arg11[%c8_147, %c16_148] : memref<16x32xf32, #tpu.memory_space<vmem>>, vector<8x8xf32>
    tpu.vector_store %arg11[%c8_147, %c16_148], %394 {strides = array<i32>} : memref<16x32xf32, #tpu.memory_space<vmem>>, vector<8x8xf32>,
    %396 = vector.extract_strided_slice %271 {offsets = [8, 24], sizes = [8, 8], strides = [1, 1]} : vector<16x32xf32> to vector<8x8xf32>
    %397 = vector.extract_strided_slice %274 {offsets = [8, 24], sizes = [8, 8], strides = [1, 1]} : vector<16x32xf32> to vector<8x8xf32>
    %398 = vector.extract_strided_slice %277 {offsets = [8, 24], sizes = [8, 8], strides = [1, 1]} : vector<16x32xf32> to vector<8x8xf32>
    %cst_149 = arith.constant dense<0.000000e+00> : vector<8x8xf32>
    %399 = tpu.matmul %396, %397, %cst_149 {dimension_numbers = #tpu.dot_dimension_numbers<[1], [1], [0], [0], [0, 0, 1, 0], [], []>} : vector<8x8xf32>, vector<8x8xf32>, vector<8x8xf32> -> vector<8x8xf32>
    %400 = arith.addf %399, %347 : vector<8x8xf32>
    %cst_150 = arith.constant dense<0xFF800000> : vector<8xf32>
    %401 = vector.multi_reduction <maximumf>, %400, %cst_150 [1] : vector<8x8xf32> to vector<8xf32>
    %402 = vector.shape_cast %401 : vector<8xf32> to vector<8x1xf32>
    %403 = vector.broadcast %402 : vector<8x1xf32> to vector<8x8xf32>
    %404 = arith.subf %400, %403 : vector<8x8xf32>
    %405 = math.exp %404 : vector<8x8xf32>
    %cst_151 = arith.constant dense<0.000000e+00> : vector<8xf32>
    %406 = vector.multi_reduction <add>, %405, %cst_151 [1] : vector<8x8xf32> to vector<8xf32>
    %407 = vector.shape_cast %406 : vector<8xf32> to vector<8x1xf32>
    %408 = vector.broadcast %407 : vector<8x1xf32> to vector<8x8xf32>
    %409 = arith.divf %405, %408 : vector<8x8xf32>
    %cst_152 = arith.constant dense<0.000000e+00> : vector<8x8xf32>
    %410 = tpu.matmul %409, %398, %cst_152 {dimension_numbers = #tpu.dot_dimension_numbers<[1], [0], [0], [1], [0, 0, 1, 1], [], []>} : vector<8x8xf32>, vector<8x8xf32>, vector<8x8xf32> -> vector<8x8xf32>
    %c8_153 = arith.constant 8 : index
    %c24_154 = arith.constant 24 : index
    %411 = vector.load %arg11[%c8_153, %c24_154] : memref<16x32xf32, #tpu.memory_space<vmem>>, vector<8x8xf32>
    tpu.vector_store %arg11[%c8_153, %c24_154], %410 {strides = array<i32>} : memref<16x32xf32, #tpu.memory_space<vmem>>, vector<8x8xf32>,
    %c0_155 = arith.constant 0 : index
    %c0_156 = arith.constant 0 : index
    %412 = vector.load %arg11[%c0_155, %c0_156] : memref<16x32xf32, #tpu.memory_space<vmem>>, vector<16x32xf32>
    %c1_157 = arith.constant 1 : index
    %c0_158 = arith.constant 0 : index
    %c0_159 = arith.constant 0 : index
    %413 = vector.load %arg5[%c1_157, %c0_158, %c0_159] : memref<2x32x32xf32, #tpu.memory_space<vmem>>, vector<1x32x32xf32>
    %414 = vector.shape_cast %413 : vector<1x32x32xf32> to vector<32x32xf32>
    %cst_160 = arith.constant dense<0.000000e+00> : vector<16x32xf32>
    %415 = tpu.matmul %412, %414, %cst_160 {dimension_numbers = #tpu.dot_dimension_numbers<[1], [0], [0], [1], [0, 0, 1, 1], [], []>} : vector<16x32xf32>, vector<32x32xf32>, vector<16x32xf32> -> vector<16x32xf32>
    %416 = vector.broadcast %256 : vector<1x32xf32> to vector<16x32xf32>
    %417 = arith.addf %415, %416 : vector<16x32xf32>
    %418 = arith.addf %417, %250 : vector<16x32xf32>
    %cst_161 = arith.constant dense<0.000000e+00> : vector<16xf32>
    %419 = vector.multi_reduction <add>, %418, %cst_161 [1] : vector<16x32xf32> to vector<16xf32>
    %420 = vector.shape_cast %419 : vector<16xf32> to vector<16x1xf32>
    %cst_162 = arith.constant 3.200000e+01 : f32
    %421 = vector.broadcast %cst_162 : f32 to vector<16x1xf32>
    %422 = arith.divf %420, %421 : vector<16x1xf32>
    %423 = vector.broadcast %422 : vector<16x1xf32> to vector<16x32xf32>
    %424 = arith.subf %418, %423 : vector<16x32xf32>
    %425 = vector.broadcast %422 : vector<16x1xf32> to vector<16x32xf32>
    %426 = arith.subf %418, %425 : vector<16x32xf32>
    %427 = arith.mulf %424, %426 : vector<16x32xf32>
    %cst_163 = arith.constant dense<0.000000e+00> : vector<16xf32>
    %428 = vector.multi_reduction <add>, %427, %cst_163 [1] : vector<16x32xf32> to vector<16xf32>
    %429 = vector.shape_cast %428 : vector<16xf32> to vector<16x1xf32>
    %cst_164 = arith.constant 3.200000e+01 : f32
    %430 = vector.broadcast %cst_164 : f32 to vector<16x1xf32>
    %431 = arith.divf %429, %430 : vector<16x1xf32>
    %432 = vector.broadcast %422 : vector<16x1xf32> to vector<16x32xf32>
    %433 = arith.subf %418, %432 : vector<16x32xf32>
    %cst_165 = arith.constant 9.99999974E-6 : f32
    %434 = vector.broadcast %cst_165 : f32 to vector<16x1xf32>
    %435 = arith.addf %431, %434 : vector<16x1xf32>
    %436 = math.rsqrt %435 : vector<16x1xf32>
    %437 = vector.broadcast %436 : vector<16x1xf32> to vector<16x32xf32>
    %438 = arith.mulf %433, %437 : vector<16x32xf32>
    %439 = vector.broadcast %257 : vector<1x32xf32> to vector<16x32xf32>
    %440 = arith.mulf %438, %439 : vector<16x32xf32>
    %441 = vector.broadcast %258 : vector<1x32xf32> to vector<16x32xf32>
    %442 = arith.addf %440, %441 : vector<16x32xf32>
    %c1_166 = arith.constant 1 : index
    %c0_167 = arith.constant 0 : index
    %c0_168 = arith.constant 0 : index
    %443 = vector.load %arg6[%c1_166, %c0_167, %c0_168] : memref<2x32x128xf32, #tpu.memory_space<vmem>>, vector<1x32x128xf32>
    %444 = vector.shape_cast %443 : vector<1x32x128xf32> to vector<32x128xf32>
    %cst_169 = arith.constant dense<0.000000e+00> : vector<16x128xf32>
    %445 = tpu.matmul %442, %444, %cst_169 {dimension_numbers = #tpu.dot_dimension_numbers<[1], [0], [0], [1], [0, 0, 1, 1], [], []>} : vector<16x32xf32>, vector<32x128xf32>, vector<16x128xf32> -> vector<16x128xf32>
    %446 = vector.broadcast %263 : vector<1x128xf32> to vector<16x128xf32>
    %447 = arith.addf %445, %446 : vector<16x128xf32>
    %cst_170 = arith.constant 0.000000e+00 : f32
    %448 = vector.broadcast %cst_170 : f32 to vector<16x128xf32>
    %449 = arith.maximumf %447, %448 : vector<16x128xf32>
    %c1_171 = arith.constant 1 : index
    %c0_172 = arith.constant 0 : index
    %c0_173 = arith.constant 0 : index
    %450 = vector.load %arg7[%c1_171, %c0_172, %c0_173] : memref<2x128x32xf32, #tpu.memory_space<vmem>>, vector<1x128x32xf32>
    %451 = vector.shape_cast %450 : vector<1x128x32xf32> to vector<128x32xf32>
    %cst_174 = arith.constant dense<0.000000e+00> : vector<16x32xf32>
    %452 = tpu.matmul %449, %451, %cst_174 {dimension_numbers = #tpu.dot_dimension_numbers<[1], [0], [0], [1], [0, 0, 1, 1], [], []>} : vector<16x128xf32>, vector<128x32xf32>, vector<16x32xf32> -> vector<16x32xf32>
    %453 = vector.broadcast %259 : vector<1x32xf32> to vector<16x32xf32>
    %454 = arith.addf %452, %453 : vector<16x32xf32>
    %455 = arith.addf %454, %442 : vector<16x32xf32>
    %cst_175 = arith.constant dense<0.000000e+00> : vector<16xf32>
    %456 = vector.multi_reduction <add>, %455, %cst_175 [1] : vector<16x32xf32> to vector<16xf32>
    %457 = vector.shape_cast %456 : vector<16xf32> to vector<16x1xf32>
    %cst_176 = arith.constant 3.200000e+01 : f32
    %458 = vector.broadcast %cst_176 : f32 to vector<16x1xf32>
    %459 = arith.divf %457, %458 : vector<16x1xf32>
    %460 = vector.broadcast %459 : vector<16x1xf32> to vector<16x32xf32>
    %461 = arith.subf %455, %460 : vector<16x32xf32>
    %462 = vector.broadcast %459 : vector<16x1xf32> to vector<16x32xf32>
    %463 = arith.subf %455, %462 : vector<16x32xf32>
    %464 = arith.mulf %461, %463 : vector<16x32xf32>
    %cst_177 = arith.constant dense<0.000000e+00> : vector<16xf32>
    %465 = vector.multi_reduction <add>, %464, %cst_177 [1] : vector<16x32xf32> to vector<16xf32>
    %466 = vector.shape_cast %465 : vector<16xf32> to vector<16x1xf32>
    %cst_178 = arith.constant 3.200000e+01 : f32
    %467 = vector.broadcast %cst_178 : f32 to vector<16x1xf32>
    %468 = arith.divf %466, %467 : vector<16x1xf32>
    %469 = vector.broadcast %459 : vector<16x1xf32> to vector<16x32xf32>
    %470 = arith.subf %455, %469 : vector<16x32xf32>
    %cst_179 = arith.constant 9.99999974E-6 : f32
    %471 = vector.broadcast %cst_179 : f32 to vector<16x1xf32>
    %472 = arith.addf %468, %471 : vector<16x1xf32>
    %473 = math.rsqrt %472 : vector<16x1xf32>
    %474 = vector.broadcast %473 : vector<16x1xf32> to vector<16x32xf32>
    %475 = arith.mulf %470, %474 : vector<16x32xf32>
    %476 = vector.broadcast %260 : vector<1x32xf32> to vector<16x32xf32>
    %477 = arith.mulf %475, %476 : vector<16x32xf32>
    %478 = vector.broadcast %261 : vector<1x32xf32> to vector<16x32xf32>
    %479 = arith.addf %477, %478 : vector<16x32xf32>
    %c0_180 = arith.constant 0 : index
    %c0_181 = arith.constant 0 : index
    %480 = vector.load %arg10[%c0_180, %c0_181] : memref<16x32xf32, #tpu.memory_space<vmem>>, vector<16x32xf32>
    tpu.vector_store %arg10[%c0_180, %c0_181], %479 {strides = array<i32>} : memref<16x32xf32, #tpu.memory_space<vmem>>, vector<16x32xf32>,
    return
  }
}

</mosaic_0001>

<llo_original>
// kernel: encoder_forward.1
$region0: #{encoder_forward.1}
  #allocation0 [shape = 'u32[]', space=smem, size = 0x4, offset = 0x4, fixed_abs, tag = 'smem constant byte address 0x4 - core index']
  #allocation1 [shape = 'u32[144,128]{1,0:T(1,128)}', space=vmem, size = 0x12000, scoped, tag = 'internal scratch']
  #allocation2 [shape = 'f32[16,32]{1,0:T(8,128)}', space=vmem, size = 0x2000, scoped, tag = 'scratch operand']
  %s0 = inlined_call_operand.vmem [shape: s32[16,1], index: 0, kind: input, shape index: {}]
  %s1 = inlined_call_operand.vmem [shape: f32[50,32], index: 1, kind: input, shape index: {}]
  %s2 = inlined_call_operand.vmem [shape: f32[16,32], index: 2, kind: input, shape index: {}]
  %s3 = inlined_call_operand.vmem [shape: f32[2,8], index: 3, kind: input, shape index: {}]
  %s4 = inlined_call_operand.vmem [shape: f32[2,32,96], index: 4, kind: input, shape index: {}]
  %s5 = inlined_call_operand.vmem [shape: f32[2,32,32], index: 5, kind: input, shape index: {}]
  %s6 = inlined_call_operand.vmem [shape: f32[2,32,128], index: 6, kind: input, shape index: {}]
  %s7 = inlined_call_operand.vmem [shape: f32[2,128,32], index: 7, kind: input, shape index: {}]
  %s8 = inlined_call_operand.vmem [shape: f32[2,9,32], index: 8, kind: input, shape index: {}]
  %s9 = inlined_call_operand.vmem [shape: f32[2,1,128], index: 9, kind: input, shape index: {}]
  %s10 = inlined_call_operand.hbm [shape: f32[16,32], index: 10, kind: output, shape index: {}]
  %s11 = sld [smem:[#allocation0]]
  $region50: #{encoder_forward.1} parent=0
    _
  %s13 = ssub.s32 1, %s11
  %s14 = scalar_select 0, %s13, %s11
  $region1: #{encoder_forward.1} parent=0
    #allocation3 [shape = 'u8[8192]{0}', space=vmem, size = 0x2000, scoped, tag = 'output window, operand 0, single buffered']
    #allocation4 [shape = 's32[1]{0}', space=sflag, size = 0x4, scoped, tag = 'scoped memory for encoder_forward.1']
    %15 = vsyncpa [#allocation4], 0
    // Predicated region
    $region2: #{encoder_forward.1} parent=1 // pred_check
      _
    $region3: #{encoder_forward.1} parent=1 // pred_check_branch
      %17 = sbr.rel (0) target = $region5
    $region4: #{encoder_forward.1} parent=1 // pred_region
      _
    $region5: #{encoder_forward.1} parent=1 // pred_fallthru
      _
    // Predicated region
    $region6: #{encoder_forward.1} parent=1 // pred_check
      _
    $region7: #{encoder_forward.1} parent=1 // pred_check_branch
      %19 = sbr.rel (0) target = $region9
    $region8: #{encoder_forward.1} parent=1 // pred_region
      _
    $region9: #{encoder_forward.1} parent=1 // pred_fallthru
      _
    // Predicated region
    $region10: #{encoder_forward.1} parent=1 // pred_check
      _
    $region11: #{encoder_forward.1} parent=1 // pred_check_branch
      %21 = sbr.rel (0) target = $region13
    $region12: #{encoder_forward.1} parent=1 // pred_region
      _
    $region13: #{encoder_forward.1} parent=1 // pred_fallthru
      _
    // Predicated region
    $region14: #{encoder_forward.1} parent=1 // pred_check
      _
    $region15: #{encoder_forward.1} parent=1 // pred_check_branch
      %23 = sbr.rel (0) target = $region17
    $region16: #{encoder_forward.1} parent=1 // pred_region
      _
    $region17: #{encoder_forward.1} parent=1 // pred_fallthru
      _
    // Predicated region
    $region18: #{encoder_forward.1} parent=1 // pred_check
      _
    $region19: #{encoder_forward.1} parent=1 // pred_check_branch
      %25 = sbr.rel (0) target = $region21
    $region20: #{encoder_forward.1} parent=1 // pred_region
      _
    $region21: #{encoder_forward.1} parent=1 // pred_fallthru
      _
    // Predicated region
    $region22: #{encoder_forward.1} parent=1 // pred_check
      _
    $region23: #{encoder_forward.1} parent=1 // pred_check_branch
      %27 = sbr.rel (0) target = $region25
    $region24: #{encoder_forward.1} parent=1 // pred_region
      _
    $region25: #{encoder_forward.1} parent=1 // pred_fallthru
      _
    // Predicated region
    $region26: #{encoder_forward.1} parent=1 // pred_check
      _
    $region27: #{encoder_forward.1} parent=1 // pred_check_branch
      %29 = sbr.rel (0) target = $region29
    $region28: #{encoder_forward.1} parent=1 // pred_region
      _
    $region29: #{encoder_forward.1} parent=1 // pred_fallthru
      _
    // Predicated region
    $region30: #{encoder_forward.1} parent=1 // pred_check
      _
    $region31: #{encoder_forward.1} parent=1 // pred_check_branch
      %31 = sbr.rel (0) target = $region33
    $region32: #{encoder_forward.1} parent=1 // pred_region
      _
    $region33: #{encoder_forward.1} parent=1 // pred_fallthru
      _
    // Predicated region
    $region34: #{encoder_forward.1} parent=1 // pred_check
      _
    $region35: #{encoder_forward.1} parent=1 // pred_check_branch
      %33 = sbr.rel (0) target = $region37
    $region36: #{encoder_forward.1} parent=1 // pred_region
      _
    $region37: #{encoder_forward.1} parent=1 // pred_fallthru
      _
    // Predicated region
    $region38: #{encoder_forward.1} parent=1 // pred_check
      _
    $region39: #{encoder_forward.1} parent=1 // pred_check_branch
      %35 = sbr.rel (0) target = $region41
    $region40: #{encoder_forward.1} parent=1 // pred_region
      _
    $region41: #{encoder_forward.1} parent=1 // pred_fallthru
      _
    %v36 = vld [vmem:[%s0] sm:$0xff]
    %v37 = vld [vmem:[%s0 + $0x8] sm:$0xff]
    %v38 = vlaneseq
    %v39 = vand.u32 %v38, 127
    %40 = vset.pattern.permute.xlu0 0
    %41 = vperm.xlu0 %40, %v36
    %v42 = vpop.permute.xlu0 %41
    %43 = vset.pattern.permute.xlu0 0
    %44 = vperm.xlu0 %43, %v37
    %v45 = vpop.permute.xlu0 %44
    %vm46 = vcmp.eq.s32.totalorder %v39, %v42
    %vm47 = vcmp.eq.s32.totalorder %v39, %v45
    %v48 = vsel %vm46, 1, 0
    %v49 = vsel %vm47, 1, 0
    %v50 = vcvt.s32.f32 %v48
    %v51 = vcvt.s32.f32 %v49
    %v52 = vld [vmem:[%s1] sm:$0xff]
    %v53 = vld [vmem:[%s1 + $0x8] sm:$0xff]
    %v54 = vld [vmem:[%s1 + $0x10] sm:$0xff]
    %v55 = vld [vmem:[%s1 + $0x18] sm:$0xff]
    %v56 = vld [vmem:[%s1 + $0x20] sm:$0xff]
    %v57 = vld [vmem:[%s1 + $0x28] sm:$0xff]
    %v58 = vld [vmem:[%s1 + $0x30] sm:$0x3]
    %vm59 = vcmask 408576
    %v61 = vsel %vm59, %v50, 0
    %v64 = vsel %vm59, %v51, 0
    %vm66 = vcmask 1041408
    %v68 = vsel %vm66, %v58, 0
    %70 = vmatprep.subr.mxu0 0.0
    %71 = vmatpush1.msra.mxu0 %v52
    %72 = vmatprep.subr.mxu0 0.0
    %73 = vmatpush1.msra.mxu0 %v53
    %74 = vmatprep.subr.mxu0 0.0
    %75 = vmatpush1.msra.mxu0 %v54
    %76 = vmatprep.subr.mxu0 0.0
    %77 = vmatpush1.msra.mxu0 %v55
    %78 = vmatprep.subr.mxu0 0.0
    %79 = vmatpush1.msra.mxu0 %v56
    %80 = vmatprep.subr.mxu0 0.0
    %81 = vmatpush1.msra.mxu0 %v57
    %82 = vmatprep.subr.mxu0 0.0
    %83 = vmatpush1.msra.mxu0 %v68
    %84 = vmatprep.subr.mxu0 0.0
    %85 = vmatpush1.msra.mxu0 0.0
    %86 = vmatprep.subr.mxu0 0.0
    %87 = vmatpush1.msra.mxu0 0.0
    %88 = vmatprep.subr.mxu0 0.0
    %89 = vmatpush1.msra.mxu0 0.0
    %90 = vmatprep.subr.mxu0 0.0
    %91 = vmatpush1.msra.mxu0 0.0
    %92 = vmatprep.subr.mxu0 0.0
    %93 = vmatpush1.msra.mxu0 0.0
    %94 = vmatprep.subr.mxu0 0.0
    %95 = vmatpush1.msra.mxu0 0.0
    %96 = vmatprep.subr.mxu0 0.0
    %97 = vmatpush1.msra.mxu0 0.0
    %98 = vmatprep.subr.mxu0 0.0
    %99 = vmatpush1.msra.mxu0 0.0
    %100 = vmatprep.subr.mxu0 0.0
    %101 = vmatpush1.msra.mxu0 0.0
    %102 = vmatprep.subr.mxu0 0.0
    %103 = vmatpush1.msra.mxu0 0.0
    %104 = vmatprep.subr.mxu0 0.0
    %105 = vmatpush1.msra.mxu0 0.0
    %106 = vmatprep.subr.mxu0 0.0
    %107 = vmatpush1.msra.mxu0 0.0
    %108 = vmatprep.subr.mxu0 0.0
    %109 = vmatpush1.msra.mxu0 0.0
    %110 = vmatprep.subr.mxu0 0.0
    %111 = vmatpush1.msra.mxu0 0.0
    %112 = vmatprep.subr.mxu0 0.0
    %113 = vmatpush1.msra.mxu0 0.0
    %114 = vmatprep.subr.mxu0 0.0
    %115 = vmatpush1.msra.mxu0 0.0
    %116 = vmatprep.subr.mxu0 0.0
    %117 = vmatpush1.msra.mxu0 0.0
    %118 = vmatprep.subr.mxu0 0.0
    %119 = vmatpush1.msra.mxu0 0.0
    %120 = vmatprep.subr.mxu0 0.0
    %121 = vmatpush1.msra.mxu0 0.0
    %122 = vmatprep.subr.mxu0 0.0
    %123 = vmatpush1.msra.mxu0 0.0
    %124 = vmatprep.subr.mxu0 0.0
    %125 = vmatpush1.msra.mxu0 0.0
    %126 = vmatprep.subr.mxu0 0.0
    %127 = vmatpush1.msra.mxu0 0.0
    %128 = vmatprep.subr.mxu0 0.0
    %129 = vmatpush1.msra.mxu0 0.0
    %130 = vmatprep.subr.mxu0 0.0
    %131 = vmatpush1.msra.mxu0 0.0
    %132 = vmatprep.subr.mxu0 0.0
    %133 = vmatpush1.msra.mxu0 0.0
    %134 = vmatprep.mubr.f32.mxu0 0.0
    %135 = vmatmul.mubr.f32.gmra.mrb[0].mxu0 %v61
    %v136 = vpop.f32.mrb[0].mxu0
    %v137 = vadd.f32 0.0, %v136
    %v138 = vpop.f32.mrb[0].mxu0
    %139 = vmatprep.mubr.f32.mxu0 0.0
    %140 = vmatmul.mubr.f32.gmra.mrb[0].mxu0 %v64
    %v141 = vpop.f32.mrb[0].mxu0
    %v142 = vadd.f32 0.0, %v141
    %v143 = vpop.f32.mrb[0].mxu0
    %144 = vdwg.mxu0
    %v145 = vld [vmem:[%s2] sm:$0xff]
    %v146 = vadd.f32 %v137, %v145
    %vm147 = vcmask 261120
    %148 = vst.msk [vmem:[#allocation2] sm:$0xff] %vm147, %v146
    %v149 = vadd.f32 %v142, %v145
    %150 = vst.msk [vmem:[#allocation2 + $0x8] sm:$0xff] %vm147, %v149
    %v151 = vld [vmem:[#allocation2] sm:$0xff]
    %v152 = vld [vmem:[#allocation2 + $0x8] sm:$0xff]
    %v153 = vld [vmem:[%s3] sm:$0x3]
    %vm154 = vcmp.eq.f32.partialorder %v153, 0.0
    %v155 = vsel %vm154, -1e+20, 0.0
    %v156 = vld [vmem:[%s8] sm:$0xff]
    %v157 = vld [vmem:[%s8 + $0x8] sm:$0x1]
    %v158 = vld [vmem:[%s9] sm:$0x1]
    %v159 = vld [vmem:[%s4] sm:$0xff]
    %v160 = vld [vmem:[%s4 + $0x8] sm:$0xff]
    %v161 = vld [vmem:[%s4 + $0x10] sm:$0xff]
    %v162 = vld [vmem:[%s4 + $0x18] sm:$0xff]
    %v164 = vsel %vm147, %v151, 0
    %v167 = vsel %vm147, %v152, 0
    %169 = vmatprep.subr.mxu0 0.0
    %170 = vmatpush1.msra.mxu0 %v159
    %171 = vmatprep.subr.mxu0 0.0
    %172 = vmatpush1.msra.mxu0 %v160
    %173 = vmatprep.subr.mxu0 0.0
    %174 = vmatpush1.msra.mxu0 %v161
    %175 = vmatprep.subr.mxu0 0.0
    %176 = vmatpush1.msra.mxu0 %v162
    %177 = vmatprep.subr.mxu0 0.0
    %178 = vmatpush1.msra.mxu0 0.0
    %179 = vmatprep.subr.mxu0 0.0
    %180 = vmatpush1.msra.mxu0 0.0
    %181 = vmatprep.subr.mxu0 0.0
    %182 = vmatpush1.msra.mxu0 0.0
    %183 = vmatprep.subr.mxu0 0.0
    %184 = vmatpush1.msra.mxu0 0.0
    %185 = vmatprep.subr.mxu0 0.0
    %186 = vmatpush1.msra.mxu0 0.0
    %187 = vmatprep.subr.mxu0 0.0
    %188 = vmatpush1.msra.mxu0 0.0
    %189 = vmatprep.subr.mxu0 0.0
    %190 = vmatpush1.msra.mxu0 0.0
    %191 = vmatprep.subr.mxu0 0.0
    %192 = vmatpush1.msra.mxu0 0.0
    %193 = vmatprep.subr.mxu0 0.0
    %194 = vmatpush1.msra.mxu0 0.0
    %195 = vmatprep.subr.mxu0 0.0
    %196 = vmatpush1.msra.mxu0 0.0
    %197 = vmatprep.subr.mxu0 0.0
    %198 = vmatpush1.msra.mxu0 0.0
    %199 = vmatprep.subr.mxu0 0.0
    %200 = vmatpush1.msra.mxu0 0.0
    %201 = vmatprep.subr.mxu0 0.0
    %202 = vmatpush1.msra.mxu0 0.0
    %203 = vmatprep.subr.mxu0 0.0
    %204 = vmatpush1.msra.mxu0 0.0
    %205 = vmatprep.subr.mxu0 0.0
    %206 = vmatpush1.msra.mxu0 0.0
    %207 = vmatprep.subr.mxu0 0.0
    %208 = vmatpush1.msra.mxu0 0.0
    %209 = vmatprep.subr.mxu0 0.0
    %210 = vmatpush1.msra.mxu0 0.0
    %211 = vmatprep.subr.mxu0 0.0
    %212 = vmatpush1.msra.mxu0 0.0
    %213 = vmatprep.subr.mxu0 0.0
    %214 = vmatpush1.msra.mxu0 0.0
    %215 = vmatprep.subr.mxu0 0.0
    %216 = vmatpush1.msra.mxu0 0.0
    %217 = vmatprep.subr.mxu0 0.0
    %218 = vmatpush1.msra.mxu0 0.0
    %219 = vmatprep.subr.mxu0 0.0
    %220 = vmatpush1.msra.mxu0 0.0
    %221 = vmatprep.subr.mxu0 0.0
    %222 = vmatpush1.msra.mxu0 0.0
    %223 = vmatprep.subr.mxu0 0.0
    %224 = vmatpush1.msra.mxu0 0.0
    %225 = vmatprep.subr.mxu0 0.0
    %226 = vmatpush1.msra.mxu0 0.0
    %227 = vmatprep.subr.mxu0 0.0
    %228 = vmatpush1.msra.mxu0 0.0
    %229 = vmatprep.subr.mxu0 0.0
    %230 = vmatpush1.msra.mxu0 0.0
    %231 = vmatprep.subr.mxu0 0.0
    %232 = vmatpush1.msra.mxu0 0.0
    %233 = vmatprep.mubr.f32.mxu0 0.0
    %234 = vmatmul.mubr.f32.gmra.mrb[0].mxu0 %v164
    %v235 = vpop.f32.mrb[0].mxu0
    %v236 = vadd.f32 0.0, %v235
    %v237 = vpop.f32.mrb[0].mxu0
    %238 = vmatprep.mubr.f32.mxu0 0.0
    %239 = vmatmul.mubr.f32.gmra.mrb[0].mxu0 %v167
    %v240 = vpop.f32.mrb[0].mxu0
    %v241 = vadd.f32 0.0, %v240
    %v242 = vpop.f32.mrb[0].mxu0
    %243 = vdwg.mxu0
    %v244 = vlaneseq
    %v245 = vshrl.u32 %v244, 7
    %v246 = vsub.s32 0, %v245
    %v247 = vrot.slane %v156, %v246
    %v248 = vadd.f32 %v236, %v247
    %v249 = vadd.f32 %v241, %v247
    %v250 = vmul.f32 %v248, 0.17677669
    %v251 = vmul.f32 %v249, 0.17677669
    %v252 = vlaneseq
    %v253 = vshrl.u32 %v252, 7
    %v254 = vsub.s32 1, %v253
    %v255 = vrot.slane %v156, %v254
    %257 = vrot.lane.b32.xlu0 %v255, 32
    %v258 = vpop.permute.xlu0 %257
    %v260 = vadd.f32 %v236, %v258
    %v261 = vadd.f32 %v241, %v258
    %v262 = vlaneseq
    %v263 = vshrl.u32 %v262, 7
    %v264 = vsub.s32 2, %v263
    %v265 = vrot.slane %v156, %v264
    %267 = vrot.lane.b32.xlu0 %v265, 64
    %v268 = vpop.permute.xlu0 %267
    %v270 = vadd.f32 %v236, %v268
    %v271 = vadd.f32 %v241, %v268
    %v272 = vlaneseq
    %v273 = vshrl.u32 %v272, 7
    %v274 = vsub.s32 0, %v273
    %v275 = vrot.slane %v155, %v274
    %277 = vrot.lane.b32.xlu0 %v260, 96
    %v278 = vpop.permute.xlu0 %277
    %vm279 = vcmask 64512
    %v281 = vsel %vm279, %v250, 0
    %v283 = vsel %vm279, %v278, 0
    %285 = vmatprep.subr.mxu0 0.0
    %286 = vmatpush1.xpose.msra.mxu0 %v283
    %287 = vmatprep.subr.mxu0 0.0
    %288 = vmatpush1.xpose.msra.mxu0 0.0
    %289 = vmatprep.subr.mxu0 0.0
    %290 = vmatpush1.xpose.msra.mxu0 0.0
    %291 = vmatprep.subr.mxu0 0.0
    %292 = vmatpush1.xpose.msra.mxu0 0.0
    %293 = vmatprep.subr.mxu0 0.0
    %294 = vmatpush1.xpose.msra.mxu0 0.0
    %295 = vmatprep.subr.mxu0 0.0
    %296 = vmatpush1.xpose.msra.mxu0 0.0
    %297 = vmatprep.subr.mxu0 0.0
    %298 = vmatpush1.xpose.msra.mxu0 0.0
    %299 = vmatprep.subr.mxu0 0.0
    %300 = vmatpush1.xpose.msra.mxu0 0.0
    %301 = vmatprep.subr.mxu0 0.0
    %302 = vmatpush1.xpose.msra.mxu0 0.0
    %303 = vmatprep.subr.mxu0 0.0
    %304 = vmatpush1.xpose.msra.mxu0 0.0
    %305 = vmatprep.subr.mxu0 0.0
    %306 = vmatpush1.xpose.msra.mxu0 0.0
    %307 = vmatprep.subr.mxu0 0.0
    %308 = vmatpush1.xpose.msra.mxu0 0.0
    %309 = vmatprep.subr.mxu0 0.0
    %310 = vmatpush1.xpose.msra.mxu0 0.0
    %311 = vmatprep.subr.mxu0 0.0
    %312 = vmatpush1.xpose.msra.mxu0 0.0
    %313 = vmatprep.subr.mxu0 0.0
    %314 = vmatpush1.xpose.msra.mxu0 0.0
    %315 = vmatprep.subr.mxu0 0.0
    %316 = vmatpush1.xpose.msra.mxu0 0.0
    %317 = vmatprep.subr.mxu0 0.0
    %318 = vmatpush1.xpose.msra.mxu0 0.0
    %319 = vmatprep.subr.mxu0 0.0
    %320 = vmatpush1.xpose.msra.mxu0 0.0
    %321 = vmatprep.subr.mxu0 0.0
    %322 = vmatpush1.xpose.msra.mxu0 0.0
    %323 = vmatprep.subr.mxu0 0.0
    %324 = vmatpush1.xpose.msra.mxu0 0.0
    %325 = vmatprep.subr.mxu0 0.0
    %326 = vmatpush1.xpose.msra.mxu0 0.0
    %327 = vmatprep.subr.mxu0 0.0
    %328 = vmatpush1.xpose.msra.mxu0 0.0
    %329 = vmatprep.subr.mxu0 0.0
    %330 = vmatpush1.xpose.msra.mxu0 0.0
    %331 = vmatprep.subr.mxu0 0.0
    %332 = vmatpush1.xpose.msra.mxu0 0.0
    %333 = vmatprep.subr.mxu0 0.0
    %334 = vmatpush1.xpose.msra.mxu0 0.0
    %335 = vmatprep.subr.mxu0 0.0
    %336 = vmatpush1.xpose.msra.mxu0 0.0
    %337 = vmatprep.subr.mxu0 0.0
    %338 = vmatpush1.xpose.msra.mxu0 0.0
    %339 = vmatprep.subr.mxu0 0.0
    %340 = vmatpush1.xpose.msra.mxu0 0.0
    %341 = vmatprep.subr.mxu0 0.0
    %342 = vmatpush1.xpose.msra.mxu0 0.0
    %343 = vmatprep.subr.mxu0 0.0
    %344 = vmatpush1.xpose.msra.mxu0 0.0
    %345 = vmatprep.subr.mxu0 0.0
    %346 = vmatpush1.xpose.msra.mxu0 0.0
    %347 = vmatprep.subr.mxu0 0.0
    %348 = vmatpush1.xpose.msra.mxu0 0.0
    %349 = vmatprep.mubr.f32.mxu0 0.0
    %350 = vmatmul.mubr.f32.gmra.mrb[0].mxu0 %v281
    %v351 = vpop.f32.mrb[0].mxu0
    %v352 = vadd.f32 %v275, %v351
    %v353 = vpop.f32.mrb[0].mxu0
    %354 = vdwg.mxu0
    %v355 = vsel %vm279, %v352, -inf
    %356 = vmax.xlane.f32.xlu0 %v355
    %v357 = vpop.xlane.xlu0 %356
    %v358 = vsub.f32 %v352, %v357
    %v359 = vmul.f32 %v358, 1.442695
    %v360 = vpow.pop %v359
    %v361 = vsel %vm279, %v360, 0.0
    %362 = vadd.xlane.f32.xlu0 %v361
    %v363 = vpop.xlane.xlu0 %362
    %v364 = vrcp.pop %v363
    %v365 = vmul.f32 %v360, %v364
    %367 = vrot.lane.b32.xlu0 %v270, 64
    %v368 = vpop.permute.xlu0 %367
    %v371 = vsel %vm279, %v365, 0
    %373 = vmatprep.subr.mxu0 0.0
    %374 = vmatpush1.msra.mxu0 %v368
    %375 = vmatprep.subr.mxu0 0.0
    %376 = vmatpush1.msra.mxu0 0.0
    %377 = vmatprep.subr.mxu0 0.0
    %378 = vmatpush1.msra.mxu0 0.0
    %379 = vmatprep.subr.mxu0 0.0
    %380 = vmatpush1.msra.mxu0 0.0
    %381 = vmatprep.subr.mxu0 0.0
    %382 = vmatpush1.msra.mxu0 0.0
    %383 = vmatprep.subr.mxu0 0.0
    %384 = vmatpush1.msra.mxu0 0.0
    %385 = vmatprep.subr.mxu0 0.0
    %386 = vmatpush1.msra.mxu0 0.0
    %387 = vmatprep.subr.mxu0 0.0
    %388 = vmatpush1.msra.mxu0 0.0
    %389 = vmatprep.subr.mxu0 0.0
    %390 = vmatpush1.msra.mxu0 0.0
    %391 = vmatprep.subr.mxu0 0.0
    %392 = vmatpush1.msra.mxu0 0.0
    %393 = vmatprep.subr.mxu0 0.0
    %394 = vmatpush1.msra.mxu0 0.0
    %395 = vmatprep.subr.mxu0 0.0
    %396 = vmatpush1.msra.mxu0 0.0
    %397 = vmatprep.subr.mxu0 0.0
    %398 = vmatpush1.msra.mxu0 0.0
    %399 = vmatprep.subr.mxu0 0.0
    %400 = vmatpush1.msra.mxu0 0.0
    %401 = vmatprep.subr.mxu0 0.0
    %402 = vmatpush1.msra.mxu0 0.0
    %403 = vmatprep.subr.mxu0 0.0
    %404 = vmatpush1.msra.mxu0 0.0
    %405 = vmatprep.subr.mxu0 0.0
    %406 = vmatpush1.msra.mxu0 0.0
    %407 = vmatprep.subr.mxu0 0.0
    %408 = vmatpush1.msra.mxu0 0.0
    %409 = vmatprep.subr.mxu0 0.0
    %410 = vmatpush1.msra.mxu0 0.0
    %411 = vmatprep.subr.mxu0 0.0
    %412 = vmatpush1.msra.mxu0 0.0
    %413 = vmatprep.subr.mxu0 0.0
    %414 = vmatpush1.msra.mxu0 0.0
    %415 = vmatprep.subr.mxu0 0.0
    %416 = vmatpush1.msra.mxu0 0.0
    %417 = vmatprep.subr.mxu0 0.0
    %418 = vmatpush1.msra.mxu0 0.0
    %419 = vmatprep.subr.mxu0 0.0
    %420 = vmatpush1.msra.mxu0 0.0
    %421 = vmatprep.subr.mxu0 0.0
    %422 = vmatpush1.msra.mxu0 0.0
    %423 = vmatprep.subr.mxu0 0.0
    %424 = vmatpush1.msra.mxu0 0.0
    %425 = vmatprep.subr.mxu0 0.0
    %426 = vmatpush1.msra.mxu0 0.0
    %427 = vmatprep.subr.mxu0 0.0
    %428 = vmatpush1.msra.mxu0 0.0
    %429 = vmatprep.subr.mxu0 0.0
    %430 = vmatpush1.msra.mxu0 0.0
    %431 = vmatprep.subr.mxu0 0.0
    %432 = vmatpush1.msra.mxu0 0.0
    %433 = vmatprep.subr.mxu0 0.0
    %434 = vmatpush1.msra.mxu0 0.0
    %435 = vmatprep.subr.mxu0 0.0
    %436 = vmatpush1.msra.mxu0 0.0
    %437 = vmatprep.mubr.f32.mxu0 0.0
    %438 = vmatmul.mubr.f32.gmra.mrb[0].mxu0 %v371
    %v439 = vpop.f32.mrb[0].mxu0
    %v440 = vadd.f32 0.0, %v439
    %v441 = vpop.f32.mrb[0].mxu0
    %442 = vdwg.mxu0
    %443 = vst.msk [vmem:[#allocation2] sm:$0xff] %vm279, %v440
    %444 = vrot.lane.b32.xlu0 %v250, 120
    %v445 = vpop.permute.xlu0 %444
    %446 = vrot.lane.b32.xlu0 %v260, 88
    %v447 = vpop.permute.xlu0 %446
    %v448 = vsel %vm279, %v445, 0
    %v450 = vsel %vm279, %v447, 0
    %452 = vmatprep.subr.mxu0 0.0
    %453 = vmatpush1.xpose.msra.mxu0 %v450
    %454 = vmatprep.subr.mxu0 0.0
    %455 = vmatpush1.xpose.msra.mxu0 0.0
    %456 = vmatprep.subr.mxu0 0.0
    %457 = vmatpush1.xpose.msra.mxu0 0.0
    %458 = vmatprep.subr.mxu0 0.0
    %459 = vmatpush1.xpose.msra.mxu0 0.0
    %460 = vmatprep.subr.mxu0 0.0
    %461 = vmatpush1.xpose.msra.mxu0 0.0
    %462 = vmatprep.subr.mxu0 0.0
    %463 = vmatpush1.xpose.msra.mxu0 0.0
    %464 = vmatprep.subr.mxu0 0.0
    %465 = vmatpush1.xpose.msra.mxu0 0.0
    %466 = vmatprep.subr.mxu0 0.0
    %467 = vmatpush1.xpose.msra.mxu0 0.0
    %468 = vmatprep.subr.mxu0 0.0
    %469 = vmatpush1.xpose.msra.mxu0 0.0
    %470 = vmatprep.subr.mxu0 0.0
    %471 = vmatpush1.xpose.msra.mxu0 0.0
    %472 = vmatprep.subr.mxu0 0.0
    %473 = vmatpush1.xpose.msra.mxu0 0.0
    %474 = vmatprep.subr.mxu0 0.0
    %475 = vmatpush1.xpose.msra.mxu0 0.0
    %476 = vmatprep.subr.mxu0 0.0
    %477 = vmatpush1.xpose.msra.mxu0 0.0
    %478 = vmatprep.subr.mxu0 0.0
    %479 = vmatpush1.xpose.msra.mxu0 0.0
    %480 = vmatprep.subr.mxu0 0.0
    %481 = vmatpush1.xpose.msra.mxu0 0.0
    %482 = vmatprep.subr.mxu0 0.0
    %483 = vmatpush1.xpose.msra.mxu0 0.0
    %484 = vmatprep.subr.mxu0 0.0
    %485 = vmatpush1.xpose.msra.mxu0 0.0
    %486 = vmatprep.subr.mxu0 0.0
    %487 = vmatpush1.xpose.msra.mxu0 0.0
    %488 = vmatprep.subr.mxu0 0.0
    %489 = vmatpush1.xpose.msra.mxu0 0.0
    %490 = vmatprep.subr.mxu0 0.0
    %491 = vmatpush1.xpose.msra.mxu0 0.0
    %492 = vmatprep.subr.mxu0 0.0
    %493 = vmatpush1.xpose.msra.mxu0 0.0
    %494 = vmatprep.subr.mxu0 0.0
    %495 = vmatpush1.xpose.msra.mxu0 0.0
    %496 = vmatprep.subr.mxu0 0.0
    %497 = vmatpush1.xpose.msra.mxu0 0.0
    %498 = vmatprep.subr.mxu0 0.0
    %499 = vmatpush1.xpose.msra.mxu0 0.0
    %500 = vmatprep.subr.mxu0 0.0
    %501 = vmatpush1.xpose.msra.mxu0 0.0
    %502 = vmatprep.subr.mxu0 0.0
    %503 = vmatpush1.xpose.msra.mxu0 0.0
    %504 = vmatprep.subr.mxu0 0.0
    %505 = vmatpush1.xpose.msra.mxu0 0.0
    %506 = vmatprep.subr.mxu0 0.0
    %507 = vmatpush1.xpose.msra.mxu0 0.0
    %508 = vmatprep.subr.mxu0 0.0
    %509 = vmatpush1.xpose.msra.mxu0 0.0
    %510 = vmatprep.subr.mxu0 0.0
    %511 = vmatpush1.xpose.msra.mxu0 0.0
    %512 = vmatprep.subr.mxu0 0.0
    %513 = vmatpush1.xpose.msra.mxu0 0.0
    %514 = vmatprep.subr.mxu0 0.0
    %515 = vmatpush1.xpose.msra.mxu0 0.0
    %516 = vmatprep.mubr.f32.mxu0 0.0
    %517 = vmatmul.mubr.f32.gmra.mrb[0].mxu0 %v448
    %v518 = vpop.f32.mrb[0].mxu0
    %v519 = vadd.f32 %v275, %v518
    %v520 = vpop.f32.mrb[0].mxu0
    %521 = vdwg.mxu0
    %v522 = vsel %vm279, %v519, -inf
    %523 = vmax.xlane.f32.xlu0 %v522
    %v524 = vpop.xlane.xlu0 %523
    %v525 = vsub.f32 %v519, %v524
    %v526 = vmul.f32 %v525, 1.442695
    %v527 = vpow.pop %v526
    %v528 = vsel %vm279, %v527, 0.0
    %529 = vadd.xlane.f32.xlu0 %v528
    %v530 = vpop.xlane.xlu0 %529
    %v531 = vrcp.pop %v530
    %v532 = vmul.f32 %v527, %v531
    %533 = vrot.lane.b32.xlu0 %v270, 56
    %v534 = vpop.permute.xlu0 %533
    %v537 = vsel %vm279, %v532, 0
    %539 = vmatprep.subr.mxu0 0.0
    %540 = vmatpush1.msra.mxu0 %v534
    %541 = vmatprep.subr.mxu0 0.0
    %542 = vmatpush1.msra.mxu0 0.0
    %543 = vmatprep.subr.mxu0 0.0
    %544 = vmatpush1.msra.mxu0 0.0
    %545 = vmatprep.subr.mxu0 0.0
    %546 = vmatpush1.msra.mxu0 0.0
    %547 = vmatprep.subr.mxu0 0.0
    %548 = vmatpush1.msra.mxu0 0.0
    %549 = vmatprep.subr.mxu0 0.0
    %550 = vmatpush1.msra.mxu0 0.0
    %551 = vmatprep.subr.mxu0 0.0
    %552 = vmatpush1.msra.mxu0 0.0
    %553 = vmatprep.subr.mxu0 0.0
    %554 = vmatpush1.msra.mxu0 0.0
    %555 = vmatprep.subr.mxu0 0.0
    %556 = vmatpush1.msra.mxu0 0.0
    %557 = vmatprep.subr.mxu0 0.0
    %558 = vmatpush1.msra.mxu0 0.0
    %559 = vmatprep.subr.mxu0 0.0
    %560 = vmatpush1.msra.mxu0 0.0
    %561 = vmatprep.subr.mxu0 0.0
    %562 = vmatpush1.msra.mxu0 0.0
    %563 = vmatprep.subr.mxu0 0.0
    %564 = vmatpush1.msra.mxu0 0.0
    %565 = vmatprep.subr.mxu0 0.0
    %566 = vmatpush1.msra.mxu0 0.0
    %567 = vmatprep.subr.mxu0 0.0
    %568 = vmatpush1.msra.mxu0 0.0
    %569 = vmatprep.subr.mxu0 0.0
    %570 = vmatpush1.msra.mxu0 0.0
    %571 = vmatprep.subr.mxu0 0.0
    %572 = vmatpush1.msra.mxu0 0.0
    %573 = vmatprep.subr.mxu0 0.0
    %574 = vmatpush1.msra.mxu0 0.0
    %575 = vmatprep.subr.mxu0 0.0
    %576 = vmatpush1.msra.mxu0 0.0
    %577 = vmatprep.subr.mxu0 0.0
    %578 = vmatpush1.msra.mxu0 0.0
    %579 = vmatprep.subr.mxu0 0.0
    %580 = vmatpush1.msra.mxu0 0.0
    %581 = vmatprep.subr.mxu0 0.0
    %582 = vmatpush1.msra.mxu0 0.0
    %583 = vmatprep.subr.mxu0 0.0
    %584 = vmatpush1.msra.mxu0 0.0
    %585 = vmatprep.subr.mxu0 0.0
    %586 = vmatpush1.msra.mxu0 0.0
    %587 = vmatprep.subr.mxu0 0.0
    %588 = vmatpush1.msra.mxu0 0.0
    %589 = vmatprep.subr.mxu0 0.0
    %590 = vmatpush1.msra.mxu0 0.0
    %591 = vmatprep.subr.mxu0 0.0
    %592 = vmatpush1.msra.mxu0 0.0
    %593 = vmatprep.subr.mxu0 0.0
    %594 = vmatpush1.msra.mxu0 0.0
    %595 = vmatprep.subr.mxu0 0.0
    %596 = vmatpush1.msra.mxu0 0.0
    %597 = vmatprep.subr.mxu0 0.0
    %598 = vmatpush1.msra.mxu0 0.0
    %599 = vmatprep.subr.mxu0 0.0
    %600 = vmatpush1.msra.mxu0 0.0
    %601 = vmatprep.subr.mxu0 0.0
    %602 = vmatpush1.msra.mxu0 0.0
    %603 = vmatprep.mubr.f32.mxu0 0.0
    %604 = vmatmul.mubr.f32.gmra.mrb[0].mxu0 %v537
    %v605 = vpop.f32.mrb[0].mxu0
    %v606 = vadd.f32 0.0, %v605
    %v607 = vpop.f32.mrb[0].mxu0
    %608 = vdwg.mxu0
    %610 = vrot.lane.b32.xlu0 %v606, 8
    %v611 = vpop.permute.xlu0 %610
    %vm613 = vcmask 130112
    %614 = vst.msk [vmem:[#allocation2] sm:$0xff] %vm613, %v611
    %615 = vrot.lane.b32.xlu0 %v250, 112
    %v616 = vpop.permute.xlu0 %615
    %617 = vrot.lane.b32.xlu0 %v260, 80
    %v618 = vpop.permute.xlu0 %617
    %v619 = vsel %vm279, %v616, 0
    %v621 = vsel %vm279, %v618, 0
    %623 = vmatprep.subr.mxu0 0.0
    %624 = vmatpush1.xpose.msra.mxu0 %v621
    %625 = vmatprep.subr.mxu0 0.0
    %626 = vmatpush1.xpose.msra.mxu0 0.0
    %627 = vmatprep.subr.mxu0 0.0
    %628 = vmatpush1.xpose.msra.mxu0 0.0
    %629 = vmatprep.subr.mxu0 0.0
    %630 = vmatpush1.xpose.msra.mxu0 0.0
    %631 = vmatprep.subr.mxu0 0.0
    %632 = vmatpush1.xpose.msra.mxu0 0.0
    %633 = vmatprep.subr.mxu0 0.0
    %634 = vmatpush1.xpose.msra.mxu0 0.0
    %635 = vmatprep.subr.mxu0 0.0
    %636 = vmatpush1.xpose.msra.mxu0 0.0
    %637 = vmatprep.subr.mxu0 0.0
    %638 = vmatpush1.xpose.msra.mxu0 0.0
    %639 = vmatprep.subr.mxu0 0.0
    %640 = vmatpush1.xpose.msra.mxu0 0.0
    %641 = vmatprep.subr.mxu0 0.0
    %642 = vmatpush1.xpose.msra.mxu0 0.0
    %643 = vmatprep.subr.mxu0 0.0
    %644 = vmatpush1.xpose.msra.mxu0 0.0
    %645 = vmatprep.subr.mxu0 0.0
    %646 = vmatpush1.xpose.msra.mxu0 0.0
    %647 = vmatprep.subr.mxu0 0.0
    %648 = vmatpush1.xpose.msra.mxu0 0.0
    %649 = vmatprep.subr.mxu0 0.0
    %650 = vmatpush1.xpose.msra.mxu0 0.0
    %651 = vmatprep.subr.mxu0 0.0
    %652 = vmatpush1.xpose.msra.mxu0 0.0
    %653 = vmatprep.subr.mxu0 0.0
    %654 = vmatpush1.xpose.msra.mxu0 0.0
    %655 = vmatprep.subr.mxu0 0.0
    %656 = vmatpush1.xpose.msra.mxu0 0.0
    %657 = vmatprep.subr.mxu0 0.0
    %658 = vmatpush1.xpose.msra.mxu0 0.0
    %659 = vmatprep.subr.mxu0 0.0
    %660 = vmatpush1.xpose.msra.mxu0 0.0
    %661 = vmatprep.subr.mxu0 0.0
    %662 = vmatpush1.xpose.msra.mxu0 0.0
    %663 = vmatprep.subr.mxu0 0.0
    %664 = vmatpush1.xpose.msra.mxu0 0.0
    %665 = vmatprep.subr.mxu0 0.0
    %666 = vmatpush1.xpose.msra.mxu0 0.0
    %667 = vmatprep.subr.mxu0 0.0
    %668 = vmatpush1.xpose.msra.mxu0 0.0
    %669 = vmatprep.subr.mxu0 0.0
    %670 = vmatpush1.xpose.msra.mxu0 0.0
    %671 = vmatprep.subr.mxu0 0.0
    %672 = vmatpush1.xpose.msra.mxu0 0.0
    %673 = vmatprep.subr.mxu0 0.0
    %674 = vmatpush1.xpose.msra.mxu0 0.0
    %675 = vmatprep.subr.mxu0 0.0
    %676 = vmatpush1.xpose.msra.mxu0 0.0
    %677 = vmatprep.subr.mxu0 0.0
    %678 = vmatpush1.xpose.msra.mxu0 0.0
    %679 = vmatprep.subr.mxu0 0.0
    %680 = vmatpush1.xpose.msra.mxu0 0.0
    %681 = vmatprep.subr.mxu0 0.0
    %682 = vmatpush1.xpose.msra.mxu0 0.0
    %683 = vmatprep.subr.mxu0 0.0
    %684 = vmatpush1.xpose.msra.mxu0 0.0
    %685 = vmatprep.subr.mxu0 0.0
    %686 = vmatpush1.xpose.msra.mxu0 0.0
    %687 = vmatprep.mubr.f32.mxu0 0.0
    %688 = vmatmul.mubr.f32.gmra.mrb[0].mxu0 %v619
    %v689 = vpop.f32.mrb[0].mxu0
    %v690 = vadd.f32 %v275, %v689
    %v691 = vpop.f32.mrb[0].mxu0
    %692 = vdwg.mxu0
    %v693 = vsel %vm279, %v690, -inf
    %694 = vmax.xlane.f32.xlu0 %v693
    %v695 = vpop.xlane.xlu0 %694
    %v696 = vsub.f32 %v690, %v695
    %v697 = vmul.f32 %v696, 1.442695
    %v698 = vpow.pop %v697
    %v699 = vsel %vm279, %v698, 0.0
    %700 = vadd.xlane.f32.xlu0 %v699
    %v701 = vpop.xlane.xlu0 %700
    %v702 = vrcp.pop %v701
    %v703 = vmul.f32 %v698, %v702
    %704 = vrot.lane.b32.xlu0 %v270, 48
    %v705 = vpop.permute.xlu0 %704
    %v708 = vsel %vm279, %v703, 0
    %710 = vmatprep.subr.mxu0 0.0
    %711 = vmatpush1.msra.mxu0 %v705
    %712 = vmatprep.subr.mxu0 0.0
    %713 = vmatpush1.msra.mxu0 0.0
    %714 = vmatprep.subr.mxu0 0.0
    %715 = vmatpush1.msra.mxu0 0.0
    %716 = vmatprep.subr.mxu0 0.0
    %717 = vmatpush1.msra.mxu0 0.0
    %718 = vmatprep.subr.mxu0 0.0
    %719 = vmatpush1.msra.mxu0 0.0
    %720 = vmatprep.subr.mxu0 0.0
    %721 = vmatpush1.msra.mxu0 0.0
    %722 = vmatprep.subr.mxu0 0.0
    %723 = vmatpush1.msra.mxu0 0.0
    %724 = vmatprep.subr.mxu0 0.0
    %725 = vmatpush1.msra.mxu0 0.0
    %726 = vmatprep.subr.mxu0 0.0
    %727 = vmatpush1.msra.mxu0 0.0
    %728 = vmatprep.subr.mxu0 0.0
    %729 = vmatpush1.msra.mxu0 0.0
    %730 = vmatprep.subr.mxu0 0.0
    %731 = vmatpush1.msra.mxu0 0.0
    %732 = vmatprep.subr.mxu0 0.0
    %733 = vmatpush1.msra.mxu0 0.0
    %734 = vmatprep.subr.mxu0 0.0
    %735 = vmatpush1.msra.mxu0 0.0
    %736 = vmatprep.subr.mxu0 0.0
    %737 = vmatpush1.msra.mxu0 0.0
    %738 = vmatprep.subr.mxu0 0.0
    %739 = vmatpush1.msra.mxu0 0.0
    %740 = vmatprep.subr.mxu0 0.0
    %741 = vmatpush1.msra.mxu0 0.0
    %742 = vmatprep.subr.mxu0 0.0
    %743 = vmatpush1.msra.mxu0 0.0
    %744 = vmatprep.subr.mxu0 0.0
    %745 = vmatpush1.msra.mxu0 0.0
    %746 = vmatprep.subr.mxu0 0.0
    %747 = vmatpush1.msra.mxu0 0.0
    %748 = vmatprep.subr.mxu0 0.0
    %749 = vmatpush1.msra.mxu0 0.0
    %750 = vmatprep.subr.mxu0 0.0
    %751 = vmatpush1.msra.mxu0 0.0
    %752 = vmatprep.subr.mxu0 0.0
    %753 = vmatpush1.msra.mxu0 0.0
    %754 = vmatprep.subr.mxu0 0.0
    %755 = vmatpush1.msra.mxu0 0.0
    %756 = vmatprep.subr.mxu0 0.0
    %757 = vmatpush1.msra.mxu0 0.0
    %758 = vmatprep.subr.mxu0 0.0
    %759 = vmatpush1.msra.mxu0 0.0
    %760 = vmatprep.subr.mxu0 0.0
    %761 = vmatpush1.msra.mxu0 0.0
    %762 = vmatprep.subr.mxu0 0.0
    %763 = vmatpush1.msra.mxu0 0.0
    %764 = vmatprep.subr.mxu0 0.0
    %765 = vmatpush1.msra.mxu0 0.0
    %766 = vmatprep.subr.mxu0 0.0
    %767 = vmatpush1.msra.mxu0 0.0
    %768 = vmatprep.subr.mxu0 0.0
    %769 = vmatpush1.msra.mxu0 0.0
    %770 = vmatprep.subr.mxu0 0.0
    %771 = vmatpush1.msra.mxu0 0.0
    %772 = vmatprep.subr.mxu0 0.0
    %773 = vmatpush1.msra.mxu0 0.0
    %774 = vmatprep.mubr.f32.mxu0 0.0
    %775 = vmatmul.mubr.f32.gmra.mrb[0].mxu0 %v708
    %v776 = vpop.f32.mrb[0].mxu0
    %v777 = vadd.f32 0.0, %v776
    %v778 = vpop.f32.mrb[0].mxu0
    %779 = vdwg.mxu0
    %781 = vrot.lane.b32.xlu0 %v777, 16
    %v782 = vpop.permute.xlu0 %781
    %vm784 = vcmask 195712
    %785 = vst.msk [vmem:[#allocation2] sm:$0xff] %vm784, %v782
    %786 = vrot.lane.b32.xlu0 %v250, 104
    %v787 = vpop.permute.xlu0 %786
    %788 = vrot.lane.b32.xlu0 %v260, 72
    %v789 = vpop.permute.xlu0 %788
    %v790 = vsel %vm279, %v787, 0
    %v792 = vsel %vm279, %v789, 0
    %794 = vmatprep.subr.mxu0 0.0
    %795 = vmatpush1.xpose.msra.mxu0 %v792
    %796 = vmatprep.subr.mxu0 0.0
    %797 = vmatpush1.xpose.msra.mxu0 0.0
    %798 = vmatprep.subr.mxu0 0.0
    %799 = vmatpush1.xpose.msra.mxu0 0.0
    %800 = vmatprep.subr.mxu0 0.0
    %801 = vmatpush1.xpose.msra.mxu0 0.0
    %802 = vmatprep.subr.mxu0 0.0
    %803 = vmatpush1.xpose.msra.mxu0 0.0
    %804 = vmatprep.subr.mxu0 0.0
    %805 = vmatpush1.xpose.msra.mxu0 0.0
    %806 = vmatprep.subr.mxu0 0.0
    %807 = vmatpush1.xpose.msra.mxu0 0.0
    %808 = vmatprep.subr.mxu0 0.0
    %809 = vmatpush1.xpose.msra.mxu0 0.0
    %810 = vmatprep.subr.mxu0 0.0
    %811 = vmatpush1.xpose.msra.mxu0 0.0
    %812 = vmatprep.subr.mxu0 0.0
    %813 = vmatpush1.xpose.msra.mxu0 0.0
    %814 = vmatprep.subr.mxu0 0.0
    %815 = vmatpush1.xpose.msra.mxu0 0.0
    %816 = vmatprep.subr.mxu0 0.0
    %817 = vmatpush1.xpose.msra.mxu0 0.0
    %818 = vmatprep.subr.mxu0 0.0
    %819 = vmatpush1.xpose.msra.mxu0 0.0
    %820 = vmatprep.subr.mxu0 0.0
    %821 = vmatpush1.xpose.msra.mxu0 0.0
    %822 = vmatprep.subr.mxu0 0.0
    %823 = vmatpush1.xpose.msra.mxu0 0.0
    %824 = vmatprep.subr.mxu0 0.0
    %825 = vmatpush1.xpose.msra.mxu0 0.0
    %826 = vmatprep.subr.mxu0 0.0
    %827 = vmatpush1.xpose.msra.mxu0 0.0
    %828 = vmatprep.subr.mxu0 0.0
    %829 = vmatpush1.xpose.msra.mxu0 0.0
    %830 = vmatprep.subr.mxu0 0.0
    %831 = vmatpush1.xpose.msra.mxu0 0.0
    %832 = vmatprep.subr.mxu0 0.0
    %833 = vmatpush1.xpose.msra.mxu0 0.0
    %834 = vmatprep.subr.mxu0 0.0
    %835 = vmatpush1.xpose.msra.mxu0 0.0
    %836 = vmatprep.subr.mxu0 0.0
    %837 = vmatpush1.xpose.msra.mxu0 0.0
    %838 = vmatprep.subr.mxu0 0.0
    %839 = vmatpush1.xpose.msra.mxu0 0.0
    %840 = vmatprep.subr.mxu0 0.0
    %841 = vmatpush1.xpose.msra.mxu0 0.0
    %842 = vmatprep.subr.mxu0 0.0
    %843 = vmatpush1.xpose.msra.mxu0 0.0
    %844 = vmatprep.subr.mxu0 0.0
    %845 = vmatpush1.xpose.msra.mxu0 0.0
    %846 = vmatprep.subr.mxu0 0.0
    %847 = vmatpush1.xpose.msra.mxu0 0.0
    %848 = vmatprep.subr.mxu0 0.0
    %849 = vmatpush1.xpose.msra.mxu0 0.0
    %850 = vmatprep.subr.mxu0 0.0
    %851 = vmatpush1.xpose.msra.mxu0 0.0
    %852 = vmatprep.subr.mxu0 0.0
    %853 = vmatpush1.xpose.msra.mxu0 0.0
    %854 = vmatprep.subr.mxu0 0.0
    %855 = vmatpush1.xpose.msra.mxu0 0.0
    %856 = vmatprep.subr.mxu0 0.0
    %857 = vmatpush1.xpose.msra.mxu0 0.0
    %858 = vmatprep.mubr.f32.mxu0 0.0
    %859 = vmatmul.mubr.f32.gmra.mrb[0].mxu0 %v790
    %v860 = vpop.f32.mrb[0].mxu0
    %v861 = vadd.f32 %v275, %v860
    %v862 = vpop.f32.mrb[0].mxu0
    %863 = vdwg.mxu0
    %v864 = vsel %vm279, %v861, -inf
    %865 = vmax.xlane.f32.xlu0 %v864
    %v866 = vpop.xlane.xlu0 %865
    %v867 = vsub.f32 %v861, %v866
    %v868 = vmul.f32 %v867, 1.442695
    %v869 = vpow.pop %v868
    %v870 = vsel %vm279, %v869, 0.0
    %871 = vadd.xlane.f32.xlu0 %v870
    %v872 = vpop.xlane.xlu0 %871
    %v873 = vrcp.pop %v872
    %v874 = vmul.f32 %v869, %v873
    %875 = vrot.lane.b32.xlu0 %v270, 40
    %v876 = vpop.permute.xlu0 %875
    %v879 = vsel %vm279, %v874, 0
    %881 = vmatprep.subr.mxu0 0.0
    %882 = vmatpush1.msra.mxu0 %v876
    %883 = vmatprep.subr.mxu0 0.0
    %884 = vmatpush1.msra.mxu0 0.0
    %885 = vmatprep.subr.mxu0 0.0
    %886 = vmatpush1.msra.mxu0 0.0
    %887 = vmatprep.subr.mxu0 0.0
    %888 = vmatpush1.msra.mxu0 0.0
    %889 = vmatprep.subr.mxu0 0.0
    %890 = vmatpush1.msra.mxu0 0.0
    %891 = vmatprep.subr.mxu0 0.0
    %892 = vmatpush1.msra.mxu0 0.0
    %893 = vmatprep.subr.mxu0 0.0
    %894 = vmatpush1.msra.mxu0 0.0
    %895 = vmatprep.subr.mxu0 0.0
    %896 = vmatpush1.msra.mxu0 0.0
    %897 = vmatprep.subr.mxu0 0.0
    %898 = vmatpush1.msra.mxu0 0.0
    %899 = vmatprep.subr.mxu0 0.0
    %900 = vmatpush1.msra.mxu0 0.0
    %901 = vmatprep.subr.mxu0 0.0
    %902 = vmatpush1.msra.mxu0 0.0
    %903 = vmatprep.subr.mxu0 0.0
    %904 = vmatpush1.msra.mxu0 0.0
    %905 = vmatprep.subr.mxu0 0.0
    %906 = vmatpush1.msra.mxu0 0.0
    %907 = vmatprep.subr.mxu0 0.0
    %908 = vmatpush1.msra.mxu0 0.0
    %909 = vmatprep.subr.mxu0 0.0
    %910 = vmatpush1.msra.mxu0 0.0
    %911 = vmatprep.subr.mxu0 0.0
    %912 = vmatpush1.msra.mxu0 0.0
    %913 = vmatprep.subr.mxu0 0.0
    %914 = vmatpush1.msra.mxu0 0.0
    %915 = vmatprep.subr.mxu0 0.0
    %916 = vmatpush1.msra.mxu0 0.0
    %917 = vmatprep.subr.mxu0 0.0
    %918 = vmatpush1.msra.mxu0 0.0
    %919 = vmatprep.subr.mxu0 0.0
    %920 = vmatpush1.msra.mxu0 0.0
    %921 = vmatprep.subr.mxu0 0.0
    %922 = vmatpush1.msra.mxu0 0.0
    %923 = vmatprep.subr.mxu0 0.0
    %924 = vmatpush1.msra.mxu0 0.0
    %925 = vmatprep.subr.mxu0 0.0
    %926 = vmatpush1.msra.mxu0 0.0
    %927 = vmatprep.subr.mxu0 0.0
    %928 = vmatpush1.msra.mxu0 0.0
    %929 = vmatprep.subr.mxu0 0.0
    %930 = vmatpush1.msra.mxu0 0.0
    %931 = vmatprep.subr.mxu0 0.0
    %932 = vmatpush1.msra.mxu0 0.0
    %933 = vmatprep.subr.mxu0 0.0
    %934 = vmatpush1.msra.mxu0 0.0
    %935 = vmatprep.subr.mxu0 0.0
    %936 = vmatpush1.msra.mxu0 0.0
    %937 = vmatprep.subr.mxu0 0.0
    %938 = vmatpush1.msra.mxu0 0.0
    %939 = vmatprep.subr.mxu0 0.0
    %940 = vmatpush1.msra.mxu0 0.0
    %941 = vmatprep.subr.mxu0 0.0
    %942 = vmatpush1.msra.mxu0 0.0
    %943 = vmatprep.subr.mxu0 0.0
    %944 = vmatpush1.msra.mxu0 0.0
    %945 = vmatprep.mubr.f32.mxu0 0.0
    %946 = vmatmul.mubr.f32.gmra.mrb[0].mxu0 %v879
    %v947 = vpop.f32.mrb[0].mxu0
    %v948 = vadd.f32 0.0, %v947
    %v949 = vpop.f32.mrb[0].mxu0
    %950 = vdwg.mxu0
    %952 = vrot.lane.b32.xlu0 %v948, 24
    %v953 = vpop.permute.xlu0 %952
    %vm955 = vcmask 261312
    %956 = vst.msk [vmem:[#allocation2] sm:$0xff] %vm955, %v953
    %v957 = vlaneseq
    %v958 = vshrl.u32 %v957, 7
    %v959 = vsub.s32 1, %v958
    %v960 = vrot.slane %v155, %v959
    %962 = vrot.lane.b32.xlu0 %v261, 96
    %v963 = vpop.permute.xlu0 %962
    %v965 = vsel %vm279, %v251, 0
    %v967 = vsel %vm279, %v963, 0
    %969 = vmatprep.subr.mxu0 0.0
    %970 = vmatpush1.xpose.msra.mxu0 %v967
    %971 = vmatprep.subr.mxu0 0.0
    %972 = vmatpush1.xpose.msra.mxu0 0.0
    %973 = vmatprep.subr.mxu0 0.0
    %974 = vmatpush1.xpose.msra.mxu0 0.0
    %975 = vmatprep.subr.mxu0 0.0
    %976 = vmatpush1.xpose.msra.mxu0 0.0
    %977 = vmatprep.subr.mxu0 0.0
    %978 = vmatpush1.xpose.msra.mxu0 0.0
    %979 = vmatprep.subr.mxu0 0.0
    %980 = vmatpush1.xpose.msra.mxu0 0.0
    %981 = vmatprep.subr.mxu0 0.0
    %982 = vmatpush1.xpose.msra.mxu0 0.0
    %983 = vmatprep.subr.mxu0 0.0
    %984 = vmatpush1.xpose.msra.mxu0 0.0
    %985 = vmatprep.subr.mxu0 0.0
    %986 = vmatpush1.xpose.msra.mxu0 0.0
    %987 = vmatprep.subr.mxu0 0.0
    %988 = vmatpush1.xpose.msra.mxu0 0.0
    %989 = vmatprep.subr.mxu0 0.0
    %990 = vmatpush1.xpose.msra.mxu0 0.0
    %991 = vmatprep.subr.mxu0 0.0
    %992 = vmatpush1.xpose.msra.mxu0 0.0
    %993 = vmatprep.subr.mxu0 0.0
    %994 = vmatpush1.xpose.msra.mxu0 0.0
    %995 = vmatprep.subr.mxu0 0.0
    %996 = vmatpush1.xpose.msra.mxu0 0.0
    %997 = vmatprep.subr.mxu0 0.0
    %998 = vmatpush1.xpose.msra.mxu0 0.0
    %999 = vmatprep.subr.mxu0 0.0
    %1000 = vmatpush1.xpose.msra.mxu0 0.0
    %1001 = vmatprep.subr.mxu0 0.0
    %1002 = vmatpush1.xpose.msra.mxu0 0.0
    %1003 = vmatprep.subr.mxu0 0.0
    %1004 = vmatpush1.xpose.msra.mxu0 0.0
    %1005 = vmatprep.subr.mxu0 0.0
    %1006 = vmatpush1.xpose.msra.mxu0 0.0
    %1007 = vmatprep.subr.mxu0 0.0
    %1008 = vmatpush1.xpose.msra.mxu0 0.0
    %1009 = vmatprep.subr.mxu0 0.0
    %1010 = vmatpush1.xpose.msra.mxu0 0.0
    %1011 = vmatprep.subr.mxu0 0.0
    %1012 = vmatpush1.xpose.msra.mxu0 0.0
    %1013 = vmatprep.subr.mxu0 0.0
    %1014 = vmatpush1.xpose.msra.mxu0 0.0
    %1015 = vmatprep.subr.mxu0 0.0
    %1016 = vmatpush1.xpose.msra.mxu0 0.0
    %1017 = vmatprep.subr.mxu0 0.0
    %1018 = vmatpush1.xpose.msra.mxu0 0.0
    %1019 = vmatprep.subr.mxu0 0.0
    %1020 = vmatpush1.xpose.msra.mxu0 0.0
    %1021 = vmatprep.subr.mxu0 0.0
    %1022 = vmatpush1.xpose.msra.mxu0 0.0
    %1023 = vmatprep.subr.mxu0 0.0
    %1024 = vmatpush1.xpose.msra.mxu0 0.0
    %1025 = vmatprep.subr.mxu0 0.0
    %1026 = vmatpush1.xpose.msra.mxu0 0.0
    %1027 = vmatprep.subr.mxu0 0.0
    %1028 = vmatpush1.xpose.msra.mxu0 0.0
    %1029 = vmatprep.subr.mxu0 0.0
    %1030 = vmatpush1.xpose.msra.mxu0 0.0
    %1031 = vmatprep.subr.mxu0 0.0
    %1032 = vmatpush1.xpose.msra.mxu0 0.0
    %1033 = vmatprep.mubr.f32.mxu0 0.0
    %1034 = vmatmul.mubr.f32.gmra.mrb[0].mxu0 %v965
    %v1035 = vpop.f32.mrb[0].mxu0
    %v1036 = vadd.f32 %v960, %v1035
    %v1037 = vpop.f32.mrb[0].mxu0
    %1038 = vdwg.mxu0
    %v1039 = vsel %vm279, %v1036, -inf
    %1040 = vmax.xlane.f32.xlu0 %v1039
    %v1041 = vpop.xlane.xlu0 %1040
    %v1042 = vsub.f32 %v1036, %v1041
    %v1043 = vmul.f32 %v1042, 1.442695
    %v1044 = vpow.pop %v1043
    %v1045 = vsel %vm279, %v1044, 0.0
    %1046 = vadd.xlane.f32.xlu0 %v1045
    %v1047 = vpop.xlane.xlu0 %1046
    %v1048 = vrcp.pop %v1047
    %v1049 = vmul.f32 %v1044, %v1048
    %1051 = vrot.lane.b32.xlu0 %v271, 64
    %v1052 = vpop.permute.xlu0 %1051
    %v1055 = vsel %vm279, %v1049, 0
    %1057 = vmatprep.subr.mxu0 0.0
    %1058 = vmatpush1.msra.mxu0 %v1052
    %1059 = vmatprep.subr.mxu0 0.0
    %1060 = vmatpush1.msra.mxu0 0.0
    %1061 = vmatprep.subr.mxu0 0.0
    %1062 = vmatpush1.msra.mxu0 0.0
    %1063 = vmatprep.subr.mxu0 0.0
    %1064 = vmatpush1.msra.mxu0 0.0
    %1065 = vmatprep.subr.mxu0 0.0
    %1066 = vmatpush1.msra.mxu0 0.0
    %1067 = vmatprep.subr.mxu0 0.0
    %1068 = vmatpush1.msra.mxu0 0.0
    %1069 = vmatprep.subr.mxu0 0.0
    %1070 = vmatpush1.msra.mxu0 0.0
    %1071 = vmatprep.subr.mxu0 0.0
    %1072 = vmatpush1.msra.mxu0 0.0
    %1073 = vmatprep.subr.mxu0 0.0
    %1074 = vmatpush1.msra.mxu0 0.0
    %1075 = vmatprep.subr.mxu0 0.0
    %1076 = vmatpush1.msra.mxu0 0.0
    %1077 = vmatprep.subr.mxu0 0.0
    %1078 = vmatpush1.msra.mxu0 0.0
    %1079 = vmatprep.subr.mxu0 0.0
    %1080 = vmatpush1.msra.mxu0 0.0
    %1081 = vmatprep.subr.mxu0 0.0
    %1082 = vmatpush1.msra.mxu0 0.0
    %1083 = vmatprep.subr.mxu0 0.0
    %1084 = vmatpush1.msra.mxu0 0.0
    %1085 = vmatprep.subr.mxu0 0.0
    %1086 = vmatpush1.msra.mxu0 0.0
    %1087 = vmatprep.subr.mxu0 0.0
    %1088 = vmatpush1.msra.mxu0 0.0
    %1089 = vmatprep.subr.mxu0 0.0
    %1090 = vmatpush1.msra.mxu0 0.0
    %1091 = vmatprep.subr.mxu0 0.0
    %1092 = vmatpush1.msra.mxu0 0.0
    %1093 = vmatprep.subr.mxu0 0.0
    %1094 = vmatpush1.msra.mxu0 0.0
    %1095 = vmatprep.subr.mxu0 0.0
    %1096 = vmatpush1.msra.mxu0 0.0
    %1097 = vmatprep.subr.mxu0 0.0
    %1098 = vmatpush1.msra.mxu0 0.0
    %1099 = vmatprep.subr.mxu0 0.0
    %1100 = vmatpush1.msra.mxu0 0.0
    %1101 = vmatprep.subr.mxu0 0.0
    %1102 = vmatpush1.msra.mxu0 0.0
    %1103 = vmatprep.subr.mxu0 0.0
    %1104 = vmatpush1.msra.mxu0 0.0
    %1105 = vmatprep.subr.mxu0 0.0
    %1106 = vmatpush1.msra.mxu0 0.0
    %1107 = vmatprep.subr.mxu0 0.0
    %1108 = vmatpush1.msra.mxu0 0.0
    %1109 = vmatprep.subr.mxu0 0.0
    %1110 = vmatpush1.msra.mxu0 0.0
    %1111 = vmatprep.subr.mxu0 0.0
    %1112 = vmatpush1.msra.mxu0 0.0
    %1113 = vmatprep.subr.mxu0 0.0
    %1114 = vmatpush1.msra.mxu0 0.0
    %1115 = vmatprep.subr.mxu0 0.0
    %1116 = vmatpush1.msra.mxu0 0.0
    %1117 = vmatprep.subr.mxu0 0.0
    %1118 = vmatpush1.msra.mxu0 0.0
    %1119 = vmatprep.subr.mxu0 0.0
    %1120 = vmatpush1.msra.mxu0 0.0
    %1121 = vmatprep.mubr.f32.mxu0 0.0
    %1122 = vmatmul.mubr.f32.gmra.mrb[0].mxu0 %v1055
    %v1123 = vpop.f32.mrb[0].mxu0
    %v1124 = vadd.f32 0.0, %v1123
    %v1125 = vpop.f32.mrb[0].mxu0
    %1126 = vdwg.mxu0
    %1127 = vst.msk [vmem:[#allocation2 + $0x8] sm:$0xff] %vm279, %v1124
    %1128 = vrot.lane.b32.xlu0 %v251, 120
    %v1129 = vpop.permute.xlu0 %1128
    %1130 = vrot.lane.b32.xlu0 %v261, 88
    %v1131 = vpop.permute.xlu0 %1130
    %v1132 = vsel %vm279, %v1129, 0
    %v1134 = vsel %vm279, %v1131, 0
    %1136 = vmatprep.subr.mxu0 0.0
    %1137 = vmatpush1.xpose.msra.mxu0 %v1134
    %1138 = vmatprep.subr.mxu0 0.0
    %1139 = vmatpush1.xpose.msra.mxu0 0.0
    %1140 = vmatprep.subr.mxu0 0.0
    %1141 = vmatpush1.xpose.msra.mxu0 0.0
    %1142 = vmatprep.subr.mxu0 0.0
    %1143 = vmatpush1.xpose.msra.mxu0 0.0
    %1144 = vmatprep.subr.mxu0 0.0
    %1145 = vmatpush1.xpose.msra.mxu0 0.0
    %1146 = vmatprep.subr.mxu0 0.0
    %1147 = vmatpush1.xpose.msra.mxu0 0.0
    %1148 = vmatprep.subr.mxu0 0.0
    %1149 = vmatpush1.xpose.msra.mxu0 0.0
    %1150 = vmatprep.subr.mxu0 0.0
    %1151 = vmatpush1.xpose.msra.mxu0 0.0
    %1152 = vmatprep.subr.mxu0 0.0
    %1153 = vmatpush1.xpose.msra.mxu0 0.0
    %1154 = vmatprep.subr.mxu0 0.0
    %1155 = vmatpush1.xpose.msra.mxu0 0.0
    %1156 = vmatprep.subr.mxu0 0.0
    %1157 = vmatpush1.xpose.msra.mxu0 0.0
    %1158 = vmatprep.subr.mxu0 0.0
    %1159 = vmatpush1.xpose.msra.mxu0 0.0
    %1160 = vmatprep.subr.mxu0 0.0
    %1161 = vmatpush1.xpose.msra.mxu0 0.0
    %1162 = vmatprep.subr.mxu0 0.0
    %1163 = vmatpush1.xpose.msra.mxu0 0.0
    %1164 = vmatprep.subr.mxu0 0.0
    %1165 = vmatpush1.xpose.msra.mxu0 0.0
    %1166 = vmatprep.subr.mxu0 0.0
    %1167 = vmatpush1.xpose.msra.mxu0 0.0
    %1168 = vmatprep.subr.mxu0 0.0
    %1169 = vmatpush1.xpose.msra.mxu0 0.0
    %1170 = vmatprep.subr.mxu0 0.0
    %1171 = vmatpush1.xpose.msra.mxu0 0.0
    %1172 = vmatprep.subr.mxu0 0.0
    %1173 = vmatpush1.xpose.msra.mxu0 0.0
    %1174 = vmatprep.subr.mxu0 0.0
    %1175 = vmatpush1.xpose.msra.mxu0 0.0
    %1176 = vmatprep.subr.mxu0 0.0
    %1177 = vmatpush1.xpose.msra.mxu0 0.0
    %1178 = vmatprep.subr.mxu0 0.0
    %1179 = vmatpush1.xpose.msra.mxu0 0.0
    %1180 = vmatprep.subr.mxu0 0.0
    %1181 = vmatpush1.xpose.msra.mxu0 0.0
    %1182 = vmatprep.subr.mxu0 0.0
    %1183 = vmatpush1.xpose.msra.mxu0 0.0
    %1184 = vmatprep.subr.mxu0 0.0
    %1185 = vmatpush1.xpose.msra.mxu0 0.0
    %1186 = vmatprep.subr.mxu0 0.0
    %1187 = vmatpush1.xpose.msra.mxu0 0.0
    %1188 = vmatprep.subr.mxu0 0.0
    %1189 = vmatpush1.xpose.msra.mxu0 0.0
    %1190 = vmatprep.subr.mxu0 0.0
    %1191 = vmatpush1.xpose.msra.mxu0 0.0
    %1192 = vmatprep.subr.mxu0 0.0
    %1193 = vmatpush1.xpose.msra.mxu0 0.0
    %1194 = vmatprep.subr.mxu0 0.0
    %1195 = vmatpush1.xpose.msra.mxu0 0.0
    %1196 = vmatprep.subr.mxu0 0.0
    %1197 = vmatpush1.xpose.msra.mxu0 0.0
    %1198 = vmatprep.subr.mxu0 0.0
    %1199 = vmatpush1.xpose.msra.mxu0 0.0
    %1200 = vmatprep.mubr.f32.mxu0 0.0
    %1201 = vmatmul.mubr.f32.gmra.mrb[0].mxu0 %v1132
    %v1202 = vpop.f32.mrb[0].mxu0
    %v1203 = vadd.f32 %v960, %v1202
    %v1204 = vpop.f32.mrb[0].mxu0
    %1205 = vdwg.mxu0
    %v1206 = vsel %vm279, %v1203, -inf
    %1207 = vmax.xlane.f32.xlu0 %v1206
    %v1208 = vpop.xlane.xlu0 %1207
    %v1209 = vsub.f32 %v1203, %v1208
    %v1210 = vmul.f32 %v1209, 1.442695
    %v1211 = vpow.pop %v1210
    %v1212 = vsel %vm279, %v1211, 0.0
    %1213 = vadd.xlane.f32.xlu0 %v1212
    %v1214 = vpop.xlane.xlu0 %1213
    %v1215 = vrcp.pop %v1214
    %v1216 = vmul.f32 %v1211, %v1215
    %1217 = vrot.lane.b32.xlu0 %v271, 56
    %v1218 = vpop.permute.xlu0 %1217
    %v1221 = vsel %vm279, %v1216, 0
    %1223 = vmatprep.subr.mxu0 0.0
    %1224 = vmatpush1.msra.mxu0 %v1218
    %1225 = vmatprep.subr.mxu0 0.0
    %1226 = vmatpush1.msra.mxu0 0.0
    %1227 = vmatprep.subr.mxu0 0.0
    %1228 = vmatpush1.msra.mxu0 0.0
    %1229 = vmatprep.subr.mxu0 0.0
    %1230 = vmatpush1.msra.mxu0 0.0
    %1231 = vmatprep.subr.mxu0 0.0
    %1232 = vmatpush1.msra.mxu0 0.0
    %1233 = vmatprep.subr.mxu0 0.0
    %1234 = vmatpush1.msra.mxu0 0.0
    %1235 = vmatprep.subr.mxu0 0.0
    %1236 = vmatpush1.msra.mxu0 0.0
    %1237 = vmatprep.subr.mxu0 0.0
    %1238 = vmatpush1.msra.mxu0 0.0
    %1239 = vmatprep.subr.mxu0 0.0
    %1240 = vmatpush1.msra.mxu0 0.0
    %1241 = vmatprep.subr.mxu0 0.0
    %1242 = vmatpush1.msra.mxu0 0.0
    %1243 = vmatprep.subr.mxu0 0.0
    %1244 = vmatpush1.msra.mxu0 0.0
    %1245 = vmatprep.subr.mxu0 0.0
    %1246 = vmatpush1.msra.mxu0 0.0
    %1247 = vmatprep.subr.mxu0 0.0
    %1248 = vmatpush1.msra.mxu0 0.0
    %1249 = vmatprep.subr.mxu0 0.0
    %1250 = vmatpush1.msra.mxu0 0.0
    %1251 = vmatprep.subr.mxu0 0.0
    %1252 = vmatpush1.msra.mxu0 0.0
    %1253 = vmatprep.subr.mxu0 0.0
    %1254 = vmatpush1.msra.mxu0 0.0
    %1255 = vmatprep.subr.mxu0 0.0
    %1256 = vmatpush1.msra.mxu0 0.0
    %1257 = vmatprep.subr.mxu0 0.0
    %1258 = vmatpush1.msra.mxu0 0.0
    %1259 = vmatprep.subr.mxu0 0.0
    %1260 = vmatpush1.msra.mxu0 0.0
    %1261 = vmatprep.subr.mxu0 0.0
    %1262 = vmatpush1.msra.mxu0 0.0
    %1263 = vmatprep.subr.mxu0 0.0
    %1264 = vmatpush1.msra.mxu0 0.0
    %1265 = vmatprep.subr.mxu0 0.0
    %1266 = vmatpush1.msra.mxu0 0.0
    %1267 = vmatprep.subr.mxu0 0.0
    %1268 = vmatpush1.msra.mxu0 0.0
    %1269 = vmatprep.subr.mxu0 0.0
    %1270 = vmatpush1.msra.mxu0 0.0
    %1271 = vmatprep.subr.mxu0 0.0
    %1272 = vmatpush1.msra.mxu0 0.0
    %1273 = vmatprep.subr.mxu0 0.0
    %1274 = vmatpush1.msra.mxu0 0.0
    %1275 = vmatprep.subr.mxu0 0.0
    %1276 = vmatpush1.msra.mxu0 0.0
    %1277 = vmatprep.subr.mxu0 0.0
    %1278 = vmatpush1.msra.mxu0 0.0
    %1279 = vmatprep.subr.mxu0 0.0
    %1280 = vmatpush1.msra.mxu0 0.0
    %1281 = vmatprep.subr.mxu0 0.0
    %1282 = vmatpush1.msra.mxu0 0.0
    %1283 = vmatprep.subr.mxu0 0.0
    %1284 = vmatpush1.msra.mxu0 0.0
    %1285 = vmatprep.subr.mxu0 0.0
    %1286 = vmatpush1.msra.mxu0 0.0
    %1287 = vmatprep.mubr.f32.mxu0 0.0
    %1288 = vmatmul.mubr.f32.gmra.mrb[0].mxu0 %v1221
    %v1289 = vpop.f32.mrb[0].mxu0
    %v1290 = vadd.f32 0.0, %v1289
    %v1291 = vpop.f32.mrb[0].mxu0
    %1292 = vdwg.mxu0
    %1294 = vrot.lane.b32.xlu0 %v1290, 8
    %v1295 = vpop.permute.xlu0 %1294
    %1297 = vst.msk [vmem:[#allocation2 + $0x8] sm:$0xff] %vm613, %v1295
    %1298 = vrot.lane.b32.xlu0 %v251, 112
    %v1299 = vpop.permute.xlu0 %1298
    %1300 = vrot.lane.b32.xlu0 %v261, 80
    %v1301 = vpop.permute.xlu0 %1300
    %v1302 = vsel %vm279, %v1299, 0
    %v1304 = vsel %vm279, %v1301, 0
    %1306 = vmatprep.subr.mxu0 0.0
    %1307 = vmatpush1.xpose.msra.mxu0 %v1304
    %1308 = vmatprep.subr.mxu0 0.0
    %1309 = vmatpush1.xpose.msra.mxu0 0.0
    %1310 = vmatprep.subr.mxu0 0.0
    %1311 = vmatpush1.xpose.msra.mxu0 0.0
    %1312 = vmatprep.subr.mxu0 0.0
    %1313 = vmatpush1.xpose.msra.mxu0 0.0
    %1314 = vmatprep.subr.mxu0 0.0
    %1315 = vmatpush1.xpose.msra.mxu0 0.0
    %1316 = vmatprep.subr.mxu0 0.0
    %1317 = vmatpush1.xpose.msra.mxu0 0.0
    %1318 = vmatprep.subr.mxu0 0.0
    %1319 = vmatpush1.xpose.msra.mxu0 0.0
    %1320 = vmatprep.subr.mxu0 0.0
    %1321 = vmatpush1.xpose.msra.mxu0 0.0
    %1322 = vmatprep.subr.mxu0 0.0
    %1323 = vmatpush1.xpose.msra.mxu0 0.0
    %1324 = vmatprep.subr.mxu0 0.0
    %1325 = vmatpush1.xpose.msra.mxu0 0.0
    %1326 = vmatprep.subr.mxu0 0.0
    %1327 = vmatpush1.xpose.msra.mxu0 0.0
    %1328 = vmatprep.subr.mxu0 0.0
    %1329 = vmatpush1.xpose.msra.mxu0 0.0
    %1330 = vmatprep.subr.mxu0 0.0
    %1331 = vmatpush1.xpose.msra.mxu0 0.0
    %1332 = vmatprep.subr.mxu0 0.0
    %1333 = vmatpush1.xpose.msra.mxu0 0.0
    %1334 = vmatprep.subr.mxu0 0.0
    %1335 = vmatpush1.xpose.msra.mxu0 0.0
    %1336 = vmatprep.subr.mxu0 0.0
    %1337 = vmatpush1.xpose.msra.mxu0 0.0
    %1338 = vmatprep.subr.mxu0 0.0
    %1339 = vmatpush1.xpose.msra.mxu0 0.0
    %1340 = vmatprep.subr.mxu0 0.0
    %1341 = vmatpush1.xpose.msra.mxu0 0.0
    %1342 = vmatprep.subr.mxu0 0.0
    %1343 = vmatpush1.xpose.msra.mxu0 0.0
    %1344 = vmatprep.subr.mxu0 0.0
    %1345 = vmatpush1.xpose.msra.mxu0 0.0
    %1346 = vmatprep.subr.mxu0 0.0
    %1347 = vmatpush1.xpose.msra.mxu0 0.0
    %1348 = vmatprep.subr.mxu0 0.0
    %1349 = vmatpush1.xpose.msra.mxu0 0.0
    %1350 = vmatprep.subr.mxu0 0.0
    %1351 = vmatpush1.xpose.msra.mxu0 0.0
    %1352 = vmatprep.subr.mxu0 0.0
    %1353 = vmatpush1.xpose.msra.mxu0 0.0
    %1354 = vmatprep.subr.mxu0 0.0
    %1355 = vmatpush1.xpose.msra.mxu0 0.0
    %1356 = vmatprep.subr.mxu0 0.0
    %1357 = vmatpush1.xpose.msra.mxu0 0.0
    %1358 = vmatprep.subr.mxu0 0.0
    %1359 = vmatpush1.xpose.msra.mxu0 0.0
    %1360 = vmatprep.subr.mxu0 0.0
    %1361 = vmatpush1.xpose.msra.mxu0 0.0
    %1362 = vmatprep.subr.mxu0 0.0
    %1363 = vmatpush1.xpose.msra.mxu0 0.0
    %1364 = vmatprep.subr.mxu0 0.0
    %1365 = vmatpush1.xpose.msra.mxu0 0.0
    %1366 = vmatprep.subr.mxu0 0.0
    %1367 = vmatpush1.xpose.msra.mxu0 0.0
    %1368 = vmatprep.subr.mxu0 0.0
    %1369 = vmatpush1.xpose.msra.mxu0 0.0
    %1370 = vmatprep.mubr.f32.mxu0 0.0
    %1371 = vmatmul.mubr.f32.gmra.mrb[0].mxu0 %v1302
    %v1372 = vpop.f32.mrb[0].mxu0
    %v1373 = vadd.f32 %v960, %v1372
    %v1374 = vpop.f32.mrb[0].mxu0
    %1375 = vdwg.mxu0
    %v1376 = vsel %vm279, %v1373, -inf
    %1377 = vmax.xlane.f32.xlu0 %v1376
    %v1378 = vpop.xlane.xlu0 %1377
    %v1379 = vsub.f32 %v1373, %v1378
    %v1380 = vmul.f32 %v1379, 1.442695
    %v1381 = vpow.pop %v1380
    %v1382 = vsel %vm279, %v1381, 0.0
    %1383 = vadd.xlane.f32.xlu0 %v1382
    %v1384 = vpop.xlane.xlu0 %1383
    %v1385 = vrcp.pop %v1384
    %v1386 = vmul.f32 %v1381, %v1385
    %1387 = vrot.lane.b32.xlu0 %v271, 48
    %v1388 = vpop.permute.xlu0 %1387
    %v1391 = vsel %vm279, %v1386, 0
    %1393 = vmatprep.subr.mxu0 0.0
    %1394 = vmatpush1.msra.mxu0 %v1388
    %1395 = vmatprep.subr.mxu0 0.0
    %1396 = vmatpush1.msra.mxu0 0.0
    %1397 = vmatprep.subr.mxu0 0.0
    %1398 = vmatpush1.msra.mxu0 0.0
    %1399 = vmatprep.subr.mxu0 0.0
    %1400 = vmatpush1.msra.mxu0 0.0
    %1401 = vmatprep.subr.mxu0 0.0
    %1402 = vmatpush1.msra.mxu0 0.0
    %1403 = vmatprep.subr.mxu0 0.0
    %1404 = vmatpush1.msra.mxu0 0.0
    %1405 = vmatprep.subr.mxu0 0.0
    %1406 = vmatpush1.msra.mxu0 0.0
    %1407 = vmatprep.subr.mxu0 0.0
    %1408 = vmatpush1.msra.mxu0 0.0
    %1409 = vmatprep.subr.mxu0 0.0
    %1410 = vmatpush1.msra.mxu0 0.0
    %1411 = vmatprep.subr.mxu0 0.0
    %1412 = vmatpush1.msra.mxu0 0.0
    %1413 = vmatprep.subr.mxu0 0.0
    %1414 = vmatpush1.msra.mxu0 0.0
    %1415 = vmatprep.subr.mxu0 0.0
    %1416 = vmatpush1.msra.mxu0 0.0
    %1417 = vmatprep.subr.mxu0 0.0
    %1418 = vmatpush1.msra.mxu0 0.0
    %1419 = vmatprep.subr.mxu0 0.0
    %1420 = vmatpush1.msra.mxu0 0.0
    %1421 = vmatprep.subr.mxu0 0.0
    %1422 = vmatpush1.msra.mxu0 0.0
    %1423 = vmatprep.subr.mxu0 0.0
    %1424 = vmatpush1.msra.mxu0 0.0
    %1425 = vmatprep.subr.mxu0 0.0
    %1426 = vmatpush1.msra.mxu0 0.0
    %1427 = vmatprep.subr.mxu0 0.0
    %1428 = vmatpush1.msra.mxu0 0.0
    %1429 = vmatprep.subr.mxu0 0.0
    %1430 = vmatpush1.msra.mxu0 0.0
    %1431 = vmatprep.subr.mxu0 0.0
    %1432 = vmatpush1.msra.mxu0 0.0
    %1433 = vmatprep.subr.mxu0 0.0
    %1434 = vmatpush1.msra.mxu0 0.0
    %1435 = vmatprep.subr.mxu0 0.0
    %1436 = vmatpush1.msra.mxu0 0.0
    %1437 = vmatprep.subr.mxu0 0.0
    %1438 = vmatpush1.msra.mxu0 0.0
    %1439 = vmatprep.subr.mxu0 0.0
    %1440 = vmatpush1.msra.mxu0 0.0
    %1441 = vmatprep.subr.mxu0 0.0
    %1442 = vmatpush1.msra.mxu0 0.0
    %1443 = vmatprep.subr.mxu0 0.0
    %1444 = vmatpush1.msra.mxu0 0.0
    %1445 = vmatprep.subr.mxu0 0.0
    %1446 = vmatpush1.msra.mxu0 0.0
    %1447 = vmatprep.subr.mxu0 0.0
    %1448 = vmatpush1.msra.mxu0 0.0
    %1449 = vmatprep.subr.mxu0 0.0
    %1450 = vmatpush1.msra.mxu0 0.0
    %1451 = vmatprep.subr.mxu0 0.0
    %1452 = vmatpush1.msra.mxu0 0.0
    %1453 = vmatprep.subr.mxu0 0.0
    %1454 = vmatpush1.msra.mxu0 0.0
    %1455 = vmatprep.subr.mxu0 0.0
    %1456 = vmatpush1.msra.mxu0 0.0
    %1457 = vmatprep.mubr.f32.mxu0 0.0
    %1458 = vmatmul.mubr.f32.gmra.mrb[0].mxu0 %v1391
    %v1459 = vpop.f32.mrb[0].mxu0
    %v1460 = vadd.f32 0.0, %v1459
    %v1461 = vpop.f32.mrb[0].mxu0
    %1462 = vdwg.mxu0
    %1464 = vrot.lane.b32.xlu0 %v1460, 16
    %v1465 = vpop.permute.xlu0 %1464
    %1467 = vst.msk [vmem:[#allocation2 + $0x8] sm:$0xff] %vm784, %v1465
    %1468 = vrot.lane.b32.xlu0 %v251, 104
    %v1469 = vpop.permute.xlu0 %1468
    %1470 = vrot.lane.b32.xlu0 %v261, 72
    %v1471 = vpop.permute.xlu0 %1470
    %v1472 = vsel %vm279, %v1469, 0
    %v1474 = vsel %vm279, %v1471, 0
    %1476 = vmatprep.subr.mxu0 0.0
    %1477 = vmatpush1.xpose.msra.mxu0 %v1474
    %1478 = vmatprep.subr.mxu0 0.0
    %1479 = vmatpush1.xpose.msra.mxu0 0.0
    %1480 = vmatprep.subr.mxu0 0.0
    %1481 = vmatpush1.xpose.msra.mxu0 0.0
    %1482 = vmatprep.subr.mxu0 0.0
    %1483 = vmatpush1.xpose.msra.mxu0 0.0
    %1484 = vmatprep.subr.mxu0 0.0
    %1485 = vmatpush1.xpose.msra.mxu0 0.0
    %1486 = vmatprep.subr.mxu0 0.0
    %1487 = vmatpush1.xpose.msra.mxu0 0.0
    %1488 = vmatprep.subr.mxu0 0.0
    %1489 = vmatpush1.xpose.msra.mxu0 0.0
    %1490 = vmatprep.subr.mxu0 0.0
    %1491 = vmatpush1.xpose.msra.mxu0 0.0
    %1492 = vmatprep.subr.mxu0 0.0
    %1493 = vmatpush1.xpose.msra.mxu0 0.0
    %1494 = vmatprep.subr.mxu0 0.0
    %1495 = vmatpush1.xpose.msra.mxu0 0.0
    %1496 = vmatprep.subr.mxu0 0.0
    %1497 = vmatpush1.xpose.msra.mxu0 0.0
    %1498 = vmatprep.subr.mxu0 0.0
    %1499 = vmatpush1.xpose.msra.mxu0 0.0
    %1500 = vmatprep.subr.mxu0 0.0
    %1501 = vmatpush1.xpose.msra.mxu0 0.0
    %1502 = vmatprep.subr.mxu0 0.0
    %1503 = vmatpush1.xpose.msra.mxu0 0.0
    %1504 = vmatprep.subr.mxu0 0.0
    %1505 = vmatpush1.xpose.msra.mxu0 0.0
    %1506 = vmatprep.subr.mxu0 0.0
    %1507 = vmatpush1.xpose.msra.mxu0 0.0
    %1508 = vmatprep.subr.mxu0 0.0
    %1509 = vmatpush1.xpose.msra.mxu0 0.0
    %1510 = vmatprep.subr.mxu0 0.0
    %1511 = vmatpush1.xpose.msra.mxu0 0.0
    %1512 = vmatprep.subr.mxu0 0.0
    %1513 = vmatpush1.xpose.msra.mxu0 0.0
    %1514 = vmatprep.subr.mxu0 0.0
    %1515 = vmatpush1.xpose.msra.mxu0 0.0
    %1516 = vmatprep.subr.mxu0 0.0
    %1517 = vmatpush1.xpose.msra.mxu0 0.0
    %1518 = vmatprep.subr.mxu0 0.0
    %1519 = vmatpush1.xpose.msra.mxu0 0.0
    %1520 = vmatprep.subr.mxu0 0.0
    %1521 = vmatpush1.xpose.msra.mxu0 0.0
    %1522 = vmatprep.subr.mxu0 0.0
    %1523 = vmatpush1.xpose.msra.mxu0 0.0
    %1524 = vmatprep.subr.mxu0 0.0
    %1525 = vmatpush1.xpose.msra.mxu0 0.0
    %1526 = vmatprep.subr.mxu0 0.0
    %1527 = vmatpush1.xpose.msra.mxu0 0.0
    %1528 = vmatprep.subr.mxu0 0.0
    %1529 = vmatpush1.xpose.msra.mxu0 0.0
    %1530 = vmatprep.subr.mxu0 0.0
    %1531 = vmatpush1.xpose.msra.mxu0 0.0
    %1532 = vmatprep.subr.mxu0 0.0
    %1533 = vmatpush1.xpose.msra.mxu0 0.0
    %1534 = vmatprep.subr.mxu0 0.0
    %1535 = vmatpush1.xpose.msra.mxu0 0.0
    %1536 = vmatprep.subr.mxu0 0.0
    %1537 = vmatpush1.xpose.msra.mxu0 0.0
    %1538 = vmatprep.subr.mxu0 0.0
    %1539 = vmatpush1.xpose.msra.mxu0 0.0
    %1540 = vmatprep.mubr.f32.mxu0 0.0
    %1541 = vmatmul.mubr.f32.gmra.mrb[0].mxu0 %v1472
    %v1542 = vpop.f32.mrb[0].mxu0
    %v1543 = vadd.f32 %v960, %v1542
    %v1544 = vpop.f32.mrb[0].mxu0
    %1545 = vdwg.mxu0
    %v1546 = vsel %vm279, %v1543, -inf
    %1547 = vmax.xlane.f32.xlu0 %v1546
    %v1548 = vpop.xlane.xlu0 %1547
    %v1549 = vsub.f32 %v1543, %v1548
    %v1550 = vmul.f32 %v1549, 1.442695
    %v1551 = vpow.pop %v1550
    %v1552 = vsel %vm279, %v1551, 0.0
    %1553 = vadd.xlane.f32.xlu0 %v1552
    %v1554 = vpop.xlane.xlu0 %1553
    %v1555 = vrcp.pop %v1554
    %v1556 = vmul.f32 %v1551, %v1555
    %1557 = vrot.lane.b32.xlu0 %v271, 40
    %v1558 = vpop.permute.xlu0 %1557
    %v1561 = vsel %vm279, %v1556, 0
    %1563 = vmatprep.subr.mxu0 0.0
    %1564 = vmatpush1.msra.mxu0 %v1558
    %1565 = vmatprep.subr.mxu0 0.0
    %1566 = vmatpush1.msra.mxu0 0.0
    %1567 = vmatprep.subr.mxu0 0.0
    %1568 = vmatpush1.msra.mxu0 0.0
    %1569 = vmatprep.subr.mxu0 0.0
    %1570 = vmatpush1.msra.mxu0 0.0
    %1571 = vmatprep.subr.mxu0 0.0
    %1572 = vmatpush1.msra.mxu0 0.0
    %1573 = vmatprep.subr.mxu0 0.0
    %1574 = vmatpush1.msra.mxu0 0.0
    %1575 = vmatprep.subr.mxu0 0.0
    %1576 = vmatpush1.msra.mxu0 0.0
    %1577 = vmatprep.subr.mxu0 0.0
    %1578 = vmatpush1.msra.mxu0 0.0
    %1579 = vmatprep.subr.mxu0 0.0
    %1580 = vmatpush1.msra.mxu0 0.0
    %1581 = vmatprep.subr.mxu0 0.0
    %1582 = vmatpush1.msra.mxu0 0.0
    %1583 = vmatprep.subr.mxu0 0.0
    %1584 = vmatpush1.msra.mxu0 0.0
    %1585 = vmatprep.subr.mxu0 0.0
    %1586 = vmatpush1.msra.mxu0 0.0
    %1587 = vmatprep.subr.mxu0 0.0
    %1588 = vmatpush1.msra.mxu0 0.0
    %1589 = vmatprep.subr.mxu0 0.0
    %1590 = vmatpush1.msra.mxu0 0.0
    %1591 = vmatprep.subr.mxu0 0.0
    %1592 = vmatpush1.msra.mxu0 0.0
    %1593 = vmatprep.subr.mxu0 0.0
    %1594 = vmatpush1.msra.mxu0 0.0
    %1595 = vmatprep.subr.mxu0 0.0
    %1596 = vmatpush1.msra.mxu0 0.0
    %1597 = vmatprep.subr.mxu0 0.0
    %1598 = vmatpush1.msra.mxu0 0.0
    %1599 = vmatprep.subr.mxu0 0.0
    %1600 = vmatpush1.msra.mxu0 0.0
    %1601 = vmatprep.subr.mxu0 0.0
    %1602 = vmatpush1.msra.mxu0 0.0
    %1603 = vmatprep.subr.mxu0 0.0
    %1604 = vmatpush1.msra.mxu0 0.0
    %1605 = vmatprep.subr.mxu0 0.0
    %1606 = vmatpush1.msra.mxu0 0.0
    %1607 = vmatprep.subr.mxu0 0.0
    %1608 = vmatpush1.msra.mxu0 0.0
    %1609 = vmatprep.subr.mxu0 0.0
    %1610 = vmatpush1.msra.mxu0 0.0
    %1611 = vmatprep.subr.mxu0 0.0
    %1612 = vmatpush1.msra.mxu0 0.0
    %1613 = vmatprep.subr.mxu0 0.0
    %1614 = vmatpush1.msra.mxu0 0.0
    %1615 = vmatprep.subr.mxu0 0.0
    %1616 = vmatpush1.msra.mxu0 0.0
    %1617 = vmatprep.subr.mxu0 0.0
    %1618 = vmatpush1.msra.mxu0 0.0
    %1619 = vmatprep.subr.mxu0 0.0
    %1620 = vmatpush1.msra.mxu0 0.0
    %1621 = vmatprep.subr.mxu0 0.0
    %1622 = vmatpush1.msra.mxu0 0.0
    %1623 = vmatprep.subr.mxu0 0.0
    %1624 = vmatpush1.msra.mxu0 0.0
    %1625 = vmatprep.subr.mxu0 0.0
    %1626 = vmatpush1.msra.mxu0 0.0
    %1627 = vmatprep.mubr.f32.mxu0 0.0
    %1628 = vmatmul.mubr.f32.gmra.mrb[0].mxu0 %v1561
    %v1629 = vpop.f32.mrb[0].mxu0
    %v1630 = vadd.f32 0.0, %v1629
    %v1631 = vpop.f32.mrb[0].mxu0
    %1632 = vdwg.mxu0
    %1634 = vrot.lane.b32.xlu0 %v1630, 24
    %v1635 = vpop.permute.xlu0 %1634
    %1637 = vst.msk [vmem:[#allocation2 + $0x8] sm:$0xff] %vm955, %v1635
    %v1638 = vld [vmem:[#allocation2] sm:$0xff]
    %v1639 = vld [vmem:[#allocation2 + $0x8] sm:$0xff]
    %v1640 = vld [vmem:[%s5] sm:$0xff]
    %v1641 = vld [vmem:[%s5 + $0x8] sm:$0xff]
    %v1642 = vld [vmem:[%s5 + $0x10] sm:$0xff]
    %v1643 = vld [vmem:[%s5 + $0x18] sm:$0xff]
    %v1644 = vlaneseq
    %v1645 = vshrl.u32 %v1644, 7
    %v1646 = vsub.s32 3, %v1645
    %v1647 = vrot.slane %v156, %v1646
    %v1649 = vsel %vm147, %v1638, 0
    %v1652 = vsel %vm147, %v1639, 0
    %1654 = vmatprep.subr.mxu0 0.0
    %1655 = vmatpush1.msra.mxu0 %v1640
    %1656 = vmatprep.subr.mxu0 0.0
    %1657 = vmatpush1.msra.mxu0 %v1641
    %1658 = vmatprep.subr.mxu0 0.0
    %1659 = vmatpush1.msra.mxu0 %v1642
    %1660 = vmatprep.subr.mxu0 0.0
    %1661 = vmatpush1.msra.mxu0 %v1643
    %1662 = vmatprep.subr.mxu0 0.0
    %1663 = vmatpush1.msra.mxu0 0.0
    %1664 = vmatprep.subr.mxu0 0.0
    %1665 = vmatpush1.msra.mxu0 0.0
    %1666 = vmatprep.subr.mxu0 0.0
    %1667 = vmatpush1.msra.mxu0 0.0
    %1668 = vmatprep.subr.mxu0 0.0
    %1669 = vmatpush1.msra.mxu0 0.0
    %1670 = vmatprep.subr.mxu0 0.0
    %1671 = vmatpush1.msra.mxu0 0.0
    %1672 = vmatprep.subr.mxu0 0.0
    %1673 = vmatpush1.msra.mxu0 0.0
    %1674 = vmatprep.subr.mxu0 0.0
    %1675 = vmatpush1.msra.mxu0 0.0
    %1676 = vmatprep.subr.mxu0 0.0
    %1677 = vmatpush1.msra.mxu0 0.0
    %1678 = vmatprep.subr.mxu0 0.0
    %1679 = vmatpush1.msra.mxu0 0.0
    %1680 = vmatprep.subr.mxu0 0.0
    %1681 = vmatpush1.msra.mxu0 0.0
    %1682 = vmatprep.subr.mxu0 0.0
    %1683 = vmatpush1.msra.mxu0 0.0
    %1684 = vmatprep.subr.mxu0 0.0
    %1685 = vmatpush1.msra.mxu0 0.0
    %1686 = vmatprep.subr.mxu0 0.0
    %1687 = vmatpush1.msra.mxu0 0.0
    %1688 = vmatprep.subr.mxu0 0.0
    %1689 = vmatpush1.msra.mxu0 0.0
    %1690 = vmatprep.subr.mxu0 0.0
    %1691 = vmatpush1.msra.mxu0 0.0
    %1692 = vmatprep.subr.mxu0 0.0
    %1693 = vmatpush1.msra.mxu0 0.0
    %1694 = vmatprep.subr.mxu0 0.0
    %1695 = vmatpush1.msra.mxu0 0.0
    %1696 = vmatprep.subr.mxu0 0.0
    %1697 = vmatpush1.msra.mxu0 0.0
    %1698 = vmatprep.subr.mxu0 0.0
    %1699 = vmatpush1.msra.mxu0 0.0
    %1700 = vmatprep.subr.mxu0 0.0
    %1701 = vmatpush1.msra.mxu0 0.0
    %1702 = vmatprep.subr.mxu0 0.0
    %1703 = vmatpush1.msra.mxu0 0.0
    %1704 = vmatprep.subr.mxu0 0.0
    %1705 = vmatpush1.msra.mxu0 0.0
    %1706 = vmatprep.subr.mxu0 0.0
    %1707 = vmatpush1.msra.mxu0 0.0
    %1708 = vmatprep.subr.mxu0 0.0
    %1709 = vmatpush1.msra.mxu0 0.0
    %1710 = vmatprep.subr.mxu0 0.0
    %1711 = vmatpush1.msra.mxu0 0.0
    %1712 = vmatprep.subr.mxu0 0.0
    %1713 = vmatpush1.msra.mxu0 0.0
    %1714 = vmatprep.subr.mxu0 0.0
    %1715 = vmatpush1.msra.mxu0 0.0
    %1716 = vmatprep.subr.mxu0 0.0
    %1717 = vmatpush1.msra.mxu0 0.0
    %1718 = vmatprep.mubr.f32.mxu0 0.0
    %1719 = vmatmul.mubr.f32.gmra.mrb[0].mxu0 %v1649
    %v1720 = vpop.f32.mrb[0].mxu0
    %v1721 = vadd.f32 %v1647, %v1720
    %v1722 = vpop.f32.mrb[0].mxu0
    %1723 = vmatprep.mubr.f32.mxu0 0.0
    %1724 = vmatmul.mubr.f32.gmra.mrb[0].mxu0 %v1652
    %v1725 = vpop.f32.mrb[0].mxu0
    %v1726 = vadd.f32 %v1647, %v1725
    %v1727 = vpop.f32.mrb[0].mxu0
    %1728 = vdwg.mxu0
    %v1729 = vadd.f32 %v1721, %v151
    %v1730 = vadd.f32 %v1726, %v152
    %v1731 = vsel %vm147, %v1729, 0.0
    %1732 = vadd.xlane.f32.xlu0 %v1731
    %v1733 = vpop.xlane.xlu0 %1732
    %v1734 = vsel %vm147, %v1730, 0.0
    %1735 = vadd.xlane.f32.xlu0 %v1734
    %v1736 = vpop.xlane.xlu0 %1735
    %v1737 = vrcp.pop 32.0
    %v1738 = vmul.f32 %v1733, %v1737
    %v1739 = vmul.f32 %v1736, %v1737
    %v1740 = vsub.f32 %v1729, %v1738
    %v1741 = vsub.f32 %v1730, %v1739
    %v1742 = vmul.f32 %v1740, %v1740
    %v1743 = vmul.f32 %v1741, %v1741
    %v1744 = vsel %vm147, %v1742, 0.0
    %1745 = vadd.xlane.f32.xlu0 %v1744
    %v1746 = vpop.xlane.xlu0 %1745
    %v1747 = vsel %vm147, %v1743, 0.0
    %1748 = vadd.xlane.f32.xlu0 %v1747
    %v1749 = vpop.xlane.xlu0 %1748
    %v1750 = vmul.f32 %v1746, %v1737
    %v1751 = vmul.f32 %v1749, %v1737
    %v1752 = vadd.f32 %v1750, 1e-05
    %v1753 = vadd.f32 %v1751, 1e-05
    %v1754 = vrsqrt.pop %v1752
    %v1755 = vrsqrt.pop %v1753
    %v1756 = vmul.f32 %v1740, %v1754
    %v1757 = vmul.f32 %v1741, %v1755
    %v1758 = vlaneseq
    %v1759 = vshrl.u32 %v1758, 7
    %v1760 = vsub.s32 4, %v1759
    %v1761 = vrot.slane %v156, %v1760
    %v1762 = vmul.f32 %v1756, %v1761
    %v1763 = vmul.f32 %v1757, %v1761
    %v1764 = vlaneseq
    %v1765 = vshrl.u32 %v1764, 7
    %v1766 = vsub.s32 5, %v1765
    %v1767 = vrot.slane %v156, %v1766
    %v1768 = vadd.f32 %v1762, %v1767
    %v1769 = vadd.f32 %v1763, %v1767
    %v1770 = vld [vmem:[%s6] sm:$0xff]
    %v1771 = vld [vmem:[%s6 + $0x8] sm:$0xff]
    %v1772 = vld [vmem:[%s6 + $0x10] sm:$0xff]
    %v1773 = vld [vmem:[%s6 + $0x18] sm:$0xff]
    %v1775 = vlaneseq
    %v1776 = vshrl.u32 %v1775, 7
    %v1777 = vsub.s32 0, %v1776
    %v1778 = vrot.slane %v158, %v1777
    %v1781 = vsel %vm147, %v1768, 0
    %v1784 = vsel %vm147, %v1769, 0
    %1786 = vmatprep.subr.mxu0 0.0
    %1787 = vmatpush1.msra.mxu0 %v1770
    %1788 = vmatprep.subr.mxu0 0.0
    %1789 = vmatpush1.msra.mxu0 %v1771
    %1790 = vmatprep.subr.mxu0 0.0
    %1791 = vmatpush1.msra.mxu0 %v1772
    %1792 = vmatprep.subr.mxu0 0.0
    %1793 = vmatpush1.msra.mxu0 %v1773
    %1794 = vmatprep.subr.mxu0 0.0
    %1795 = vmatpush1.msra.mxu0 0.0
    %1796 = vmatprep.subr.mxu0 0.0
    %1797 = vmatpush1.msra.mxu0 0.0
    %1798 = vmatprep.subr.mxu0 0.0
    %1799 = vmatpush1.msra.mxu0 0.0
    %1800 = vmatprep.subr.mxu0 0.0
    %1801 = vmatpush1.msra.mxu0 0.0
    %1802 = vmatprep.subr.mxu0 0.0
    %1803 = vmatpush1.msra.mxu0 0.0
    %1804 = vmatprep.subr.mxu0 0.0
    %1805 = vmatpush1.msra.mxu0 0.0
    %1806 = vmatprep.subr.mxu0 0.0
    %1807 = vmatpush1.msra.mxu0 0.0
    %1808 = vmatprep.subr.mxu0 0.0
    %1809 = vmatpush1.msra.mxu0 0.0
    %1810 = vmatprep.subr.mxu0 0.0
    %1811 = vmatpush1.msra.mxu0 0.0
    %1812 = vmatprep.subr.mxu0 0.0
    %1813 = vmatpush1.msra.mxu0 0.0
    %1814 = vmatprep.subr.mxu0 0.0
    %1815 = vmatpush1.msra.mxu0 0.0
    %1816 = vmatprep.subr.mxu0 0.0
    %1817 = vmatpush1.msra.mxu0 0.0
    %1818 = vmatprep.subr.mxu0 0.0
    %1819 = vmatpush1.msra.mxu0 0.0
    %1820 = vmatprep.subr.mxu0 0.0
    %1821 = vmatpush1.msra.mxu0 0.0
    %1822 = vmatprep.subr.mxu0 0.0
    %1823 = vmatpush1.msra.mxu0 0.0
    %1824 = vmatprep.subr.mxu0 0.0
    %1825 = vmatpush1.msra.mxu0 0.0
    %1826 = vmatprep.subr.mxu0 0.0
    %1827 = vmatpush1.msra.mxu0 0.0
    %1828 = vmatprep.subr.mxu0 0.0
    %1829 = vmatpush1.msra.mxu0 0.0
    %1830 = vmatprep.subr.mxu0 0.0
    %1831 = vmatpush1.msra.mxu0 0.0
    %1832 = vmatprep.subr.mxu0 0.0
    %1833 = vmatpush1.msra.mxu0 0.0
    %1834 = vmatprep.subr.mxu0 0.0
    %1835 = vmatpush1.msra.mxu0 0.0
    %1836 = vmatprep.subr.mxu0 0.0
    %1837 = vmatpush1.msra.mxu0 0.0
    %1838 = vmatprep.subr.mxu0 0.0
    %1839 = vmatpush1.msra.mxu0 0.0
    %1840 = vmatprep.subr.mxu0 0.0
    %1841 = vmatpush1.msra.mxu0 0.0
    %1842 = vmatprep.subr.mxu0 0.0
    %1843 = vmatpush1.msra.mxu0 0.0
    %1844 = vmatprep.subr.mxu0 0.0
    %1845 = vmatpush1.msra.mxu0 0.0
    %1846 = vmatprep.subr.mxu0 0.0
    %1847 = vmatpush1.msra.mxu0 0.0
    %1848 = vmatprep.subr.mxu0 0.0
    %1849 = vmatpush1.msra.mxu0 0.0
    %1850 = vmatprep.mubr.f32.mxu0 0.0
    %1851 = vmatmul.mubr.f32.gmra.mrb[0].mxu0 %v1781
    %v1852 = vpop.f32.mrb[0].mxu0
    %v1853 = vadd.f32 %v1778, %v1852
    %v1854 = vpop.f32.mrb[0].mxu0
    %1855 = vmatprep.mubr.f32.mxu0 0.0
    %1856 = vmatmul.mubr.f32.gmra.mrb[0].mxu0 %v1784
    %v1857 = vpop.f32.mrb[0].mxu0
    %v1858 = vadd.f32 %v1778, %v1857
    %v1859 = vpop.f32.mrb[0].mxu0
    %1860 = vdwg.mxu0
    %v1861 = vmax.f32 %v1853, 0.0
    %v1862 = vmax.f32 %v1858, 0.0
    %v1863 = vld [vmem:[%s7] sm:$0xff]
    %v1864 = vld [vmem:[%s7 + $0x8] sm:$0xff]
    %v1865 = vld [vmem:[%s7 + $0x10] sm:$0xff]
    %v1866 = vld [vmem:[%s7 + $0x18] sm:$0xff]
    %v1867 = vld [vmem:[%s7 + $0x20] sm:$0xff]
    %v1868 = vld [vmem:[%s7 + $0x28] sm:$0xff]
    %v1869 = vld [vmem:[%s7 + $0x30] sm:$0xff]
    %v1870 = vld [vmem:[%s7 + $0x38] sm:$0xff]
    %v1871 = vld [vmem:[%s7 + $0x40] sm:$0xff]
    %v1872 = vld [vmem:[%s7 + $0x48] sm:$0xff]
    %v1873 = vld [vmem:[%s7 + $0x50] sm:$0xff]
    %v1874 = vld [vmem:[%s7 + $0x58] sm:$0xff]
    %v1875 = vld [vmem:[%s7 + $0x60] sm:$0xff]
    %v1876 = vld [vmem:[%s7 + $0x68] sm:$0xff]
    %v1877 = vld [vmem:[%s7 + $0x70] sm:$0xff]
    %v1878 = vld [vmem:[%s7 + $0x78] sm:$0xff]
    %v1879 = vlaneseq
    %v1880 = vshrl.u32 %v1879, 7
    %v1881 = vsub.s32 6, %v1880
    %v1882 = vrot.slane %v156, %v1881
    %1883 = vmatprep.subr.mxu0 0.0
    %1884 = vmatpush1.msra.mxu0 %v1863
    %1885 = vmatprep.subr.mxu0 0.0
    %1886 = vmatpush1.msra.mxu0 %v1864
    %1887 = vmatprep.subr.mxu0 0.0
    %1888 = vmatpush1.msra.mxu0 %v1865
    %1889 = vmatprep.subr.mxu0 0.0
    %1890 = vmatpush1.msra.mxu0 %v1866
    %1891 = vmatprep.subr.mxu0 0.0
    %1892 = vmatpush1.msra.mxu0 %v1867
    %1893 = vmatprep.subr.mxu0 0.0
    %1894 = vmatpush1.msra.mxu0 %v1868
    %1895 = vmatprep.subr.mxu0 0.0
    %1896 = vmatpush1.msra.mxu0 %v1869
    %1897 = vmatprep.subr.mxu0 0.0
    %1898 = vmatpush1.msra.mxu0 %v1870
    %1899 = vmatprep.subr.mxu0 0.0
    %1900 = vmatpush1.msra.mxu0 %v1871
    %1901 = vmatprep.subr.mxu0 0.0
    %1902 = vmatpush1.msra.mxu0 %v1872
    %1903 = vmatprep.subr.mxu0 0.0
    %1904 = vmatpush1.msra.mxu0 %v1873
    %1905 = vmatprep.subr.mxu0 0.0
    %1906 = vmatpush1.msra.mxu0 %v1874
    %1907 = vmatprep.subr.mxu0 0.0
    %1908 = vmatpush1.msra.mxu0 %v1875
    %1909 = vmatprep.subr.mxu0 0.0
    %1910 = vmatpush1.msra.mxu0 %v1876
    %1911 = vmatprep.subr.mxu0 0.0
    %1912 = vmatpush1.msra.mxu0 %v1877
    %1913 = vmatprep.subr.mxu0 0.0
    %1914 = vmatpush1.msra.mxu0 %v1878
    %1915 = vmatprep.subr.mxu0 0.0
    %1916 = vmatpush1.msra.mxu0 0.0
    %1917 = vmatprep.subr.mxu0 0.0
    %1918 = vmatpush1.msra.mxu0 0.0
    %1919 = vmatprep.subr.mxu0 0.0
    %1920 = vmatpush1.msra.mxu0 0.0
    %1921 = vmatprep.subr.mxu0 0.0
    %1922 = vmatpush1.msra.mxu0 0.0
    %1923 = vmatprep.subr.mxu0 0.0
    %1924 = vmatpush1.msra.mxu0 0.0
    %1925 = vmatprep.subr.mxu0 0.0
    %1926 = vmatpush1.msra.mxu0 0.0
    %1927 = vmatprep.subr.mxu0 0.0
    %1928 = vmatpush1.msra.mxu0 0.0
    %1929 = vmatprep.subr.mxu0 0.0
    %1930 = vmatpush1.msra.mxu0 0.0
    %1931 = vmatprep.subr.mxu0 0.0
    %1932 = vmatpush1.msra.mxu0 0.0
    %1933 = vmatprep.subr.mxu0 0.0
    %1934 = vmatpush1.msra.mxu0 0.0
    %1935 = vmatprep.subr.mxu0 0.0
    %1936 = vmatpush1.msra.mxu0 0.0
    %1937 = vmatprep.subr.mxu0 0.0
    %1938 = vmatpush1.msra.mxu0 0.0
    %1939 = vmatprep.subr.mxu0 0.0
    %1940 = vmatpush1.msra.mxu0 0.0
    %1941 = vmatprep.subr.mxu0 0.0
    %1942 = vmatpush1.msra.mxu0 0.0
    %1943 = vmatprep.subr.mxu0 0.0
    %1944 = vmatpush1.msra.mxu0 0.0
    %1945 = vmatprep.subr.mxu0 0.0
    %1946 = vmatpush1.msra.mxu0 0.0
    %1947 = vmatprep.mubr.f32.mxu0 0.0
    %1948 = vmatmul.mubr.f32.gmra.mrb[0].mxu0 %v1861
    %v1949 = vpop.f32.mrb[0].mxu0
    %v1950 = vadd.f32 %v1882, %v1949
    %v1951 = vpop.f32.mrb[0].mxu0
    %1952 = vmatprep.mubr.f32.mxu0 0.0
    %1953 = vmatmul.mubr.f32.gmra.mrb[0].mxu0 %v1862
    %v1954 = vpop.f32.mrb[0].mxu0
    %v1955 = vadd.f32 %v1882, %v1954
    %v1956 = vpop.f32.mrb[0].mxu0
    %1957 = vdwg.mxu0
    %v1958 = vadd.f32 %v1950, %v1768
    %v1959 = vadd.f32 %v1955, %v1769
    %v1960 = vsel %vm147, %v1958, 0.0
    %1961 = vadd.xlane.f32.xlu0 %v1960
    %v1962 = vpop.xlane.xlu0 %1961
    %v1963 = vsel %vm147, %v1959, 0.0
    %1964 = vadd.xlane.f32.xlu0 %v1963
    %v1965 = vpop.xlane.xlu0 %1964
    %v1966 = vmul.f32 %v1962, %v1737
    %v1967 = vmul.f32 %v1965, %v1737
    %v1968 = vsub.f32 %v1958, %v1966
    %v1969 = vsub.f32 %v1959, %v1967
    %v1970 = vmul.f32 %v1968, %v1968
    %v1971 = vmul.f32 %v1969, %v1969
    %v1972 = vsel %vm147, %v1970, 0.0
    %1973 = vadd.xlane.f32.xlu0 %v1972
    %v1974 = vpop.xlane.xlu0 %1973
    %v1975 = vsel %vm147, %v1971, 0.0
    %1976 = vadd.xlane.f32.xlu0 %v1975
    %v1977 = vpop.xlane.xlu0 %1976
    %v1978 = vmul.f32 %v1974, %v1737
    %v1979 = vmul.f32 %v1977, %v1737
    %v1980 = vadd.f32 %v1978, 1e-05
    %v1981 = vadd.f32 %v1979, 1e-05
    %v1982 = vrsqrt.pop %v1980
    %v1983 = vrsqrt.pop %v1981
    %v1984 = vmul.f32 %v1968, %v1982
    %v1985 = vmul.f32 %v1969, %v1983
    %v1986 = vlaneseq
    %v1987 = vshrl.u32 %v1986, 7
    %v1988 = vsub.s32 7, %v1987
    %v1989 = vrot.slane %v156, %v1988
    %v1990 = vmul.f32 %v1984, %v1989
    %v1991 = vmul.f32 %v1985, %v1989
    %v1992 = vlaneseq
    %v1993 = vshrl.u32 %v1992, 7
    %v1994 = vsub.s32 0, %v1993
    %v1995 = vrot.slane %v157, %v1994
    %v1996 = vadd.f32 %v1990, %v1995
    %v1997 = vadd.f32 %v1991, %v1995
    %s1998 = scalar_lea.vmem %s8, 16
    %v1999 = vld [vmem:[%s1998] sm:$0xff]
    %v2000 = vld [vmem:[%s1998 + $0x8] sm:$0x1]
    %s2001 = scalar_lea.vmem %s9, 1
    %v2002 = vld [vmem:[%s2001] sm:$0x1]
    %s2003 = scalar_lea.vmem %s4, 32
    %v2004 = vld [vmem:[%s2003] sm:$0xff]
    %v2005 = vld [vmem:[%s2003 + $0x8] sm:$0xff]
    %v2006 = vld [vmem:[%s2003 + $0x10] sm:$0xff]
    %v2007 = vld [vmem:[%s2003 + $0x18] sm:$0xff]
    %v2009 = vsel %vm147, %v1996, 0
    %v2012 = vsel %vm147, %v1997, 0
    %2014 = vmatprep.subr.mxu0 0.0
    %2015 = vmatpush1.msra.mxu0 %v2004
    %2016 = vmatprep.subr.mxu0 0.0
    %2017 = vmatpush1.msra.mxu0 %v2005
    %2018 = vmatprep.subr.mxu0 0.0
    %2019 = vmatpush1.msra.mxu0 %v2006
    %2020 = vmatprep.subr.mxu0 0.0
    %2021 = vmatpush1.msra.mxu0 %v2007
    %2022 = vmatprep.subr.mxu0 0.0
    %2023 = vmatpush1.msra.mxu0 0.0
    %2024 = vmatprep.subr.mxu0 0.0
    %2025 = vmatpush1.msra.mxu0 0.0
    %2026 = vmatprep.subr.mxu0 0.0
    %2027 = vmatpush1.msra.mxu0 0.0
    %2028 = vmatprep.subr.mxu0 0.0
    %2029 = vmatpush1.msra.mxu0 0.0
    %2030 = vmatprep.subr.mxu0 0.0
    %2031 = vmatpush1.msra.mxu0 0.0
    %2032 = vmatprep.subr.mxu0 0.0
    %2033 = vmatpush1.msra.mxu0 0.0
    %2034 = vmatprep.subr.mxu0 0.0
    %2035 = vmatpush1.msra.mxu0 0.0
    %2036 = vmatprep.subr.mxu0 0.0
    %2037 = vmatpush1.msra.mxu0 0.0
    %2038 = vmatprep.subr.mxu0 0.0
    %2039 = vmatpush1.msra.mxu0 0.0
    %2040 = vmatprep.subr.mxu0 0.0
    %2041 = vmatpush1.msra.mxu0 0.0
    %2042 = vmatprep.subr.mxu0 0.0
    %2043 = vmatpush1.msra.mxu0 0.0
    %2044 = vmatprep.subr.mxu0 0.0
    %2045 = vmatpush1.msra.mxu0 0.0
    %2046 = vmatprep.subr.mxu0 0.0
    %2047 = vmatpush1.msra.mxu0 0.0
    %2048 = vmatprep.subr.mxu0 0.0
    %2049 = vmatpush1.msra.mxu0 0.0
    %2050 = vmatprep.subr.mxu0 0.0
    %2051 = vmatpush1.msra.mxu0 0.0
    %2052 = vmatprep.subr.mxu0 0.0
    %2053 = vmatpush1.msra.mxu0 0.0
    %2054 = vmatprep.subr.mxu0 0.0
    %2055 = vmatpush1.msra.mxu0 0.0
    %2056 = vmatprep.subr.mxu0 0.0
    %2057 = vmatpush1.msra.mxu0 0.0
    %2058 = vmatprep.subr.mxu0 0.0
    %2059 = vmatpush1.msra.mxu0 0.0
    %2060 = vmatprep.subr.mxu0 0.0
    %2061 = vmatpush1.msra.mxu0 0.0
    %2062 = vmatprep.subr.mxu0 0.0
    %2063 = vmatpush1.msra.mxu0 0.0
    %2064 = vmatprep.subr.mxu0 0.0
    %2065 = vmatpush1.msra.mxu0 0.0
    %2066 = vmatprep.subr.mxu0 0.0
    %2067 = vmatpush1.msra.mxu0 0.0
    %2068 = vmatprep.subr.mxu0 0.0
    %2069 = vmatpush1.msra.mxu0 0.0
    %2070 = vmatprep.subr.mxu0 0.0
    %2071 = vmatpush1.msra.mxu0 0.0
    %2072 = vmatprep.subr.mxu0 0.0
    %2073 = vmatpush1.msra.mxu0 0.0
    %2074 = vmatprep.subr.mxu0 0.0
    %2075 = vmatpush1.msra.mxu0 0.0
    %2076 = vmatprep.subr.mxu0 0.0
    %2077 = vmatpush1.msra.mxu0 0.0
    %2078 = vmatprep.mubr.f32.mxu0 0.0
    %2079 = vmatmul.mubr.f32.gmra.mrb[0].mxu0 %v2009
    %v2080 = vpop.f32.mrb[0].mxu0
    %v2081 = vadd.f32 0.0, %v2080
    %v2082 = vpop.f32.mrb[0].mxu0
    %2083 = vmatprep.mubr.f32.mxu0 0.0
    %2084 = vmatmul.mubr.f32.gmra.mrb[0].mxu0 %v2012
    %v2085 = vpop.f32.mrb[0].mxu0
    %v2086 = vadd.f32 0.0, %v2085
    %v2087 = vpop.f32.mrb[0].mxu0
    %2088 = vdwg.mxu0
    %v2089 = vlaneseq
    %v2090 = vshrl.u32 %v2089, 7
    %v2091 = vsub.s32 0, %v2090
    %v2092 = vrot.slane %v1999, %v2091
    %v2093 = vadd.f32 %v2081, %v2092
    %v2094 = vadd.f32 %v2086, %v2092
    %v2095 = vmul.f32 %v2093, 0.17677669
    %v2096 = vmul.f32 %v2094, 0.17677669
    %v2097 = vlaneseq
    %v2098 = vshrl.u32 %v2097, 7
    %v2099 = vsub.s32 1, %v2098
    %v2100 = vrot.slane %v1999, %v2099
    %2102 = vrot.lane.b32.xlu0 %v2100, 32
    %v2103 = vpop.permute.xlu0 %2102
    %v2105 = vadd.f32 %v2081, %v2103
    %v2106 = vadd.f32 %v2086, %v2103
    %v2107 = vlaneseq
    %v2108 = vshrl.u32 %v2107, 7
    %v2109 = vsub.s32 2, %v2108
    %v2110 = vrot.slane %v1999, %v2109
    %2112 = vrot.lane.b32.xlu0 %v2110, 64
    %v2113 = vpop.permute.xlu0 %2112
    %v2115 = vadd.f32 %v2081, %v2113
    %v2116 = vadd.f32 %v2086, %v2113
    %2118 = vrot.lane.b32.xlu0 %v2105, 96
    %v2119 = vpop.permute.xlu0 %2118
    %v2121 = vsel %vm279, %v2095, 0
    %v2123 = vsel %vm279, %v2119, 0
    %2125 = vmatprep.subr.mxu0 0.0
    %2126 = vmatpush1.xpose.msra.mxu0 %v2123
    %2127 = vmatprep.subr.mxu0 0.0
    %2128 = vmatpush1.xpose.msra.mxu0 0.0
    %2129 = vmatprep.subr.mxu0 0.0
    %2130 = vmatpush1.xpose.msra.mxu0 0.0
    %2131 = vmatprep.subr.mxu0 0.0
    %2132 = vmatpush1.xpose.msra.mxu0 0.0
    %2133 = vmatprep.subr.mxu0 0.0
    %2134 = vmatpush1.xpose.msra.mxu0 0.0
    %2135 = vmatprep.subr.mxu0 0.0
    %2136 = vmatpush1.xpose.msra.mxu0 0.0
    %2137 = vmatprep.subr.mxu0 0.0
    %2138 = vmatpush1.xpose.msra.mxu0 0.0
    %2139 = vmatprep.subr.mxu0 0.0
    %2140 = vmatpush1.xpose.msra.mxu0 0.0
    %2141 = vmatprep.subr.mxu0 0.0
    %2142 = vmatpush1.xpose.msra.mxu0 0.0
    %2143 = vmatprep.subr.mxu0 0.0
    %2144 = vmatpush1.xpose.msra.mxu0 0.0
    %2145 = vmatprep.subr.mxu0 0.0
    %2146 = vmatpush1.xpose.msra.mxu0 0.0
    %2147 = vmatprep.subr.mxu0 0.0
    %2148 = vmatpush1.xpose.msra.mxu0 0.0
    %2149 = vmatprep.subr.mxu0 0.0
    %2150 = vmatpush1.xpose.msra.mxu0 0.0
    %2151 = vmatprep.subr.mxu0 0.0
    %2152 = vmatpush1.xpose.msra.mxu0 0.0
    %2153 = vmatprep.subr.mxu0 0.0
    %2154 = vmatpush1.xpose.msra.mxu0 0.0
    %2155 = vmatprep.subr.mxu0 0.0
    %2156 = vmatpush1.xpose.msra.mxu0 0.0
    %2157 = vmatprep.subr.mxu0 0.0
    %2158 = vmatpush1.xpose.msra.mxu0 0.0
    %2159 = vmatprep.subr.mxu0 0.0
    %2160 = vmatpush1.xpose.msra.mxu0 0.0
    %2161 = vmatprep.subr.mxu0 0.0
    %2162 = vmatpush1.xpose.msra.mxu0 0.0
    %2163 = vmatprep.subr.mxu0 0.0
    %2164 = vmatpush1.xpose.msra.mxu0 0.0
    %2165 = vmatprep.subr.mxu0 0.0
    %2166 = vmatpush1.xpose.msra.mxu0 0.0
    %2167 = vmatprep.subr.mxu0 0.0
    %2168 = vmatpush1.xpose.msra.mxu0 0.0
    %2169 = vmatprep.subr.mxu0 0.0
    %2170 = vmatpush1.xpose.msra.mxu0 0.0
    %2171 = vmatprep.subr.mxu0 0.0
    %2172 = vmatpush1.xpose.msra.mxu0 0.0
    %2173 = vmatprep.subr.mxu0 0.0
    %2174 = vmatpush1.xpose.msra.mxu0 0.0
    %2175 = vmatprep.subr.mxu0 0.0
    %2176 = vmatpush1.xpose.msra.mxu0 0.0
    %2177 = vmatprep.subr.mxu0 0.0
    %2178 = vmatpush1.xpose.msra.mxu0 0.0
    %2179 = vmatprep.subr.mxu0 0.0
    %2180 = vmatpush1.xpose.msra.mxu0 0.0
    %2181 = vmatprep.subr.mxu0 0.0
    %2182 = vmatpush1.xpose.msra.mxu0 0.0
    %2183 = vmatprep.subr.mxu0 0.0
    %2184 = vmatpush1.xpose.msra.mxu0 0.0
    %2185 = vmatprep.subr.mxu0 0.0
    %2186 = vmatpush1.xpose.msra.mxu0 0.0
    %2187 = vmatprep.subr.mxu0 0.0
    %2188 = vmatpush1.xpose.msra.mxu0 0.0
    %2189 = vmatprep.mubr.f32.mxu0 0.0
    %2190 = vmatmul.mubr.f32.gmra.mrb[0].mxu0 %v2121
    %v2191 = vpop.f32.mrb[0].mxu0
    %v2192 = vadd.f32 %v275, %v2191
    %v2193 = vpop.f32.mrb[0].mxu0
    %2194 = vdwg.mxu0
    %v2195 = vsel %vm279, %v2192, -inf
    %2196 = vmax.xlane.f32.xlu0 %v2195
    %v2197 = vpop.xlane.xlu0 %2196
    %v2198 = vsub.f32 %v2192, %v2197
    %v2199 = vmul.f32 %v2198, 1.442695
    %v2200 = vpow.pop %v2199
    %v2201 = vsel %vm279, %v2200, 0.0
    %2202 = vadd.xlane.f32.xlu0 %v2201
    %v2203 = vpop.xlane.xlu0 %2202
    %v2204 = vrcp.pop %v2203
    %v2205 = vmul.f32 %v2200, %v2204
    %2207 = vrot.lane.b32.xlu0 %v2115, 64
    %v2208 = vpop.permute.xlu0 %2207
    %v2211 = vsel %vm279, %v2205, 0
    %2213 = vmatprep.subr.mxu0 0.0
    %2214 = vmatpush1.msra.mxu0 %v2208
    %2215 = vmatprep.subr.mxu0 0.0
    %2216 = vmatpush1.msra.mxu0 0.0
    %2217 = vmatprep.subr.mxu0 0.0
    %2218 = vmatpush1.msra.mxu0 0.0
    %2219 = vmatprep.subr.mxu0 0.0
    %2220 = vmatpush1.msra.mxu0 0.0
    %2221 = vmatprep.subr.mxu0 0.0
    %2222 = vmatpush1.msra.mxu0 0.0
    %2223 = vmatprep.subr.mxu0 0.0
    %2224 = vmatpush1.msra.mxu0 0.0
    %2225 = vmatprep.subr.mxu0 0.0
    %2226 = vmatpush1.msra.mxu0 0.0
    %2227 = vmatprep.subr.mxu0 0.0
    %2228 = vmatpush1.msra.mxu0 0.0
    %2229 = vmatprep.subr.mxu0 0.0
    %2230 = vmatpush1.msra.mxu0 0.0
    %2231 = vmatprep.subr.mxu0 0.0
    %2232 = vmatpush1.msra.mxu0 0.0
    %2233 = vmatprep.subr.mxu0 0.0
    %2234 = vmatpush1.msra.mxu0 0.0
    %2235 = vmatprep.subr.mxu0 0.0
    %2236 = vmatpush1.msra.mxu0 0.0
    %2237 = vmatprep.subr.mxu0 0.0
    %2238 = vmatpush1.msra.mxu0 0.0
    %2239 = vmatprep.subr.mxu0 0.0
    %2240 = vmatpush1.msra.mxu0 0.0
    %2241 = vmatprep.subr.mxu0 0.0
    %2242 = vmatpush1.msra.mxu0 0.0
    %2243 = vmatprep.subr.mxu0 0.0
    %2244 = vmatpush1.msra.mxu0 0.0
    %2245 = vmatprep.subr.mxu0 0.0
    %2246 = vmatpush1.msra.mxu0 0.0
    %2247 = vmatprep.subr.mxu0 0.0
    %2248 = vmatpush1.msra.mxu0 0.0
    %2249 = vmatprep.subr.mxu0 0.0
    %2250 = vmatpush1.msra.mxu0 0.0
    %2251 = vmatprep.subr.mxu0 0.0
    %2252 = vmatpush1.msra.mxu0 0.0
    %2253 = vmatprep.subr.mxu0 0.0
    %2254 = vmatpush1.msra.mxu0 0.0
    %2255 = vmatprep.subr.mxu0 0.0
    %2256 = vmatpush1.msra.mxu0 0.0
    %2257 = vmatprep.subr.mxu0 0.0
    %2258 = vmatpush1.msra.mxu0 0.0
    %2259 = vmatprep.subr.mxu0 0.0
    %2260 = vmatpush1.msra.mxu0 0.0
    %2261 = vmatprep.subr.mxu0 0.0
    %2262 = vmatpush1.msra.mxu0 0.0
    %2263 = vmatprep.subr.mxu0 0.0
    %2264 = vmatpush1.msra.mxu0 0.0
    %2265 = vmatprep.subr.mxu0 0.0
    %2266 = vmatpush1.msra.mxu0 0.0
    %2267 = vmatprep.subr.mxu0 0.0
    %2268 = vmatpush1.msra.mxu0 0.0
    %2269 = vmatprep.subr.mxu0 0.0
    %2270 = vmatpush1.msra.mxu0 0.0
    %2271 = vmatprep.subr.mxu0 0.0
    %2272 = vmatpush1.msra.mxu0 0.0
    %2273 = vmatprep.subr.mxu0 0.0
    %2274 = vmatpush1.msra.mxu0 0.0
    %2275 = vmatprep.subr.mxu0 0.0
    %2276 = vmatpush1.msra.mxu0 0.0
    %2277 = vmatprep.mubr.f32.mxu0 0.0
    %2278 = vmatmul.mubr.f32.gmra.mrb[0].mxu0 %v2211
    %v2279 = vpop.f32.mrb[0].mxu0
    %v2280 = vadd.f32 0.0, %v2279
    %v2281 = vpop.f32.mrb[0].mxu0
    %2282 = vdwg.mxu0
    %2283 = vst.msk [vmem:[#allocation2] sm:$0xff] %vm279, %v2280
    %2284 = vrot.lane.b32.xlu0 %v2095, 120
    %v2285 = vpop.permute.xlu0 %2284
    %2286 = vrot.lane.b32.xlu0 %v2105, 88
    %v2287 = vpop.permute.xlu0 %2286
    %v2288 = vsel %vm279, %v2285, 0
    %v2290 = vsel %vm279, %v2287, 0
    %2292 = vmatprep.subr.mxu0 0.0
    %2293 = vmatpush1.xpose.msra.mxu0 %v2290
    %2294 = vmatprep.subr.mxu0 0.0
    %2295 = vmatpush1.xpose.msra.mxu0 0.0
    %2296 = vmatprep.subr.mxu0 0.0
    %2297 = vmatpush1.xpose.msra.mxu0 0.0
    %2298 = vmatprep.subr.mxu0 0.0
    %2299 = vmatpush1.xpose.msra.mxu0 0.0
    %2300 = vmatprep.subr.mxu0 0.0
    %2301 = vmatpush1.xpose.msra.mxu0 0.0
    %2302 = vmatprep.subr.mxu0 0.0
    %2303 = vmatpush1.xpose.msra.mxu0 0.0
    %2304 = vmatprep.subr.mxu0 0.0
    %2305 = vmatpush1.xpose.msra.mxu0 0.0
    %2306 = vmatprep.subr.mxu0 0.0
    %2307 = vmatpush1.xpose.msra.mxu0 0.0
    %2308 = vmatprep.subr.mxu0 0.0
    %2309 = vmatpush1.xpose.msra.mxu0 0.0
    %2310 = vmatprep.subr.mxu0 0.0
    %2311 = vmatpush1.xpose.msra.mxu0 0.0
    %2312 = vmatprep.subr.mxu0 0.0
    %2313 = vmatpush1.xpose.msra.mxu0 0.0
    %2314 = vmatprep.subr.mxu0 0.0
    %2315 = vmatpush1.xpose.msra.mxu0 0.0
    %2316 = vmatprep.subr.mxu0 0.0
    %2317 = vmatpush1.xpose.msra.mxu0 0.0
    %2318 = vmatprep.subr.mxu0 0.0
    %2319 = vmatpush1.xpose.msra.mxu0 0.0
    %2320 = vmatprep.subr.mxu0 0.0
    %2321 = vmatpush1.xpose.msra.mxu0 0.0
    %2322 = vmatprep.subr.mxu0 0.0
    %2323 = vmatpush1.xpose.msra.mxu0 0.0
    %2324 = vmatprep.subr.mxu0 0.0
    %2325 = vmatpush1.xpose.msra.mxu0 0.0
    %2326 = vmatprep.subr.mxu0 0.0
    %2327 = vmatpush1.xpose.msra.mxu0 0.0
    %2328 = vmatprep.subr.mxu0 0.0
    %2329 = vmatpush1.xpose.msra.mxu0 0.0
    %2330 = vmatprep.subr.mxu0 0.0
    %2331 = vmatpush1.xpose.msra.mxu0 0.0
    %2332 = vmatprep.subr.mxu0 0.0
    %2333 = vmatpush1.xpose.msra.mxu0 0.0
    %2334 = vmatprep.subr.mxu0 0.0
    %2335 = vmatpush1.xpose.msra.mxu0 0.0
    %2336 = vmatprep.subr.mxu0 0.0
    %2337 = vmatpush1.xpose.msra.mxu0 0.0
    %2338 = vmatprep.subr.mxu0 0.0
    %2339 = vmatpush1.xpose.msra.mxu0 0.0
    %2340 = vmatprep.subr.mxu0 0.0
    %2341 = vmatpush1.xpose.msra.mxu0 0.0
    %2342 = vmatprep.subr.mxu0 0.0
    %2343 = vmatpush1.xpose.msra.mxu0 0.0
    %2344 = vmatprep.subr.mxu0 0.0
    %2345 = vmatpush1.xpose.msra.mxu0 0.0
    %2346 = vmatprep.subr.mxu0 0.0
    %2347 = vmatpush1.xpose.msra.mxu0 0.0
    %2348 = vmatprep.subr.mxu0 0.0
    %2349 = vmatpush1.xpose.msra.mxu0 0.0
    %2350 = vmatprep.subr.mxu0 0.0
    %2351 = vmatpush1.xpose.msra.mxu0 0.0
    %2352 = vmatprep.subr.mxu0 0.0
    %2353 = vmatpush1.xpose.msra.mxu0 0.0
    %2354 = vmatprep.subr.mxu0 0.0
    %2355 = vmatpush1.xpose.msra.mxu0 0.0
    %2356 = vmatprep.mubr.f32.mxu0 0.0
    %2357 = vmatmul.mubr.f32.gmra.mrb[0].mxu0 %v2288
    %v2358 = vpop.f32.mrb[0].mxu0
    %v2359 = vadd.f32 %v275, %v2358
    %v2360 = vpop.f32.mrb[0].mxu0
    %2361 = vdwg.mxu0
    %v2362 = vsel %vm279, %v2359, -inf
    %2363 = vmax.xlane.f32.xlu0 %v2362
    %v2364 = vpop.xlane.xlu0 %2363
    %v2365 = vsub.f32 %v2359, %v2364
    %v2366 = vmul.f32 %v2365, 1.442695
    %v2367 = vpow.pop %v2366
    %v2368 = vsel %vm279, %v2367, 0.0
    %2369 = vadd.xlane.f32.xlu0 %v2368
    %v2370 = vpop.xlane.xlu0 %2369
    %v2371 = vrcp.pop %v2370
    %v2372 = vmul.f32 %v2367, %v2371
    %2373 = vrot.lane.b32.xlu0 %v2115, 56
    %v2374 = vpop.permute.xlu0 %2373
    %v2377 = vsel %vm279, %v2372, 0
    %2379 = vmatprep.subr.mxu0 0.0
    %2380 = vmatpush1.msra.mxu0 %v2374
    %2381 = vmatprep.subr.mxu0 0.0
    %2382 = vmatpush1.msra.mxu0 0.0
    %2383 = vmatprep.subr.mxu0 0.0
    %2384 = vmatpush1.msra.mxu0 0.0
    %2385 = vmatprep.subr.mxu0 0.0
    %2386 = vmatpush1.msra.mxu0 0.0
    %2387 = vmatprep.subr.mxu0 0.0
    %2388 = vmatpush1.msra.mxu0 0.0
    %2389 = vmatprep.subr.mxu0 0.0
    %2390 = vmatpush1.msra.mxu0 0.0
    %2391 = vmatprep.subr.mxu0 0.0
    %2392 = vmatpush1.msra.mxu0 0.0
    %2393 = vmatprep.subr.mxu0 0.0
    %2394 = vmatpush1.msra.mxu0 0.0
    %2395 = vmatprep.subr.mxu0 0.0
    %2396 = vmatpush1.msra.mxu0 0.0
    %2397 = vmatprep.subr.mxu0 0.0
    %2398 = vmatpush1.msra.mxu0 0.0
    %2399 = vmatprep.subr.mxu0 0.0
    %2400 = vmatpush1.msra.mxu0 0.0
    %2401 = vmatprep.subr.mxu0 0.0
    %2402 = vmatpush1.msra.mxu0 0.0
    %2403 = vmatprep.subr.mxu0 0.0
    %2404 = vmatpush1.msra.mxu0 0.0
    %2405 = vmatprep.subr.mxu0 0.0
    %2406 = vmatpush1.msra.mxu0 0.0
    %2407 = vmatprep.subr.mxu0 0.0
    %2408 = vmatpush1.msra.mxu0 0.0
    %2409 = vmatprep.subr.mxu0 0.0
    %2410 = vmatpush1.msra.mxu0 0.0
    %2411 = vmatprep.subr.mxu0 0.0
    %2412 = vmatpush1.msra.mxu0 0.0
    %2413 = vmatprep.subr.mxu0 0.0
    %2414 = vmatpush1.msra.mxu0 0.0
    %2415 = vmatprep.subr.mxu0 0.0
    %2416 = vmatpush1.msra.mxu0 0.0
    %2417 = vmatprep.subr.mxu0 0.0
    %2418 = vmatpush1.msra.mxu0 0.0
    %2419 = vmatprep.subr.mxu0 0.0
    %2420 = vmatpush1.msra.mxu0 0.0
    %2421 = vmatprep.subr.mxu0 0.0
    %2422 = vmatpush1.msra.mxu0 0.0
    %2423 = vmatprep.subr.mxu0 0.0
    %2424 = vmatpush1.msra.mxu0 0.0
    %2425 = vmatprep.subr.mxu0 0.0
    %2426 = vmatpush1.msra.mxu0 0.0
    %2427 = vmatprep.subr.mxu0 0.0
    %2428 = vmatpush1.msra.mxu0 0.0
    %2429 = vmatprep.subr.mxu0 0.0
    %2430 = vmatpush1.msra.mxu0 0.0
    %2431 = vmatprep.subr.mxu0 0.0
    %2432 = vmatpush1.msra.mxu0 0.0
    %2433 = vmatprep.subr.mxu0 0.0
    %2434 = vmatpush1.msra.mxu0 0.0
    %2435 = vmatprep.subr.mxu0 0.0
    %2436 = vmatpush1.msra.mxu0 0.0
    %2437 = vmatprep.subr.mxu0 0.0
    %2438 = vmatpush1.msra.mxu0 0.0
    %2439 = vmatprep.subr.mxu0 0.0
    %2440 = vmatpush1.msra.mxu0 0.0
    %2441 = vmatprep.subr.mxu0 0.0
    %2442 = vmatpush1.msra.mxu0 0.0
    %2443 = vmatprep.mubr.f32.mxu0 0.0
    %2444 = vmatmul.mubr.f32.gmra.mrb[0].mxu0 %v2377
    %v2445 = vpop.f32.mrb[0].mxu0
    %v2446 = vadd.f32 0.0, %v2445
    %v2447 = vpop.f32.mrb[0].mxu0
    %2448 = vdwg.mxu0
    %2450 = vrot.lane.b32.xlu0 %v2446, 8
    %v2451 = vpop.permute.xlu0 %2450
    %2453 = vst.msk [vmem:[#allocation2] sm:$0xff] %vm613, %v2451
    %2454 = vrot.lane.b32.xlu0 %v2095, 112
    %v2455 = vpop.permute.xlu0 %2454
    %2456 = vrot.lane.b32.xlu0 %v2105, 80
    %v2457 = vpop.permute.xlu0 %2456
    %v2458 = vsel %vm279, %v2455, 0
    %v2460 = vsel %vm279, %v2457, 0
    %2462 = vmatprep.subr.mxu0 0.0
    %2463 = vmatpush1.xpose.msra.mxu0 %v2460
    %2464 = vmatprep.subr.mxu0 0.0
    %2465 = vmatpush1.xpose.msra.mxu0 0.0
    %2466 = vmatprep.subr.mxu0 0.0
    %2467 = vmatpush1.xpose.msra.mxu0 0.0
    %2468 = vmatprep.subr.mxu0 0.0
    %2469 = vmatpush1.xpose.msra.mxu0 0.0
    %2470 = vmatprep.subr.mxu0 0.0
    %2471 = vmatpush1.xpose.msra.mxu0 0.0
    %2472 = vmatprep.subr.mxu0 0.0
    %2473 = vmatpush1.xpose.msra.mxu0 0.0
    %2474 = vmatprep.subr.mxu0 0.0
    %2475 = vmatpush1.xpose.msra.mxu0 0.0
    %2476 = vmatprep.subr.mxu0 0.0
    %2477 = vmatpush1.xpose.msra.mxu0 0.0
    %2478 = vmatprep.subr.mxu0 0.0
    %2479 = vmatpush1.xpose.msra.mxu0 0.0
    %2480 = vmatprep.subr.mxu0 0.0
    %2481 = vmatpush1.xpose.msra.mxu0 0.0
    %2482 = vmatprep.subr.mxu0 0.0
    %2483 = vmatpush1.xpose.msra.mxu0 0.0
    %2484 = vmatprep.subr.mxu0 0.0
    %2485 = vmatpush1.xpose.msra.mxu0 0.0
    %2486 = vmatprep.subr.mxu0 0.0
    %2487 = vmatpush1.xpose.msra.mxu0 0.0
    %2488 = vmatprep.subr.mxu0 0.0
    %2489 = vmatpush1.xpose.msra.mxu0 0.0
    %2490 = vmatprep.subr.mxu0 0.0
    %2491 = vmatpush1.xpose.msra.mxu0 0.0
    %2492 = vmatprep.subr.mxu0 0.0
    %2493 = vmatpush1.xpose.msra.mxu0 0.0
    %2494 = vmatprep.subr.mxu0 0.0
    %2495 = vmatpush1.xpose.msra.mxu0 0.0
    %2496 = vmatprep.subr.mxu0 0.0
    %2497 = vmatpush1.xpose.msra.mxu0 0.0
    %2498 = vmatprep.subr.mxu0 0.0
    %2499 = vmatpush1.xpose.msra.mxu0 0.0
    %2500 = vmatprep.subr.mxu0 0.0
    %2501 = vmatpush1.xpose.msra.mxu0 0.0
    %2502 = vmatprep.subr.mxu0 0.0
    %2503 = vmatpush1.xpose.msra.mxu0 0.0
    %2504 = vmatprep.subr.mxu0 0.0
    %2505 = vmatpush1.xpose.msra.mxu0 0.0
    %2506 = vmatprep.subr.mxu0 0.0
    %2507 = vmatpush1.xpose.msra.mxu0 0.0
    %2508 = vmatprep.subr.mxu0 0.0
    %2509 = vmatpush1.xpose.msra.mxu0 0.0
    %2510 = vmatprep.subr.mxu0 0.0
    %2511 = vmatpush1.xpose.msra.mxu0 0.0
    %2512 = vmatprep.subr.mxu0 0.0
    %2513 = vmatpush1.xpose.msra.mxu0 0.0
    %2514 = vmatprep.subr.mxu0 0.0
    %2515 = vmatpush1.xpose.msra.mxu0 0.0
    %2516 = vmatprep.subr.mxu0 0.0
    %2517 = vmatpush1.xpose.msra.mxu0 0.0
    %2518 = vmatprep.subr.mxu0 0.0
    %2519 = vmatpush1.xpose.msra.mxu0 0.0
    %2520 = vmatprep.subr.mxu0 0.0
    %2521 = vmatpush1.xpose.msra.mxu0 0.0
    %2522 = vmatprep.subr.mxu0 0.0
    %2523 = vmatpush1.xpose.msra.mxu0 0.0
    %2524 = vmatprep.subr.mxu0 0.0
    %2525 = vmatpush1.xpose.msra.mxu0 0.0
    %2526 = vmatprep.mubr.f32.mxu0 0.0
    %2527 = vmatmul.mubr.f32.gmra.mrb[0].mxu0 %v2458
    %v2528 = vpop.f32.mrb[0].mxu0
    %v2529 = vadd.f32 %v275, %v2528
    %v2530 = vpop.f32.mrb[0].mxu0
    %2531 = vdwg.mxu0
    %v2532 = vsel %vm279, %v2529, -inf
    %2533 = vmax.xlane.f32.xlu0 %v2532
    %v2534 = vpop.xlane.xlu0 %2533
    %v2535 = vsub.f32 %v2529, %v2534
    %v2536 = vmul.f32 %v2535, 1.442695
    %v2537 = vpow.pop %v2536
    %v2538 = vsel %vm279, %v2537, 0.0
    %2539 = vadd.xlane.f32.xlu0 %v2538
    %v2540 = vpop.xlane.xlu0 %2539
    %v2541 = vrcp.pop %v2540
    %v2542 = vmul.f32 %v2537, %v2541
    %2543 = vrot.lane.b32.xlu0 %v2115, 48
    %v2544 = vpop.permute.xlu0 %2543
    %v2547 = vsel %vm279, %v2542, 0
    %2549 = vmatprep.subr.mxu0 0.0
    %2550 = vmatpush1.msra.mxu0 %v2544
    %2551 = vmatprep.subr.mxu0 0.0
    %2552 = vmatpush1.msra.mxu0 0.0
    %2553 = vmatprep.subr.mxu0 0.0
    %2554 = vmatpush1.msra.mxu0 0.0
    %2555 = vmatprep.subr.mxu0 0.0
    %2556 = vmatpush1.msra.mxu0 0.0
    %2557 = vmatprep.subr.mxu0 0.0
    %2558 = vmatpush1.msra.mxu0 0.0
    %2559 = vmatprep.subr.mxu0 0.0
    %2560 = vmatpush1.msra.mxu0 0.0
    %2561 = vmatprep.subr.mxu0 0.0
    %2562 = vmatpush1.msra.mxu0 0.0
    %2563 = vmatprep.subr.mxu0 0.0
    %2564 = vmatpush1.msra.mxu0 0.0
    %2565 = vmatprep.subr.mxu0 0.0
    %2566 = vmatpush1.msra.mxu0 0.0
    %2567 = vmatprep.subr.mxu0 0.0
    %2568 = vmatpush1.msra.mxu0 0.0
    %2569 = vmatprep.subr.mxu0 0.0
    %2570 = vmatpush1.msra.mxu0 0.0
    %2571 = vmatprep.subr.mxu0 0.0
    %2572 = vmatpush1.msra.mxu0 0.0
    %2573 = vmatprep.subr.mxu0 0.0
    %2574 = vmatpush1.msra.mxu0 0.0
    %2575 = vmatprep.subr.mxu0 0.0
    %2576 = vmatpush1.msra.mxu0 0.0
    %2577 = vmatprep.subr.mxu0 0.0
    %2578 = vmatpush1.msra.mxu0 0.0
    %2579 = vmatprep.subr.mxu0 0.0
    %2580 = vmatpush1.msra.mxu0 0.0
    %2581 = vmatprep.subr.mxu0 0.0
    %2582 = vmatpush1.msra.mxu0 0.0
    %2583 = vmatprep.subr.mxu0 0.0
    %2584 = vmatpush1.msra.mxu0 0.0
    %2585 = vmatprep.subr.mxu0 0.0
    %2586 = vmatpush1.msra.mxu0 0.0
    %2587 = vmatprep.subr.mxu0 0.0
    %2588 = vmatpush1.msra.mxu0 0.0
    %2589 = vmatprep.subr.mxu0 0.0
    %2590 = vmatpush1.msra.mxu0 0.0
    %2591 = vmatprep.subr.mxu0 0.0
    %2592 = vmatpush1.msra.mxu0 0.0
    %2593 = vmatprep.subr.mxu0 0.0
    %2594 = vmatpush1.msra.mxu0 0.0
    %2595 = vmatprep.subr.mxu0 0.0
    %2596 = vmatpush1.msra.mxu0 0.0
    %2597 = vmatprep.subr.mxu0 0.0
    %2598 = vmatpush1.msra.mxu0 0.0
    %2599 = vmatprep.subr.mxu0 0.0
    %2600 = vmatpush1.msra.mxu0 0.0
    %2601 = vmatprep.subr.mxu0 0.0
    %2602 = vmatpush1.msra.mxu0 0.0
    %2603 = vmatprep.subr.mxu0 0.0
    %2604 = vmatpush1.msra.mxu0 0.0
    %2605 = vmatprep.subr.mxu0 0.0
    %2606 = vmatpush1.msra.mxu0 0.0
    %2607 = vmatprep.subr.mxu0 0.0
    %2608 = vmatpush1.msra.mxu0 0.0
    %2609 = vmatprep.subr.mxu0 0.0
    %2610 = vmatpush1.msra.mxu0 0.0
    %2611 = vmatprep.subr.mxu0 0.0
    %2612 = vmatpush1.msra.mxu0 0.0
    %2613 = vmatprep.mubr.f32.mxu0 0.0
    %2614 = vmatmul.mubr.f32.gmra.mrb[0].mxu0 %v2547
    %v2615 = vpop.f32.mrb[0].mxu0
    %v2616 = vadd.f32 0.0, %v2615
    %v2617 = vpop.f32.mrb[0].mxu0
    %2618 = vdwg.mxu0
    %2620 = vrot.lane.b32.xlu0 %v2616, 16
    %v2621 = vpop.permute.xlu0 %2620
    %2623 = vst.msk [vmem:[#allocation2] sm:$0xff] %vm784, %v2621
    %2624 = vrot.lane.b32.xlu0 %v2095, 104
    %v2625 = vpop.permute.xlu0 %2624
    %2626 = vrot.lane.b32.xlu0 %v2105, 72
    %v2627 = vpop.permute.xlu0 %2626
    %v2628 = vsel %vm279, %v2625, 0
    %v2630 = vsel %vm279, %v2627, 0
    %2632 = vmatprep.subr.mxu0 0.0
    %2633 = vmatpush1.xpose.msra.mxu0 %v2630
    %2634 = vmatprep.subr.mxu0 0.0
    %2635 = vmatpush1.xpose.msra.mxu0 0.0
    %2636 = vmatprep.subr.mxu0 0.0
    %2637 = vmatpush1.xpose.msra.mxu0 0.0
    %2638 = vmatprep.subr.mxu0 0.0
    %2639 = vmatpush1.xpose.msra.mxu0 0.0
    %2640 = vmatprep.subr.mxu0 0.0
    %2641 = vmatpush1.xpose.msra.mxu0 0.0
    %2642 = vmatprep.subr.mxu0 0.0
    %2643 = vmatpush1.xpose.msra.mxu0 0.0
    %2644 = vmatprep.subr.mxu0 0.0
    %2645 = vmatpush1.xpose.msra.mxu0 0.0
    %2646 = vmatprep.subr.mxu0 0.0
    %2647 = vmatpush1.xpose.msra.mxu0 0.0
    %2648 = vmatprep.subr.mxu0 0.0
    %2649 = vmatpush1.xpose.msra.mxu0 0.0
    %2650 = vmatprep.subr.mxu0 0.0
    %2651 = vmatpush1.xpose.msra.mxu0 0.0
    %2652 = vmatprep.subr.mxu0 0.0
    %2653 = vmatpush1.xpose.msra.mxu0 0.0
    %2654 = vmatprep.subr.mxu0 0.0
    %2655 = vmatpush1.xpose.msra.mxu0 0.0
    %2656 = vmatprep.subr.mxu0 0.0
    %2657 = vmatpush1.xpose.msra.mxu0 0.0
    %2658 = vmatprep.subr.mxu0 0.0
    %2659 = vmatpush1.xpose.msra.mxu0 0.0
    %2660 = vmatprep.subr.mxu0 0.0
    %2661 = vmatpush1.xpose.msra.mxu0 0.0
    %2662 = vmatprep.subr.mxu0 0.0
    %2663 = vmatpush1.xpose.msra.mxu0 0.0
    %2664 = vmatprep.subr.mxu0 0.0
    %2665 = vmatpush1.xpose.msra.mxu0 0.0
    %2666 = vmatprep.subr.mxu0 0.0
    %2667 = vmatpush1.xpose.msra.mxu0 0.0
    %2668 = vmatprep.subr.mxu0 0.0
    %2669 = vmatpush1.xpose.msra.mxu0 0.0
    %2670 = vmatprep.subr.mxu0 0.0
    %2671 = vmatpush1.xpose.msra.mxu0 0.0
    %2672 = vmatprep.subr.mxu0 0.0
    %2673 = vmatpush1.xpose.msra.mxu0 0.0
    %2674 = vmatprep.subr.mxu0 0.0
    %2675 = vmatpush1.xpose.msra.mxu0 0.0
    %2676 = vmatprep.subr.mxu0 0.0
    %2677 = vmatpush1.xpose.msra.mxu0 0.0
    %2678 = vmatprep.subr.mxu0 0.0
    %2679 = vmatpush1.xpose.msra.mxu0 0.0
    %2680 = vmatprep.subr.mxu0 0.0
    %2681 = vmatpush1.xpose.msra.mxu0 0.0
    %2682 = vmatprep.subr.mxu0 0.0
    %2683 = vmatpush1.xpose.msra.mxu0 0.0
    %2684 = vmatprep.subr.mxu0 0.0
    %2685 = vmatpush1.xpose.msra.mxu0 0.0
    %2686 = vmatprep.subr.mxu0 0.0
    %2687 = vmatpush1.xpose.msra.mxu0 0.0
    %2688 = vmatprep.subr.mxu0 0.0
    %2689 = vmatpush1.xpose.msra.mxu0 0.0
    %2690 = vmatprep.subr.mxu0 0.0
    %2691 = vmatpush1.xpose.msra.mxu0 0.0
    %2692 = vmatprep.subr.mxu0 0.0
    %2693 = vmatpush1.xpose.msra.mxu0 0.0
    %2694 = vmatprep.subr.mxu0 0.0
    %2695 = vmatpush1.xpose.msra.mxu0 0.0
    %2696 = vmatprep.mubr.f32.mxu0 0.0
    %2697 = vmatmul.mubr.f32.gmra.mrb[0].mxu0 %v2628
    %v2698 = vpop.f32.mrb[0].mxu0
    %v2699 = vadd.f32 %v275, %v2698
    %v2700 = vpop.f32.mrb[0].mxu0
    %2701 = vdwg.mxu0
    %v2702 = vsel %vm279, %v2699, -inf
    %2703 = vmax.xlane.f32.xlu0 %v2702
    %v2704 = vpop.xlane.xlu0 %2703
    %v2705 = vsub.f32 %v2699, %v2704
    %v2706 = vmul.f32 %v2705, 1.442695
    %v2707 = vpow.pop %v2706
    %v2708 = vsel %vm279, %v2707, 0.0
    %2709 = vadd.xlane.f32.xlu0 %v2708
    %v2710 = vpop.xlane.xlu0 %2709
    %v2711 = vrcp.pop %v2710
    %v2712 = vmul.f32 %v2707, %v2711
    %2713 = vrot.lane.b32.xlu0 %v2115, 40
    %v2714 = vpop.permute.xlu0 %2713
    %v2717 = vsel %vm279, %v2712, 0
    %2719 = vmatprep.subr.mxu0 0.0
    %2720 = vmatpush1.msra.mxu0 %v2714
    %2721 = vmatprep.subr.mxu0 0.0
    %2722 = vmatpush1.msra.mxu0 0.0
    %2723 = vmatprep.subr.mxu0 0.0
    %2724 = vmatpush1.msra.mxu0 0.0
    %2725 = vmatprep.subr.mxu0 0.0
    %2726 = vmatpush1.msra.mxu0 0.0
    %2727 = vmatprep.subr.mxu0 0.0
    %2728 = vmatpush1.msra.mxu0 0.0
    %2729 = vmatprep.subr.mxu0 0.0
    %2730 = vmatpush1.msra.mxu0 0.0
    %2731 = vmatprep.subr.mxu0 0.0
    %2732 = vmatpush1.msra.mxu0 0.0
    %2733 = vmatprep.subr.mxu0 0.0
    %2734 = vmatpush1.msra.mxu0 0.0
    %2735 = vmatprep.subr.mxu0 0.0
    %2736 = vmatpush1.msra.mxu0 0.0
    %2737 = vmatprep.subr.mxu0 0.0
    %2738 = vmatpush1.msra.mxu0 0.0
    %2739 = vmatprep.subr.mxu0 0.0
    %2740 = vmatpush1.msra.mxu0 0.0
    %2741 = vmatprep.subr.mxu0 0.0
    %2742 = vmatpush1.msra.mxu0 0.0
    %2743 = vmatprep.subr.mxu0 0.0
    %2744 = vmatpush1.msra.mxu0 0.0
    %2745 = vmatprep.subr.mxu0 0.0
    %2746 = vmatpush1.msra.mxu0 0.0
    %2747 = vmatprep.subr.mxu0 0.0
    %2748 = vmatpush1.msra.mxu0 0.0
    %2749 = vmatprep.subr.mxu0 0.0
    %2750 = vmatpush1.msra.mxu0 0.0
    %2751 = vmatprep.subr.mxu0 0.0
    %2752 = vmatpush1.msra.mxu0 0.0
    %2753 = vmatprep.subr.mxu0 0.0
    %2754 = vmatpush1.msra.mxu0 0.0
    %2755 = vmatprep.subr.mxu0 0.0
    %2756 = vmatpush1.msra.mxu0 0.0
    %2757 = vmatprep.subr.mxu0 0.0
    %2758 = vmatpush1.msra.mxu0 0.0
    %2759 = vmatprep.subr.mxu0 0.0
    %2760 = vmatpush1.msra.mxu0 0.0
    %2761 = vmatprep.subr.mxu0 0.0
    %2762 = vmatpush1.msra.mxu0 0.0
    %2763 = vmatprep.subr.mxu0 0.0
    %2764 = vmatpush1.msra.mxu0 0.0
    %2765 = vmatprep.subr.mxu0 0.0
    %2766 = vmatpush1.msra.mxu0 0.0
    %2767 = vmatprep.subr.mxu0 0.0
    %2768 = vmatpush1.msra.mxu0 0.0
    %2769 = vmatprep.subr.mxu0 0.0
    %2770 = vmatpush1.msra.mxu0 0.0
    %2771 = vmatprep.subr.mxu0 0.0
    %2772 = vmatpush1.msra.mxu0 0.0
    %2773 = vmatprep.subr.mxu0 0.0
    %2774 = vmatpush1.msra.mxu0 0.0
    %2775 = vmatprep.subr.mxu0 0.0
    %2776 = vmatpush1.msra.mxu0 0.0
    %2777 = vmatprep.subr.mxu0 0.0
    %2778 = vmatpush1.msra.mxu0 0.0
    %2779 = vmatprep.subr.mxu0 0.0
    %2780 = vmatpush1.msra.mxu0 0.0
    %2781 = vmatprep.subr.mxu0 0.0
    %2782 = vmatpush1.msra.mxu0 0.0
    %2783 = vmatprep.mubr.f32.mxu0 0.0
    %2784 = vmatmul.mubr.f32.gmra.mrb[0].mxu0 %v2717
    %v2785 = vpop.f32.mrb[0].mxu0
    %v2786 = vadd.f32 0.0, %v2785
    %v2787 = vpop.f32.mrb[0].mxu0
    %2788 = vdwg.mxu0
    %2790 = vrot.lane.b32.xlu0 %v2786, 24
    %v2791 = vpop.permute.xlu0 %2790
    %2793 = vst.msk [vmem:[#allocation2] sm:$0xff] %vm955, %v2791
    %2795 = vrot.lane.b32.xlu0 %v2106, 96
    %v2796 = vpop.permute.xlu0 %2795
    %v2798 = vsel %vm279, %v2096, 0
    %v2800 = vsel %vm279, %v2796, 0
    %2802 = vmatprep.subr.mxu0 0.0
    %2803 = vmatpush1.xpose.msra.mxu0 %v2800
    %2804 = vmatprep.subr.mxu0 0.0
    %2805 = vmatpush1.xpose.msra.mxu0 0.0
    %2806 = vmatprep.subr.mxu0 0.0
    %2807 = vmatpush1.xpose.msra.mxu0 0.0
    %2808 = vmatprep.subr.mxu0 0.0
    %2809 = vmatpush1.xpose.msra.mxu0 0.0
    %2810 = vmatprep.subr.mxu0 0.0
    %2811 = vmatpush1.xpose.msra.mxu0 0.0
    %2812 = vmatprep.subr.mxu0 0.0
    %2813 = vmatpush1.xpose.msra.mxu0 0.0
    %2814 = vmatprep.subr.mxu0 0.0
    %2815 = vmatpush1.xpose.msra.mxu0 0.0
    %2816 = vmatprep.subr.mxu0 0.0
    %2817 = vmatpush1.xpose.msra.mxu0 0.0
    %2818 = vmatprep.subr.mxu0 0.0
    %2819 = vmatpush1.xpose.msra.mxu0 0.0
    %2820 = vmatprep.subr.mxu0 0.0
    %2821 = vmatpush1.xpose.msra.mxu0 0.0
    %2822 = vmatprep.subr.mxu0 0.0
    %2823 = vmatpush1.xpose.msra.mxu0 0.0
    %2824 = vmatprep.subr.mxu0 0.0
    %2825 = vmatpush1.xpose.msra.mxu0 0.0
    %2826 = vmatprep.subr.mxu0 0.0
    %2827 = vmatpush1.xpose.msra.mxu0 0.0
    %2828 = vmatprep.subr.mxu0 0.0
    %2829 = vmatpush1.xpose.msra.mxu0 0.0
    %2830 = vmatprep.subr.mxu0 0.0
    %2831 = vmatpush1.xpose.msra.mxu0 0.0
    %2832 = vmatprep.subr.mxu0 0.0
    %2833 = vmatpush1.xpose.msra.mxu0 0.0
    %2834 = vmatprep.subr.mxu0 0.0
    %2835 = vmatpush1.xpose.msra.mxu0 0.0
    %2836 = vmatprep.subr.mxu0 0.0
    %2837 = vmatpush1.xpose.msra.mxu0 0.0
    %2838 = vmatprep.subr.mxu0 0.0
    %2839 = vmatpush1.xpose.msra.mxu0 0.0
    %2840 = vmatprep.subr.mxu0 0.0
    %2841 = vmatpush1.xpose.msra.mxu0 0.0
    %2842 = vmatprep.subr.mxu0 0.0
    %2843 = vmatpush1.xpose.msra.mxu0 0.0
    %2844 = vmatprep.subr.mxu0 0.0
    %2845 = vmatpush1.xpose.msra.mxu0 0.0
    %2846 = vmatprep.subr.mxu0 0.0
    %2847 = vmatpush1.xpose.msra.mxu0 0.0
    %2848 = vmatprep.subr.mxu0 0.0
    %2849 = vmatpush1.xpose.msra.mxu0 0.0
    %2850 = vmatprep.subr.mxu0 0.0
    %2851 = vmatpush1.xpose.msra.mxu0 0.0
    %2852 = vmatprep.subr.mxu0 0.0
    %2853 = vmatpush1.xpose.msra.mxu0 0.0
    %2854 = vmatprep.subr.mxu0 0.0
    %2855 = vmatpush1.xpose.msra.mxu0 0.0
    %2856 = vmatprep.subr.mxu0 0.0
    %2857 = vmatpush1.xpose.msra.mxu0 0.0
    %2858 = vmatprep.subr.mxu0 0.0
    %2859 = vmatpush1.xpose.msra.mxu0 0.0
    %2860 = vmatprep.subr.mxu0 0.0
    %2861 = vmatpush1.xpose.msra.mxu0 0.0
    %2862 = vmatprep.subr.mxu0 0.0
    %2863 = vmatpush1.xpose.msra.mxu0 0.0
    %2864 = vmatprep.subr.mxu0 0.0
    %2865 = vmatpush1.xpose.msra.mxu0 0.0
    %2866 = vmatprep.mubr.f32.mxu0 0.0
    %2867 = vmatmul.mubr.f32.gmra.mrb[0].mxu0 %v2798
    %v2868 = vpop.f32.mrb[0].mxu0
    %v2869 = vadd.f32 %v960, %v2868
    %v2870 = vpop.f32.mrb[0].mxu0
    %2871 = vdwg.mxu0
    %v2872 = vsel %vm279, %v2869, -inf
    %2873 = vmax.xlane.f32.xlu0 %v2872
    %v2874 = vpop.xlane.xlu0 %2873
    %v2875 = vsub.f32 %v2869, %v2874
    %v2876 = vmul.f32 %v2875, 1.442695
    %v2877 = vpow.pop %v2876
    %v2878 = vsel %vm279, %v2877, 0.0
    %2879 = vadd.xlane.f32.xlu0 %v2878
    %v2880 = vpop.xlane.xlu0 %2879
    %v2881 = vrcp.pop %v2880
    %v2882 = vmul.f32 %v2877, %v2881
    %2884 = vrot.lane.b32.xlu0 %v2116, 64
    %v2885 = vpop.permute.xlu0 %2884
    %v2888 = vsel %vm279, %v2882, 0
    %2890 = vmatprep.subr.mxu0 0.0
    %2891 = vmatpush1.msra.mxu0 %v2885
    %2892 = vmatprep.subr.mxu0 0.0
    %2893 = vmatpush1.msra.mxu0 0.0
    %2894 = vmatprep.subr.mxu0 0.0
    %2895 = vmatpush1.msra.mxu0 0.0
    %2896 = vmatprep.subr.mxu0 0.0
    %2897 = vmatpush1.msra.mxu0 0.0
    %2898 = vmatprep.subr.mxu0 0.0
    %2899 = vmatpush1.msra.mxu0 0.0
    %2900 = vmatprep.subr.mxu0 0.0
    %2901 = vmatpush1.msra.mxu0 0.0
    %2902 = vmatprep.subr.mxu0 0.0
    %2903 = vmatpush1.msra.mxu0 0.0
    %2904 = vmatprep.subr.mxu0 0.0
    %2905 = vmatpush1.msra.mxu0 0.0
    %2906 = vmatprep.subr.mxu0 0.0
    %2907 = vmatpush1.msra.mxu0 0.0
    %2908 = vmatprep.subr.mxu0 0.0
    %2909 = vmatpush1.msra.mxu0 0.0
    %2910 = vmatprep.subr.mxu0 0.0
    %2911 = vmatpush1.msra.mxu0 0.0
    %2912 = vmatprep.subr.mxu0 0.0
    %2913 = vmatpush1.msra.mxu0 0.0
    %2914 = vmatprep.subr.mxu0 0.0
    %2915 = vmatpush1.msra.mxu0 0.0
    %2916 = vmatprep.subr.mxu0 0.0
    %2917 = vmatpush1.msra.mxu0 0.0
    %2918 = vmatprep.subr.mxu0 0.0
    %2919 = vmatpush1.msra.mxu0 0.0
    %2920 = vmatprep.subr.mxu0 0.0
    %2921 = vmatpush1.msra.mxu0 0.0
    %2922 = vmatprep.subr.mxu0 0.0
    %2923 = vmatpush1.msra.mxu0 0.0
    %2924 = vmatprep.subr.mxu0 0.0
    %2925 = vmatpush1.msra.mxu0 0.0
    %2926 = vmatprep.subr.mxu0 0.0
    %2927 = vmatpush1.msra.mxu0 0.0
    %2928 = vmatprep.subr.mxu0 0.0
    %2929 = vmatpush1.msra.mxu0 0.0
    %2930 = vmatprep.subr.mxu0 0.0
    %2931 = vmatpush1.msra.mxu0 0.0
    %2932 = vmatprep.subr.mxu0 0.0
    %2933 = vmatpush1.msra.mxu0 0.0
    %2934 = vmatprep.subr.mxu0 0.0
    %2935 = vmatpush1.msra.mxu0 0.0
    %2936 = vmatprep.subr.mxu0 0.0
    %2937 = vmatpush1.msra.mxu0 0.0
    %2938 = vmatprep.subr.mxu0 0.0
    %2939 = vmatpush1.msra.mxu0 0.0
    %2940 = vmatprep.subr.mxu0 0.0
    %2941 = vmatpush1.msra.mxu0 0.0
    %2942 = vmatprep.subr.mxu0 0.0
    %2943 = vmatpush1.msra.mxu0 0.0
    %2944 = vmatprep.subr.mxu0 0.0
    %2945 = vmatpush1.msra.mxu0 0.0
    %2946 = vmatprep.subr.mxu0 0.0
    %2947 = vmatpush1.msra.mxu0 0.0
    %2948 = vmatprep.subr.mxu0 0.0
    %2949 = vmatpush1.msra.mxu0 0.0
    %2950 = vmatprep.subr.mxu0 0.0
    %2951 = vmatpush1.msra.mxu0 0.0
    %2952 = vmatprep.subr.mxu0 0.0
    %2953 = vmatpush1.msra.mxu0 0.0
    %2954 = vmatprep.mubr.f32.mxu0 0.0
    %2955 = vmatmul.mubr.f32.gmra.mrb[0].mxu0 %v2888
    %v2956 = vpop.f32.mrb[0].mxu0
    %v2957 = vadd.f32 0.0, %v2956
    %v2958 = vpop.f32.mrb[0].mxu0
    %2959 = vdwg.mxu0
    %2960 = vst.msk [vmem:[#allocation2 + $0x8] sm:$0xff] %vm279, %v2957
    %2961 = vrot.lane.b32.xlu0 %v2096, 120
    %v2962 = vpop.permute.xlu0 %2961
    %2963 = vrot.lane.b32.xlu0 %v2106, 88
    %v2964 = vpop.permute.xlu0 %2963
    %v2965 = vsel %vm279, %v2962, 0
    %v2967 = vsel %vm279, %v2964, 0
    %2969 = vmatprep.subr.mxu0 0.0
    %2970 = vmatpush1.xpose.msra.mxu0 %v2967
    %2971 = vmatprep.subr.mxu0 0.0
    %2972 = vmatpush1.xpose.msra.mxu0 0.0
    %2973 = vmatprep.subr.mxu0 0.0
    %2974 = vmatpush1.xpose.msra.mxu0 0.0
    %2975 = vmatprep.subr.mxu0 0.0
    %2976 = vmatpush1.xpose.msra.mxu0 0.0
    %2977 = vmatprep.subr.mxu0 0.0
    %2978 = vmatpush1.xpose.msra.mxu0 0.0
    %2979 = vmatprep.subr.mxu0 0.0
    %2980 = vmatpush1.xpose.msra.mxu0 0.0
    %2981 = vmatprep.subr.mxu0 0.0
    %2982 = vmatpush1.xpose.msra.mxu0 0.0
    %2983 = vmatprep.subr.mxu0 0.0
    %2984 = vmatpush1.xpose.msra.mxu0 0.0
    %2985 = vmatprep.subr.mxu0 0.0
    %2986 = vmatpush1.xpose.msra.mxu0 0.0
    %2987 = vmatprep.subr.mxu0 0.0
    %2988 = vmatpush1.xpose.msra.mxu0 0.0
    %2989 = vmatprep.subr.mxu0 0.0
    %2990 = vmatpush1.xpose.msra.mxu0 0.0
    %2991 = vmatprep.subr.mxu0 0.0
    %2992 = vmatpush1.xpose.msra.mxu0 0.0
    %2993 = vmatprep.subr.mxu0 0.0
    %2994 = vmatpush1.xpose.msra.mxu0 0.0
    %2995 = vmatprep.subr.mxu0 0.0
    %2996 = vmatpush1.xpose.msra.mxu0 0.0
    %2997 = vmatprep.subr.mxu0 0.0
    %2998 = vmatpush1.xpose.msra.mxu0 0.0
    %2999 = vmatprep.subr.mxu0 0.0
    %3000 = vmatpush1.xpose.msra.mxu0 0.0
    %3001 = vmatprep.subr.mxu0 0.0
    %3002 = vmatpush1.xpose.msra.mxu0 0.0
    %3003 = vmatprep.subr.mxu0 0.0
    %3004 = vmatpush1.xpose.msra.mxu0 0.0
    %3005 = vmatprep.subr.mxu0 0.0
    %3006 = vmatpush1.xpose.msra.mxu0 0.0
    %3007 = vmatprep.subr.mxu0 0.0
    %3008 = vmatpush1.xpose.msra.mxu0 0.0
    %3009 = vmatprep.subr.mxu0 0.0
    %3010 = vmatpush1.xpose.msra.mxu0 0.0
    %3011 = vmatprep.subr.mxu0 0.0
    %3012 = vmatpush1.xpose.msra.mxu0 0.0
    %3013 = vmatprep.subr.mxu0 0.0
    %3014 = vmatpush1.xpose.msra.mxu0 0.0
    %3015 = vmatprep.subr.mxu0 0.0
    %3016 = vmatpush1.xpose.msra.mxu0 0.0
    %3017 = vmatprep.subr.mxu0 0.0
    %3018 = vmatpush1.xpose.msra.mxu0 0.0
    %3019 = vmatprep.subr.mxu0 0.0
    %3020 = vmatpush1.xpose.msra.mxu0 0.0
    %3021 = vmatprep.subr.mxu0 0.0
    %3022 = vmatpush1.xpose.msra.mxu0 0.0
    %3023 = vmatprep.subr.mxu0 0.0
    %3024 = vmatpush1.xpose.msra.mxu0 0.0
    %3025 = vmatprep.subr.mxu0 0.0
    %3026 = vmatpush1.xpose.msra.mxu0 0.0
    %3027 = vmatprep.subr.mxu0 0.0
    %3028 = vmatpush1.xpose.msra.mxu0 0.0
    %3029 = vmatprep.subr.mxu0 0.0
    %3030 = vmatpush1.xpose.msra.mxu0 0.0
    %3031 = vmatprep.subr.mxu0 0.0
    %3032 = vmatpush1.xpose.msra.mxu0 0.0
    %3033 = vmatprep.mubr.f32.mxu0 0.0
    %3034 = vmatmul.mubr.f32.gmra.mrb[0].mxu0 %v2965
    %v3035 = vpop.f32.mrb[0].mxu0
    %v3036 = vadd.f32 %v960, %v3035
    %v3037 = vpop.f32.mrb[0].mxu0
    %3038 = vdwg.mxu0
    %v3039 = vsel %vm279, %v3036, -inf
    %3040 = vmax.xlane.f32.xlu0 %v3039
    %v3041 = vpop.xlane.xlu0 %3040
    %v3042 = vsub.f32 %v3036, %v3041
    %v3043 = vmul.f32 %v3042, 1.442695
    %v3044 = vpow.pop %v3043
    %v3045 = vsel %vm279, %v3044, 0.0
    %3046 = vadd.xlane.f32.xlu0 %v3045
    %v3047 = vpop.xlane.xlu0 %3046
    %v3048 = vrcp.pop %v3047
    %v3049 = vmul.f32 %v3044, %v3048
    %3050 = vrot.lane.b32.xlu0 %v2116, 56
    %v3051 = vpop.permute.xlu0 %3050
    %v3054 = vsel %vm279, %v3049, 0
    %3056 = vmatprep.subr.mxu0 0.0
    %3057 = vmatpush1.msra.mxu0 %v3051
    %3058 = vmatprep.subr.mxu0 0.0
    %3059 = vmatpush1.msra.mxu0 0.0
    %3060 = vmatprep.subr.mxu0 0.0
    %3061 = vmatpush1.msra.mxu0 0.0
    %3062 = vmatprep.subr.mxu0 0.0
    %3063 = vmatpush1.msra.mxu0 0.0
    %3064 = vmatprep.subr.mxu0 0.0
    %3065 = vmatpush1.msra.mxu0 0.0
    %3066 = vmatprep.subr.mxu0 0.0
    %3067 = vmatpush1.msra.mxu0 0.0
    %3068 = vmatprep.subr.mxu0 0.0
    %3069 = vmatpush1.msra.mxu0 0.0
    %3070 = vmatprep.subr.mxu0 0.0
    %3071 = vmatpush1.msra.mxu0 0.0
    %3072 = vmatprep.subr.mxu0 0.0
    %3073 = vmatpush1.msra.mxu0 0.0
    %3074 = vmatprep.subr.mxu0 0.0
    %3075 = vmatpush1.msra.mxu0 0.0
    %3076 = vmatprep.subr.mxu0 0.0
    %3077 = vmatpush1.msra.mxu0 0.0
    %3078 = vmatprep.subr.mxu0 0.0
    %3079 = vmatpush1.msra.mxu0 0.0
    %3080 = vmatprep.subr.mxu0 0.0
    %3081 = vmatpush1.msra.mxu0 0.0
    %3082 = vmatprep.subr.mxu0 0.0
    %3083 = vmatpush1.msra.mxu0 0.0
    %3084 = vmatprep.subr.mxu0 0.0
    %3085 = vmatpush1.msra.mxu0 0.0
    %3086 = vmatprep.subr.mxu0 0.0
    %3087 = vmatpush1.msra.mxu0 0.0
    %3088 = vmatprep.subr.mxu0 0.0
    %3089 = vmatpush1.msra.mxu0 0.0
    %3090 = vmatprep.subr.mxu0 0.0
    %3091 = vmatpush1.msra.mxu0 0.0
    %3092 = vmatprep.subr.mxu0 0.0
    %3093 = vmatpush1.msra.mxu0 0.0
    %3094 = vmatprep.subr.mxu0 0.0
    %3095 = vmatpush1.msra.mxu0 0.0
    %3096 = vmatprep.subr.mxu0 0.0
    %3097 = vmatpush1.msra.mxu0 0.0
    %3098 = vmatprep.subr.mxu0 0.0
    %3099 = vmatpush1.msra.mxu0 0.0
    %3100 = vmatprep.subr.mxu0 0.0
    %3101 = vmatpush1.msra.mxu0 0.0
    %3102 = vmatprep.subr.mxu0 0.0
    %3103 = vmatpush1.msra.mxu0 0.0
    %3104 = vmatprep.subr.mxu0 0.0
    %3105 = vmatpush1.msra.mxu0 0.0
    %3106 = vmatprep.subr.mxu0 0.0
    %3107 = vmatpush1.msra.mxu0 0.0
    %3108 = vmatprep.subr.mxu0 0.0
    %3109 = vmatpush1.msra.mxu0 0.0
    %3110 = vmatprep.subr.mxu0 0.0
    %3111 = vmatpush1.msra.mxu0 0.0
    %3112 = vmatprep.subr.mxu0 0.0
    %3113 = vmatpush1.msra.mxu0 0.0
    %3114 = vmatprep.subr.mxu0 0.0
    %3115 = vmatpush1.msra.mxu0 0.0
    %3116 = vmatprep.subr.mxu0 0.0
    %3117 = vmatpush1.msra.mxu0 0.0
    %3118 = vmatprep.subr.mxu0 0.0
    %3119 = vmatpush1.msra.mxu0 0.0
    %3120 = vmatprep.mubr.f32.mxu0 0.0
    %3121 = vmatmul.mubr.f32.gmra.mrb[0].mxu0 %v3054
    %v3122 = vpop.f32.mrb[0].mxu0
    %v3123 = vadd.f32 0.0, %v3122
    %v3124 = vpop.f32.mrb[0].mxu0
    %3125 = vdwg.mxu0
    %3127 = vrot.lane.b32.xlu0 %v3123, 8
    %v3128 = vpop.permute.xlu0 %3127
    %3130 = vst.msk [vmem:[#allocation2 + $0x8] sm:$0xff] %vm613, %v3128
    %3131 = vrot.lane.b32.xlu0 %v2096, 112
    %v3132 = vpop.permute.xlu0 %3131
    %3133 = vrot.lane.b32.xlu0 %v2106, 80
    %v3134 = vpop.permute.xlu0 %3133
    %v3135 = vsel %vm279, %v3132, 0
    %v3137 = vsel %vm279, %v3134, 0
    %3139 = vmatprep.subr.mxu0 0.0
    %3140 = vmatpush1.xpose.msra.mxu0 %v3137
    %3141 = vmatprep.subr.mxu0 0.0
    %3142 = vmatpush1.xpose.msra.mxu0 0.0
    %3143 = vmatprep.subr.mxu0 0.0
    %3144 = vmatpush1.xpose.msra.mxu0 0.0
    %3145 = vmatprep.subr.mxu0 0.0
    %3146 = vmatpush1.xpose.msra.mxu0 0.0
    %3147 = vmatprep.subr.mxu0 0.0
    %3148 = vmatpush1.xpose.msra.mxu0 0.0
    %3149 = vmatprep.subr.mxu0 0.0
    %3150 = vmatpush1.xpose.msra.mxu0 0.0
    %3151 = vmatprep.subr.mxu0 0.0
    %3152 = vmatpush1.xpose.msra.mxu0 0.0
    %3153 = vmatprep.subr.mxu0 0.0
    %3154 = vmatpush1.xpose.msra.mxu0 0.0
    %3155 = vmatprep.subr.mxu0 0.0
    %3156 = vmatpush1.xpose.msra.mxu0 0.0
    %3157 = vmatprep.subr.mxu0 0.0
    %3158 = vmatpush1.xpose.msra.mxu0 0.0
    %3159 = vmatprep.subr.mxu0 0.0
    %3160 = vmatpush1.xpose.msra.mxu0 0.0
    %3161 = vmatprep.subr.mxu0 0.0
    %3162 = vmatpush1.xpose.msra.mxu0 0.0
    %3163 = vmatprep.subr.mxu0 0.0
    %3164 = vmatpush1.xpose.msra.mxu0 0.0
    %3165 = vmatprep.subr.mxu0 0.0
    %3166 = vmatpush1.xpose.msra.mxu0 0.0
    %3167 = vmatprep.subr.mxu0 0.0
    %3168 = vmatpush1.xpose.msra.mxu0 0.0
    %3169 = vmatprep.subr.mxu0 0.0
    %3170 = vmatpush1.xpose.msra.mxu0 0.0
    %3171 = vmatprep.subr.mxu0 0.0
    %3172 = vmatpush1.xpose.msra.mxu0 0.0
    %3173 = vmatprep.subr.mxu0 0.0
    %3174 = vmatpush1.xpose.msra.mxu0 0.0
    %3175 = vmatprep.subr.mxu0 0.0
    %3176 = vmatpush1.xpose.msra.mxu0 0.0
    %3177 = vmatprep.subr.mxu0 0.0
    %3178 = vmatpush1.xpose.msra.mxu0 0.0
    %3179 = vmatprep.subr.mxu0 0.0
    %3180 = vmatpush1.xpose.msra.mxu0 0.0
    %3181 = vmatprep.subr.mxu0 0.0
    %3182 = vmatpush1.xpose.msra.mxu0 0.0
    %3183 = vmatprep.subr.mxu0 0.0
    %3184 = vmatpush1.xpose.msra.mxu0 0.0
    %3185 = vmatprep.subr.mxu0 0.0
    %3186 = vmatpush1.xpose.msra.mxu0 0.0
    %3187 = vmatprep.subr.mxu0 0.0
    %3188 = vmatpush1.xpose.msra.mxu0 0.0
    %3189 = vmatprep.subr.mxu0 0.0
    %3190 = vmatpush1.xpose.msra.mxu0 0.0
    %3191 = vmatprep.subr.mxu0 0.0
    %3192 = vmatpush1.xpose.msra.mxu0 0.0
    %3193 = vmatprep.subr.mxu0 0.0
    %3194 = vmatpush1.xpose.msra.mxu0 0.0
    %3195 = vmatprep.subr.mxu0 0.0
    %3196 = vmatpush1.xpose.msra.mxu0 0.0
    %3197 = vmatprep.subr.mxu0 0.0
    %3198 = vmatpush1.xpose.msra.mxu0 0.0
    %3199 = vmatprep.subr.mxu0 0.0
    %3200 = vmatpush1.xpose.msra.mxu0 0.0
    %3201 = vmatprep.subr.mxu0 0.0
    %3202 = vmatpush1.xpose.msra.mxu0 0.0
    %3203 = vmatprep.mubr.f32.mxu0 0.0
    %3204 = vmatmul.mubr.f32.gmra.mrb[0].mxu0 %v3135
    %v3205 = vpop.f32.mrb[0].mxu0
    %v3206 = vadd.f32 %v960, %v3205
    %v3207 = vpop.f32.mrb[0].mxu0
    %3208 = vdwg.mxu0
    %v3209 = vsel %vm279, %v3206, -inf
    %3210 = vmax.xlane.f32.xlu0 %v3209
    %v3211 = vpop.xlane.xlu0 %3210
    %v3212 = vsub.f32 %v3206, %v3211
    %v3213 = vmul.f32 %v3212, 1.442695
    %v3214 = vpow.pop %v3213
    %v3215 = vsel %vm279, %v3214, 0.0
    %3216 = vadd.xlane.f32.xlu0 %v3215
    %v3217 = vpop.xlane.xlu0 %3216
    %v3218 = vrcp.pop %v3217
    %v3219 = vmul.f32 %v3214, %v3218
    %3220 = vrot.lane.b32.xlu0 %v2116, 48
    %v3221 = vpop.permute.xlu0 %3220
    %v3224 = vsel %vm279, %v3219, 0
    %3226 = vmatprep.subr.mxu0 0.0
    %3227 = vmatpush1.msra.mxu0 %v3221
    %3228 = vmatprep.subr.mxu0 0.0
    %3229 = vmatpush1.msra.mxu0 0.0
    %3230 = vmatprep.subr.mxu0 0.0
    %3231 = vmatpush1.msra.mxu0 0.0
    %3232 = vmatprep.subr.mxu0 0.0
    %3233 = vmatpush1.msra.mxu0 0.0
    %3234 = vmatprep.subr.mxu0 0.0
    %3235 = vmatpush1.msra.mxu0 0.0
    %3236 = vmatprep.subr.mxu0 0.0
    %3237 = vmatpush1.msra.mxu0 0.0
    %3238 = vmatprep.subr.mxu0 0.0
    %3239 = vmatpush1.msra.mxu0 0.0
    %3240 = vmatprep.subr.mxu0 0.0
    %3241 = vmatpush1.msra.mxu0 0.0
    %3242 = vmatprep.subr.mxu0 0.0
    %3243 = vmatpush1.msra.mxu0 0.0
    %3244 = vmatprep.subr.mxu0 0.0
    %3245 = vmatpush1.msra.mxu0 0.0
    %3246 = vmatprep.subr.mxu0 0.0
    %3247 = vmatpush1.msra.mxu0 0.0
    %3248 = vmatprep.subr.mxu0 0.0
    %3249 = vmatpush1.msra.mxu0 0.0
    %3250 = vmatprep.subr.mxu0 0.0
    %3251 = vmatpush1.msra.mxu0 0.0
    %3252 = vmatprep.subr.mxu0 0.0
    %3253 = vmatpush1.msra.mxu0 0.0
    %3254 = vmatprep.subr.mxu0 0.0
    %3255 = vmatpush1.msra.mxu0 0.0
    %3256 = vmatprep.subr.mxu0 0.0
    %3257 = vmatpush1.msra.mxu0 0.0
    %3258 = vmatprep.subr.mxu0 0.0
    %3259 = vmatpush1.msra.mxu0 0.0
    %3260 = vmatprep.subr.mxu0 0.0
    %3261 = vmatpush1.msra.mxu0 0.0
    %3262 = vmatprep.subr.mxu0 0.0
    %3263 = vmatpush1.msra.mxu0 0.0
    %3264 = vmatprep.subr.mxu0 0.0
    %3265 = vmatpush1.msra.mxu0 0.0
    %3266 = vmatprep.subr.mxu0 0.0
    %3267 = vmatpush1.msra.mxu0 0.0
    %3268 = vmatprep.subr.mxu0 0.0
    %3269 = vmatpush1.msra.mxu0 0.0
    %3270 = vmatprep.subr.mxu0 0.0
    %3271 = vmatpush1.msra.mxu0 0.0
    %3272 = vmatprep.subr.mxu0 0.0
    %3273 = vmatpush1.msra.mxu0 0.0
    %3274 = vmatprep.subr.mxu0 0.0
    %3275 = vmatpush1.msra.mxu0 0.0
    %3276 = vmatprep.subr.mxu0 0.0
    %3277 = vmatpush1.msra.mxu0 0.0
    %3278 = vmatprep.subr.mxu0 0.0
    %3279 = vmatpush1.msra.mxu0 0.0
    %3280 = vmatprep.subr.mxu0 0.0
    %3281 = vmatpush1.msra.mxu0 0.0
    %3282 = vmatprep.subr.mxu0 0.0
    %3283 = vmatpush1.msra.mxu0 0.0
    %3284 = vmatprep.subr.mxu0 0.0
    %3285 = vmatpush1.msra.mxu0 0.0
    %3286 = vmatprep.subr.mxu0 0.0
    %3287 = vmatpush1.msra.mxu0 0.0
    %3288 = vmatprep.subr.mxu0 0.0
    %3289 = vmatpush1.msra.mxu0 0.0
    %3290 = vmatprep.mubr.f32.mxu0 0.0
    %3291 = vmatmul.mubr.f32.gmra.mrb[0].mxu0 %v3224
    %v3292 = vpop.f32.mrb[0].mxu0
    %v3293 = vadd.f32 0.0, %v3292
    %v3294 = vpop.f32.mrb[0].mxu0
    %3295 = vdwg.mxu0
    %3297 = vrot.lane.b32.xlu0 %v3293, 16
    %v3298 = vpop.permute.xlu0 %3297
    %3300 = vst.msk [vmem:[#allocation2 + $0x8] sm:$0xff] %vm784, %v3298
    %3301 = vrot.lane.b32.xlu0 %v2096, 104
    %v3302 = vpop.permute.xlu0 %3301
    %3303 = vrot.lane.b32.xlu0 %v2106, 72
    %v3304 = vpop.permute.xlu0 %3303
    %v3305 = vsel %vm279, %v3302, 0
    %v3307 = vsel %vm279, %v3304, 0
    %3309 = vmatprep.subr.mxu0 0.0
    %3310 = vmatpush1.xpose.msra.mxu0 %v3307
    %3311 = vmatprep.subr.mxu0 0.0
    %3312 = vmatpush1.xpose.msra.mxu0 0.0
    %3313 = vmatprep.subr.mxu0 0.0
    %3314 = vmatpush1.xpose.msra.mxu0 0.0
    %3315 = vmatprep.subr.mxu0 0.0
    %3316 = vmatpush1.xpose.msra.mxu0 0.0
    %3317 = vmatprep.subr.mxu0 0.0
    %3318 = vmatpush1.xpose.msra.mxu0 0.0
    %3319 = vmatprep.subr.mxu0 0.0
    %3320 = vmatpush1.xpose.msra.mxu0 0.0
    %3321 = vmatprep.subr.mxu0 0.0
    %3322 = vmatpush1.xpose.msra.mxu0 0.0
    %3323 = vmatprep.subr.mxu0 0.0
    %3324 = vmatpush1.xpose.msra.mxu0 0.0
    %3325 = vmatprep.subr.mxu0 0.0
    %3326 = vmatpush1.xpose.msra.mxu0 0.0
    %3327 = vmatprep.subr.mxu0 0.0
    %3328 = vmatpush1.xpose.msra.mxu0 0.0
    %3329 = vmatprep.subr.mxu0 0.0
    %3330 = vmatpush1.xpose.msra.mxu0 0.0
    %3331 = vmatprep.subr.mxu0 0.0
    %3332 = vmatpush1.xpose.msra.mxu0 0.0
    %3333 = vmatprep.subr.mxu0 0.0
    %3334 = vmatpush1.xpose.msra.mxu0 0.0
    %3335 = vmatprep.subr.mxu0 0.0
    %3336 = vmatpush1.xpose.msra.mxu0 0.0
    %3337 = vmatprep.subr.mxu0 0.0
    %3338 = vmatpush1.xpose.msra.mxu0 0.0
    %3339 = vmatprep.subr.mxu0 0.0
    %3340 = vmatpush1.xpose.msra.mxu0 0.0
    %3341 = vmatprep.subr.mxu0 0.0
    %3342 = vmatpush1.xpose.msra.mxu0 0.0
    %3343 = vmatprep.subr.mxu0 0.0
    %3344 = vmatpush1.xpose.msra.mxu0 0.0
    %3345 = vmatprep.subr.mxu0 0.0
    %3346 = vmatpush1.xpose.msra.mxu0 0.0
    %3347 = vmatprep.subr.mxu0 0.0
    %3348 = vmatpush1.xpose.msra.mxu0 0.0
    %3349 = vmatprep.subr.mxu0 0.0
    %3350 = vmatpush1.xpose.msra.mxu0 0.0
    %3351 = vmatprep.subr.mxu0 0.0
    %3352 = vmatpush1.xpose.msra.mxu0 0.0
    %3353 = vmatprep.subr.mxu0 0.0
    %3354 = vmatpush1.xpose.msra.mxu0 0.0
    %3355 = vmatprep.subr.mxu0 0.0
    %3356 = vmatpush1.xpose.msra.mxu0 0.0
    %3357 = vmatprep.subr.mxu0 0.0
    %3358 = vmatpush1.xpose.msra.mxu0 0.0
    %3359 = vmatprep.subr.mxu0 0.0
    %3360 = vmatpush1.xpose.msra.mxu0 0.0
    %3361 = vmatprep.subr.mxu0 0.0
    %3362 = vmatpush1.xpose.msra.mxu0 0.0
    %3363 = vmatprep.subr.mxu0 0.0
    %3364 = vmatpush1.xpose.msra.mxu0 0.0
    %3365 = vmatprep.subr.mxu0 0.0
    %3366 = vmatpush1.xpose.msra.mxu0 0.0
    %3367 = vmatprep.subr.mxu0 0.0
    %3368 = vmatpush1.xpose.msra.mxu0 0.0
    %3369 = vmatprep.subr.mxu0 0.0
    %3370 = vmatpush1.xpose.msra.mxu0 0.0
    %3371 = vmatprep.subr.mxu0 0.0
    %3372 = vmatpush1.xpose.msra.mxu0 0.0
    %3373 = vmatprep.mubr.f32.mxu0 0.0
    %3374 = vmatmul.mubr.f32.gmra.mrb[0].mxu0 %v3305
    %v3375 = vpop.f32.mrb[0].mxu0
    %v3376 = vadd.f32 %v960, %v3375
    %v3377 = vpop.f32.mrb[0].mxu0
    %3378 = vdwg.mxu0
    %v3379 = vsel %vm279, %v3376, -inf
    %3380 = vmax.xlane.f32.xlu0 %v3379
    %v3381 = vpop.xlane.xlu0 %3380
    %v3382 = vsub.f32 %v3376, %v3381
    %v3383 = vmul.f32 %v3382, 1.442695
    %v3384 = vpow.pop %v3383
    %v3385 = vsel %vm279, %v3384, 0.0
    %3386 = vadd.xlane.f32.xlu0 %v3385
    %v3387 = vpop.xlane.xlu0 %3386
    %v3388 = vrcp.pop %v3387
    %v3389 = vmul.f32 %v3384, %v3388
    %3390 = vrot.lane.b32.xlu0 %v2116, 40
    %v3391 = vpop.permute.xlu0 %3390
    %v3394 = vsel %vm279, %v3389, 0
    %3396 = vmatprep.subr.mxu0 0.0
    %3397 = vmatpush1.msra.mxu0 %v3391
    %3398 = vmatprep.subr.mxu0 0.0
    %3399 = vmatpush1.msra.mxu0 0.0
    %3400 = vmatprep.subr.mxu0 0.0
    %3401 = vmatpush1.msra.mxu0 0.0
    %3402 = vmatprep.subr.mxu0 0.0
    %3403 = vmatpush1.msra.mxu0 0.0
    %3404 = vmatprep.subr.mxu0 0.0
    %3405 = vmatpush1.msra.mxu0 0.0
    %3406 = vmatprep.subr.mxu0 0.0
    %3407 = vmatpush1.msra.mxu0 0.0
    %3408 = vmatprep.subr.mxu0 0.0
    %3409 = vmatpush1.msra.mxu0 0.0
    %3410 = vmatprep.subr.mxu0 0.0
    %3411 = vmatpush1.msra.mxu0 0.0
    %3412 = vmatprep.subr.mxu0 0.0
    %3413 = vmatpush1.msra.mxu0 0.0
    %3414 = vmatprep.subr.mxu0 0.0
    %3415 = vmatpush1.msra.mxu0 0.0
    %3416 = vmatprep.subr.mxu0 0.0
    %3417 = vmatpush1.msra.mxu0 0.0
    %3418 = vmatprep.subr.mxu0 0.0
    %3419 = vmatpush1.msra.mxu0 0.0
    %3420 = vmatprep.subr.mxu0 0.0
    %3421 = vmatpush1.msra.mxu0 0.0
    %3422 = vmatprep.subr.mxu0 0.0
    %3423 = vmatpush1.msra.mxu0 0.0
    %3424 = vmatprep.subr.mxu0 0.0
    %3425 = vmatpush1.msra.mxu0 0.0
    %3426 = vmatprep.subr.mxu0 0.0
    %3427 = vmatpush1.msra.mxu0 0.0
    %3428 = vmatprep.subr.mxu0 0.0
    %3429 = vmatpush1.msra.mxu0 0.0
    %3430 = vmatprep.subr.mxu0 0.0
    %3431 = vmatpush1.msra.mxu0 0.0
    %3432 = vmatprep.subr.mxu0 0.0
    %3433 = vmatpush1.msra.mxu0 0.0
    %3434 = vmatprep.subr.mxu0 0.0
    %3435 = vmatpush1.msra.mxu0 0.0
    %3436 = vmatprep.subr.mxu0 0.0
    %3437 = vmatpush1.msra.mxu0 0.0
    %3438 = vmatprep.subr.mxu0 0.0
    %3439 = vmatpush1.msra.mxu0 0.0
    %3440 = vmatprep.subr.mxu0 0.0
    %3441 = vmatpush1.msra.mxu0 0.0
    %3442 = vmatprep.subr.mxu0 0.0
    %3443 = vmatpush1.msra.mxu0 0.0
    %3444 = vmatprep.subr.mxu0 0.0
    %3445 = vmatpush1.msra.mxu0 0.0
    %3446 = vmatprep.subr.mxu0 0.0
    %3447 = vmatpush1.msra.mxu0 0.0
    %3448 = vmatprep.subr.mxu0 0.0
    %3449 = vmatpush1.msra.mxu0 0.0
    %3450 = vmatprep.subr.mxu0 0.0
    %3451 = vmatpush1.msra.mxu0 0.0
    %3452 = vmatprep.subr.mxu0 0.0
    %3453 = vmatpush1.msra.mxu0 0.0
    %3454 = vmatprep.subr.mxu0 0.0
    %3455 = vmatpush1.msra.mxu0 0.0
    %3456 = vmatprep.subr.mxu0 0.0
    %3457 = vmatpush1.msra.mxu0 0.0
    %3458 = vmatprep.subr.mxu0 0.0
    %3459 = vmatpush1.msra.mxu0 0.0
    %3460 = vmatprep.mubr.f32.mxu0 0.0
    %3461 = vmatmul.mubr.f32.gmra.mrb[0].mxu0 %v3394
    %v3462 = vpop.f32.mrb[0].mxu0
    %v3463 = vadd.f32 0.0, %v3462
    %v3464 = vpop.f32.mrb[0].mxu0
    %3465 = vdwg.mxu0
    %3467 = vrot.lane.b32.xlu0 %v3463, 24
    %v3468 = vpop.permute.xlu0 %3467
    %3470 = vst.msk [vmem:[#allocation2 + $0x8] sm:$0xff] %vm955, %v3468
    %v3471 = vld [vmem:[#allocation2] sm:$0xff]
    %v3472 = vld [vmem:[#allocation2 + $0x8] sm:$0xff]
    %s3473 = scalar_lea.vmem %s5, 32
    %v3474 = vld [vmem:[%s3473] sm:$0xff]
    %v3475 = vld [vmem:[%s3473 + $0x8] sm:$0xff]
    %v3476 = vld [vmem:[%s3473 + $0x10] sm:$0xff]
    %v3477 = vld [vmem:[%s3473 + $0x18] sm:$0xff]
    %v3478 = vlaneseq
    %v3479 = vshrl.u32 %v3478, 7
    %v3480 = vsub.s32 3, %v3479
    %v3481 = vrot.slane %v1999, %v3480
    %v3483 = vsel %vm147, %v3471, 0
    %v3486 = vsel %vm147, %v3472, 0
    %3488 = vmatprep.subr.mxu0 0.0
    %3489 = vmatpush1.msra.mxu0 %v3474
    %3490 = vmatprep.subr.mxu0 0.0
    %3491 = vmatpush1.msra.mxu0 %v3475
    %3492 = vmatprep.subr.mxu0 0.0
    %3493 = vmatpush1.msra.mxu0 %v3476
    %3494 = vmatprep.subr.mxu0 0.0
    %3495 = vmatpush1.msra.mxu0 %v3477
    %3496 = vmatprep.subr.mxu0 0.0
    %3497 = vmatpush1.msra.mxu0 0.0
    %3498 = vmatprep.subr.mxu0 0.0
    %3499 = vmatpush1.msra.mxu0 0.0
    %3500 = vmatprep.subr.mxu0 0.0
    %3501 = vmatpush1.msra.mxu0 0.0
    %3502 = vmatprep.subr.mxu0 0.0
    %3503 = vmatpush1.msra.mxu0 0.0
    %3504 = vmatprep.subr.mxu0 0.0
    %3505 = vmatpush1.msra.mxu0 0.0
    %3506 = vmatprep.subr.mxu0 0.0
    %3507 = vmatpush1.msra.mxu0 0.0
    %3508 = vmatprep.subr.mxu0 0.0
    %3509 = vmatpush1.msra.mxu0 0.0
    %3510 = vmatprep.subr.mxu0 0.0
    %3511 = vmatpush1.msra.mxu0 0.0
    %3512 = vmatprep.subr.mxu0 0.0
    %3513 = vmatpush1.msra.mxu0 0.0
    %3514 = vmatprep.subr.mxu0 0.0
    %3515 = vmatpush1.msra.mxu0 0.0
    %3516 = vmatprep.subr.mxu0 0.0
    %3517 = vmatpush1.msra.mxu0 0.0
    %3518 = vmatprep.subr.mxu0 0.0
    %3519 = vmatpush1.msra.mxu0 0.0
    %3520 = vmatprep.subr.mxu0 0.0
    %3521 = vmatpush1.msra.mxu0 0.0
    %3522 = vmatprep.subr.mxu0 0.0
    %3523 = vmatpush1.msra.mxu0 0.0
    %3524 = vmatprep.subr.mxu0 0.0
    %3525 = vmatpush1.msra.mxu0 0.0
    %3526 = vmatprep.subr.mxu0 0.0
    %3527 = vmatpush1.msra.mxu0 0.0
    %3528 = vmatprep.subr.mxu0 0.0
    %3529 = vmatpush1.msra.mxu0 0.0
    %3530 = vmatprep.subr.mxu0 0.0
    %3531 = vmatpush1.msra.mxu0 0.0
    %3532 = vmatprep.subr.mxu0 0.0
    %3533 = vmatpush1.msra.mxu0 0.0
    %3534 = vmatprep.subr.mxu0 0.0
    %3535 = vmatpush1.msra.mxu0 0.0
    %3536 = vmatprep.subr.mxu0 0.0
    %3537 = vmatpush1.msra.mxu0 0.0
    %3538 = vmatprep.subr.mxu0 0.0
    %3539 = vmatpush1.msra.mxu0 0.0
    %3540 = vmatprep.subr.mxu0 0.0
    %3541 = vmatpush1.msra.mxu0 0.0
    %3542 = vmatprep.subr.mxu0 0.0
    %3543 = vmatpush1.msra.mxu0 0.0
    %3544 = vmatprep.subr.mxu0 0.0
    %3545 = vmatpush1.msra.mxu0 0.0
    %3546 = vmatprep.subr.mxu0 0.0
    %3547 = vmatpush1.msra.mxu0 0.0
    %3548 = vmatprep.subr.mxu0 0.0
    %3549 = vmatpush1.msra.mxu0 0.0
    %3550 = vmatprep.subr.mxu0 0.0
    %3551 = vmatpush1.msra.mxu0 0.0
    %3552 = vmatprep.mubr.f32.mxu0 0.0
    %3553 = vmatmul.mubr.f32.gmra.mrb[0].mxu0 %v3483
    %v3554 = vpop.f32.mrb[0].mxu0
    %v3555 = vadd.f32 %v3481, %v3554
    %v3556 = vpop.f32.mrb[0].mxu0
    %3557 = vmatprep.mubr.f32.mxu0 0.0
    %3558 = vmatmul.mubr.f32.gmra.mrb[0].mxu0 %v3486
    %v3559 = vpop.f32.mrb[0].mxu0
    %v3560 = vadd.f32 %v3481, %v3559
    %v3561 = vpop.f32.mrb[0].mxu0
    %3562 = vdwg.mxu0
    %v3563 = vadd.f32 %v3555, %v1996
    %v3564 = vadd.f32 %v3560, %v1997
    %v3565 = vsel %vm147, %v3563, 0.0
    %3566 = vadd.xlane.f32.xlu0 %v3565
    %v3567 = vpop.xlane.xlu0 %3566
    %v3568 = vsel %vm147, %v3564, 0.0
    %3569 = vadd.xlane.f32.xlu0 %v3568
    %v3570 = vpop.xlane.xlu0 %3569
    %v3571 = vmul.f32 %v3567, %v1737
    %v3572 = vmul.f32 %v3570, %v1737
    %v3573 = vsub.f32 %v3563, %v3571
    %v3574 = vsub.f32 %v3564, %v3572
    %v3575 = vmul.f32 %v3573, %v3573
    %v3576 = vmul.f32 %v3574, %v3574
    %v3577 = vsel %vm147, %v3575, 0.0
    %3578 = vadd.xlane.f32.xlu0 %v3577
    %v3579 = vpop.xlane.xlu0 %3578
    %v3580 = vsel %vm147, %v3576, 0.0
    %3581 = vadd.xlane.f32.xlu0 %v3580
    %v3582 = vpop.xlane.xlu0 %3581
    %v3583 = vmul.f32 %v3579, %v1737
    %v3584 = vmul.f32 %v3582, %v1737
    %v3585 = vadd.f32 %v3583, 1e-05
    %v3586 = vadd.f32 %v3584, 1e-05
    %v3587 = vrsqrt.pop %v3585
    %v3588 = vrsqrt.pop %v3586
    %v3589 = vmul.f32 %v3573, %v3587
    %v3590 = vmul.f32 %v3574, %v3588
    %v3591 = vlaneseq
    %v3592 = vshrl.u32 %v3591, 7
    %v3593 = vsub.s32 4, %v3592
    %v3594 = vrot.slane %v1999, %v3593
    %v3595 = vmul.f32 %v3589, %v3594
    %v3596 = vmul.f32 %v3590, %v3594
    %v3597 = vlaneseq
    %v3598 = vshrl.u32 %v3597, 7
    %v3599 = vsub.s32 5, %v3598
    %v3600 = vrot.slane %v1999, %v3599
    %v3601 = vadd.f32 %v3595, %v3600
    %v3602 = vadd.f32 %v3596, %v3600
    %s3603 = scalar_lea.vmem %s6, 32
    %v3604 = vld [vmem:[%s3603] sm:$0xff]
    %v3605 = vld [vmem:[%s3603 + $0x8] sm:$0xff]
    %v3606 = vld [vmem:[%s3603 + $0x10] sm:$0xff]
    %v3607 = vld [vmem:[%s3603 + $0x18] sm:$0xff]
    %v3609 = vlaneseq
    %v3610 = vshrl.u32 %v3609, 7
    %v3611 = vsub.s32 0, %v3610
    %v3612 = vrot.slane %v2002, %v3611
    %v3615 = vsel %vm147, %v3601, 0
    %v3618 = vsel %vm147, %v3602, 0
    %3620 = vmatprep.subr.mxu0 0.0
    %3621 = vmatpush1.msra.mxu0 %v3604
    %3622 = vmatprep.subr.mxu0 0.0
    %3623 = vmatpush1.msra.mxu0 %v3605
    %3624 = vmatprep.subr.mxu0 0.0
    %3625 = vmatpush1.msra.mxu0 %v3606
    %3626 = vmatprep.subr.mxu0 0.0
    %3627 = vmatpush1.msra.mxu0 %v3607
    %3628 = vmatprep.subr.mxu0 0.0
    %3629 = vmatpush1.msra.mxu0 0.0
    %3630 = vmatprep.subr.mxu0 0.0
    %3631 = vmatpush1.msra.mxu0 0.0
    %3632 = vmatprep.subr.mxu0 0.0
    %3633 = vmatpush1.msra.mxu0 0.0
    %3634 = vmatprep.subr.mxu0 0.0
    %3635 = vmatpush1.msra.mxu0 0.0
    %3636 = vmatprep.subr.mxu0 0.0
    %3637 = vmatpush1.msra.mxu0 0.0
    %3638 = vmatprep.subr.mxu0 0.0
    %3639 = vmatpush1.msra.mxu0 0.0
    %3640 = vmatprep.subr.mxu0 0.0
    %3641 = vmatpush1.msra.mxu0 0.0
    %3642 = vmatprep.subr.mxu0 0.0
    %3643 = vmatpush1.msra.mxu0 0.0
    %3644 = vmatprep.subr.mxu0 0.0
    %3645 = vmatpush1.msra.mxu0 0.0
    %3646 = vmatprep.subr.mxu0 0.0
    %3647 = vmatpush1.msra.mxu0 0.0
    %3648 = vmatprep.subr.mxu0 0.0
    %3649 = vmatpush1.msra.mxu0 0.0
    %3650 = vmatprep.subr.mxu0 0.0
    %3651 = vmatpush1.msra.mxu0 0.0
    %3652 = vmatprep.subr.mxu0 0.0
    %3653 = vmatpush1.msra.mxu0 0.0
    %3654 = vmatprep.subr.mxu0 0.0
    %3655 = vmatpush1.msra.mxu0 0.0
    %3656 = vmatprep.subr.mxu0 0.0
    %3657 = vmatpush1.msra.mxu0 0.0
    %3658 = vmatprep.subr.mxu0 0.0
    %3659 = vmatpush1.msra.mxu0 0.0
    %3660 = vmatprep.subr.mxu0 0.0
    %3661 = vmatpush1.msra.mxu0 0.0
    %3662 = vmatprep.subr.mxu0 0.0
    %3663 = vmatpush1.msra.mxu0 0.0
    %3664 = vmatprep.subr.mxu0 0.0
    %3665 = vmatpush1.msra.mxu0 0.0
    %3666 = vmatprep.subr.mxu0 0.0
    %3667 = vmatpush1.msra.mxu0 0.0
    %3668 = vmatprep.subr.mxu0 0.0
    %3669 = vmatpush1.msra.mxu0 0.0
    %3670 = vmatprep.subr.mxu0 0.0
    %3671 = vmatpush1.msra.mxu0 0.0
    %3672 = vmatprep.subr.mxu0 0.0
    %3673 = vmatpush1.msra.mxu0 0.0
    %3674 = vmatprep.subr.mxu0 0.0
    %3675 = vmatpush1.msra.mxu0 0.0
    %3676 = vmatprep.subr.mxu0 0.0
    %3677 = vmatpush1.msra.mxu0 0.0
    %3678 = vmatprep.subr.mxu0 0.0
    %3679 = vmatpush1.msra.mxu0 0.0
    %3680 = vmatprep.subr.mxu0 0.0
    %3681 = vmatpush1.msra.mxu0 0.0
    %3682 = vmatprep.subr.mxu0 0.0
    %3683 = vmatpush1.msra.mxu0 0.0
    %3684 = vmatprep.mubr.f32.mxu0 0.0
    %3685 = vmatmul.mubr.f32.gmra.mrb[0].mxu0 %v3615
    %v3686 = vpop.f32.mrb[0].mxu0
    %v3687 = vadd.f32 %v3612, %v3686
    %v3688 = vpop.f32.mrb[0].mxu0
    %3689 = vmatprep.mubr.f32.mxu0 0.0
    %3690 = vmatmul.mubr.f32.gmra.mrb[0].mxu0 %v3618
    %v3691 = vpop.f32.mrb[0].mxu0
    %v3692 = vadd.f32 %v3612, %v3691
    %v3693 = vpop.f32.mrb[0].mxu0
    %3694 = vdwg.mxu0
    %v3695 = vmax.f32 %v3687, 0.0
    %v3696 = vmax.f32 %v3692, 0.0
    %s3697 = scalar_lea.vmem %s7, 128
    %v3698 = vld [vmem:[%s3697] sm:$0xff]
    %v3699 = vld [vmem:[%s3697 + $0x8] sm:$0xff]
    %v3700 = vld [vmem:[%s3697 + $0x10] sm:$0xff]
    %v3701 = vld [vmem:[%s3697 + $0x18] sm:$0xff]
    %v3702 = vld [vmem:[%s3697 + $0x20] sm:$0xff]
    %v3703 = vld [vmem:[%s3697 + $0x28] sm:$0xff]
    %v3704 = vld [vmem:[%s3697 + $0x30] sm:$0xff]
    %v3705 = vld [vmem:[%s3697 + $0x38] sm:$0xff]
    %v3706 = vld [vmem:[%s3697 + $0x40] sm:$0xff]
    %v3707 = vld [vmem:[%s3697 + $0x48] sm:$0xff]
    %v3708 = vld [vmem:[%s3697 + $0x50] sm:$0xff]
    %v3709 = vld [vmem:[%s3697 + $0x58] sm:$0xff]
    %v3710 = vld [vmem:[%s3697 + $0x60] sm:$0xff]
    %v3711 = vld [vmem:[%s3697 + $0x68] sm:$0xff]
    %v3712 = vld [vmem:[%s3697 + $0x70] sm:$0xff]
    %v3713 = vld [vmem:[%s3697 + $0x78] sm:$0xff]
    %v3714 = vlaneseq
    %v3715 = vshrl.u32 %v3714, 7
    %v3716 = vsub.s32 6, %v3715
    %v3717 = vrot.slane %v1999, %v3716
    %3718 = vmatprep.subr.mxu0 0.0
    %3719 = vmatpush1.msra.mxu0 %v3698
    %3720 = vmatprep.subr.mxu0 0.0
    %3721 = vmatpush1.msra.mxu0 %v3699
    %3722 = vmatprep.subr.mxu0 0.0
    %3723 = vmatpush1.msra.mxu0 %v3700
    %3724 = vmatprep.subr.mxu0 0.0
    %3725 = vmatpush1.msra.mxu0 %v3701
    %3726 = vmatprep.subr.mxu0 0.0
    %3727 = vmatpush1.msra.mxu0 %v3702
    %3728 = vmatprep.subr.mxu0 0.0
    %3729 = vmatpush1.msra.mxu0 %v3703
    %3730 = vmatprep.subr.mxu0 0.0
    %3731 = vmatpush1.msra.mxu0 %v3704
    %3732 = vmatprep.subr.mxu0 0.0
    %3733 = vmatpush1.msra.mxu0 %v3705
    %3734 = vmatprep.subr.mxu0 0.0
    %3735 = vmatpush1.msra.mxu0 %v3706
    %3736 = vmatprep.subr.mxu0 0.0
    %3737 = vmatpush1.msra.mxu0 %v3707
    %3738 = vmatprep.subr.mxu0 0.0
    %3739 = vmatpush1.msra.mxu0 %v3708
    %3740 = vmatprep.subr.mxu0 0.0
    %3741 = vmatpush1.msra.mxu0 %v3709
    %3742 = vmatprep.subr.mxu0 0.0
    %3743 = vmatpush1.msra.mxu0 %v3710
    %3744 = vmatprep.subr.mxu0 0.0
    %3745 = vmatpush1.msra.mxu0 %v3711
    %3746 = vmatprep.subr.mxu0 0.0
    %3747 = vmatpush1.msra.mxu0 %v3712
    %3748 = vmatprep.subr.mxu0 0.0
    %3749 = vmatpush1.msra.mxu0 %v3713
    %3750 = vmatprep.subr.mxu0 0.0
    %3751 = vmatpush1.msra.mxu0 0.0
    %3752 = vmatprep.subr.mxu0 0.0
    %3753 = vmatpush1.msra.mxu0 0.0
    %3754 = vmatprep.subr.mxu0 0.0
    %3755 = vmatpush1.msra.mxu0 0.0
    %3756 = vmatprep.subr.mxu0 0.0
    %3757 = vmatpush1.msra.mxu0 0.0
    %3758 = vmatprep.subr.mxu0 0.0
    %3759 = vmatpush1.msra.mxu0 0.0
    %3760 = vmatprep.subr.mxu0 0.0
    %3761 = vmatpush1.msra.mxu0 0.0
    %3762 = vmatprep.subr.mxu0 0.0
    %3763 = vmatpush1.msra.mxu0 0.0
    %3764 = vmatprep.subr.mxu0 0.0
    %3765 = vmatpush1.msra.mxu0 0.0
    %3766 = vmatprep.subr.mxu0 0.0
    %3767 = vmatpush1.msra.mxu0 0.0
    %3768 = vmatprep.subr.mxu0 0.0
    %3769 = vmatpush1.msra.mxu0 0.0
    %3770 = vmatprep.subr.mxu0 0.0
    %3771 = vmatpush1.msra.mxu0 0.0
    %3772 = vmatprep.subr.mxu0 0.0
    %3773 = vmatpush1.msra.mxu0 0.0
    %3774 = vmatprep.subr.mxu0 0.0
    %3775 = vmatpush1.msra.mxu0 0.0
    %3776 = vmatprep.subr.mxu0 0.0
    %3777 = vmatpush1.msra.mxu0 0.0
    %3778 = vmatprep.subr.mxu0 0.0
    %3779 = vmatpush1.msra.mxu0 0.0
    %3780 = vmatprep.subr.mxu0 0.0
    %3781 = vmatpush1.msra.mxu0 0.0
    %3782 = vmatprep.mubr.f32.mxu0 0.0
    %3783 = vmatmul.mubr.f32.gmra.mrb[0].mxu0 %v3695
    %v3784 = vpop.f32.mrb[0].mxu0
    %v3785 = vadd.f32 %v3717, %v3784
    %v3786 = vpop.f32.mrb[0].mxu0
    %3787 = vmatprep.mubr.f32.mxu0 0.0
    %3788 = vmatmul.mubr.f32.gmra.mrb[0].mxu0 %v3696
    %v3789 = vpop.f32.mrb[0].mxu0
    %v3790 = vadd.f32 %v3717, %v3789
    %v3791 = vpop.f32.mrb[0].mxu0
    %3792 = vdwg.mxu0
    %v3793 = vadd.f32 %v3785, %v3601
    %v3794 = vadd.f32 %v3790, %v3602
    %v3795 = vsel %vm147, %v3793, 0.0
    %3796 = vadd.xlane.f32.xlu0 %v3795
    %v3797 = vpop.xlane.xlu0 %3796
    %v3798 = vsel %vm147, %v3794, 0.0
    %3799 = vadd.xlane.f32.xlu0 %v3798
    %v3800 = vpop.xlane.xlu0 %3799
    %v3801 = vmul.f32 %v3797, %v1737
    %v3802 = vmul.f32 %v3800, %v1737
    %v3803 = vsub.f32 %v3793, %v3801
    %v3804 = vsub.f32 %v3794, %v3802
    %v3805 = vmul.f32 %v3803, %v3803
    %v3806 = vmul.f32 %v3804, %v3804
    %v3807 = vsel %vm147, %v3805, 0.0
    %3808 = vadd.xlane.f32.xlu0 %v3807
    %v3809 = vpop.xlane.xlu0 %3808
    %v3810 = vsel %vm147, %v3806, 0.0
    %3811 = vadd.xlane.f32.xlu0 %v3810
    %v3812 = vpop.xlane.xlu0 %3811
    %v3813 = vmul.f32 %v3809, %v1737
    %v3814 = vmul.f32 %v3812, %v1737
    %v3815 = vadd.f32 %v3813, 1e-05
    %v3816 = vadd.f32 %v3814, 1e-05
    %v3817 = vrsqrt.pop %v3815
    %v3818 = vrsqrt.pop %v3816
    %v3819 = vmul.f32 %v3803, %v3817
    %v3820 = vmul.f32 %v3804, %v3818
    %v3821 = vlaneseq
    %v3822 = vshrl.u32 %v3821, 7
    %v3823 = vsub.s32 7, %v3822
    %v3824 = vrot.slane %v1999, %v3823
    %v3825 = vmul.f32 %v3819, %v3824
    %v3826 = vmul.f32 %v3820, %v3824
    %v3827 = vlaneseq
    %v3828 = vshrl.u32 %v3827, 7
    %v3829 = vsub.s32 0, %v3828
    %v3830 = vrot.slane %v2000, %v3829
    %v3831 = vadd.f32 %v3825, %v3830
    %v3832 = vadd.f32 %v3826, %v3830
    %3833 = vst.msk [vmem:[#allocation3] sm:$0xff] %vm147, %v3831
    %3834 = vst.msk [vmem:[#allocation3 + $0x8] sm:$0xff] %vm147, %v3832
    // Predicated region
    $region42: #{encoder_forward.1} parent=1 // pred_check
      _
    $region43: #{encoder_forward.1} parent=1 // pred_check_branch
      %3836 = sbr.rel (0) target = $region45
    $region44: #{encoder_forward.1} parent=1 // pred_region
      %s3838 = ssub.s32 256, 256
      %3839 = vsyncadd [#allocation4], %s3838
      %s3840 = sshll.u32 [#allocation3], 4
      %s3841 = int_to_ptr.vmem [resolvable:$true] %s3840
      %3846 = dma.vmem_to_hbm [thread:$0]  %s3841, 256, %s10, [#allocation4], 128, 128, 8
    $region45: #{encoder_forward.1} parent=1 // pred_fallthru
      _
    // Predicated region
    $region46: #{encoder_forward.1} parent=1 // pred_check
      _
    $region47: #{encoder_forward.1} parent=1 // pred_check_branch
      %3848 = sbr.rel (0) target = $region49
    $region48: #{encoder_forward.1} parent=1 // pred_region
      %3849 = dma.done [#allocation4], 256
    $region49: #{encoder_forward.1} parent=1 // pred_fallthru
      _
    %3850 = vsyncpa [#allocation4], 1

</llo_original>
